<compile_context>
chip_gen: v5e
topology: v5e:2x2
jax: 0.10.0
libtpu: 0.0.40
codegen_flags: <defaults>
</compile_context>

<pallas_src>
import functools

import jax
import jax.numpy as jnp
from jax.experimental import pallas as pl
from jax.experimental.pallas import tpu as pltpu

D_MODEL = 256
N_HEAD = 4
HEAD_DIM = D_MODEL // N_HEAD
D_FF = 4 * D_MODEL
LN_EPS = 1e-5  # PyTorch nn.LayerNorm default


def _layernorm(h, gamma, beta):
    mean = jnp.mean(h, axis=-1, keepdims=True)
    cent = h - mean
    var = jnp.mean(cent * cent, axis=-1, keepdims=True)
    return cent * jax.lax.rsqrt(var + LN_EPS) * gamma + beta


def _gelu_tanh(x):
    # tanh-approximate GELU (EUP tanh); |err| vs exact erf GELU < ~1e-3.
    c = 0.7978845608028654  # sqrt(2/pi)
    return 0.5 * x * (1.0 + jnp.tanh(c * (x + 0.044715 * (x * x * x))))


def transformer_block_kernel(x_ref, wqkv_ref, bqkv_ref, wo_ref, bo_ref,
                             g1_ref, be1_ref, wf1_ref, bf1_ref,
                             wf2_ref, bf2_ref, g2_ref, be2_ref, o_ref):
    # TODO(synk): attn-dropout and FF-dropout are identity (eval mode);
    #             only the attn_mask=None / kv_cache=None path is implemented.
    TB, S, D = x_ref.shape
    M = TB * S

    # NOTE: (TB, S, D) -> (M, D) is a free relayout only when S % 8 == 0
    # (f32 sublane); other S silently materializes a VMEM copy (perf only).
    x = x_ref[...].reshape(M, D)                                   # (M, D) f32
    xb = x.astype(jnp.bfloat16)

    # --- QKV projection: one bf16 MXU matmul, f32 accumulate ----------------
    # 1/sqrt(HEAD_DIM) is pre-folded into the Q columns of w_qkv/b_qkv on the
    # host, so no in-kernel scale multiply is needed.
    qkv = jnp.dot(xb, wqkv_ref[...],
                  preferred_element_type=jnp.float32) + bqkv_ref[...]  # (M,3D)

    q = qkv[:, 0:D_MODEL].reshape(TB, S, D_MODEL)
    k = qkv[:, D_MODEL:2 * D_MODEL].reshape(TB, S, D_MODEL)
    v = qkv[:, 2 * D_MODEL:3 * D_MODEL].reshape(TB, S, D_MODEL)

    # --- multi-head attention: ONE batched einsum pair over (head, batch) ---
    # Heads are moved from lanes to a single leading batch axis (index
    # h * TB + b) via 4 static lane slices + an axis-0 concat; the two einsums
    # then run with a single leading batch dim (well-supported dot_general
    # form), replacing the old per-head loop + 4-piece output concat of live
    # f32 head outputs.
    # TODO(synk): for production S < 128 the (.., S, S) score tensor is lane-
    #             sparse; a lane-packed score layout would improve VPU/MXU use.
    def to_heads(t):  # (TB, S, D) f32 -> (N_HEAD*TB, S, HEAD_DIM) bf16
        return jnp.concatenate(
            [t[:, :, h * HEAD_DIM:(h + 1) * HEAD_DIM] for h in range(N_HEAD)],
            axis=0).astype(jnp.bfloat16)

    qh, kh, vh = to_heads(q), to_heads(k), to_heads(v)

    s = jnp.einsum("bqd,bkd->bqk", qh, kh,
                   preferred_element_type=jnp.float32)      # (H*TB, S, S) f32
    s = s - jnp.max(s, axis=-1, keepdims=True)
    p = jnp.exp(s)
    p = p * pl.reciprocal(jnp.sum(p, axis=-1, keepdims=True), approx=True)
    oh = jnp.einsum("bqk,bkd->bqd", p.astype(jnp.bfloat16), vh,
                    preferred_element_type=jnp.float32)     # (H*TB, S, hd)

    # back to the concat-of-heads (M, D) layout for the output projection
    oh_b = oh.astype(jnp.bfloat16)
    o_cat = jnp.concatenate(
        [oh_b[h * TB:(h + 1) * TB] for h in range(N_HEAD)],
        axis=-1).reshape(M, D_MODEL)

    # --- output projection: single K=256 matmul ------------------------------
    y = jnp.dot(o_cat, wo_ref[...],
                preferred_element_type=jnp.float32) + bo_ref[...]   # (M, D)

    # --- residual + LayerNorm 1 (f32) ----------------------------------------
    h1 = _layernorm(x + y, g1_ref[...], be1_ref[...])

    # --- feed-forward: GELU in bf16 (bf16 VPU/EUP on v6e/v7x) ----------------
    f = jnp.dot(h1.astype(jnp.bfloat16), wf1_ref[...],
                preferred_element_type=jnp.float32) + bf1_ref[...]  # (M, 4D)
    f = _gelu_tanh(f.astype(jnp.bfloat16))
    f = jnp.dot(f, wf2_ref[...],
                preferred_element_type=jnp.float32) + bf2_ref[...]  # (M, D)

    # --- residual + LayerNorm 2 (f32) ----------------------------------------
    out = _layernorm(h1 + f, g2_ref[...], be2_ref[...])
    o_ref[...] = out.reshape(TB, S, D).astype(o_ref.dtype)


def _pick_batch_tile(B, S, target_rows=512, min_steps=2):
    """Largest TB dividing B with TB*S <= ~target_rows, while keeping at least
    `min_steps` grid steps when B allows (so v7x's two TensorCores both get
    work under dimension_semantics=('parallel',))."""
    tb = max(1, min(B, max(1, target_rows // max(S, 1))))
    if B >= min_steps:
        tb = min(tb, B // min_steps)
    tb = max(tb, 1)
    while B % tb:
        tb -= 1
    return tb


def prepare_params(params):
    """One-time host-side weight prep: fold 1/sqrt(HEAD_DIM) into the Q slice
    of the QKV projection and pre-cast the matmul weights to bf16 so the
    per-call wrapper does no device-side casting."""
    bf16 = jnp.bfloat16
    scale = 1.0 / (HEAD_DIM ** 0.5)
    col_scale = jnp.concatenate(
        [jnp.full((D_MODEL,), scale, jnp.float32),
         jnp.ones((2 * D_MODEL,), jnp.float32)])[None, :]      # (1, 3D)
    w_qkv = params["w_qkv"] * col_scale
    b_qkv = params["b_qkv"] * col_scale
    return (
        w_qkv.astype(bf16), b_qkv,
        params["w_o"].astype(bf16), params["b_o"],
        params["ln1_g"], params["ln1_b"],
        params["w_ff1"].astype(bf16), params["b_ff1"],
        params["w_ff2"].astype(bf16), params["b_ff2"],
        params["ln2_g"], params["ln2_b"],
    )


@functools.partial(jax.jit, static_argnames=("out_dtype",))
def transformer_block(x, prepared, out_dtype=jnp.float32):
    B, S, D = x.shape
    assert D == D_MODEL
    TB = _pick_batch_tile(B, S)

    def full_spec(shape):
        n = len(shape)
        # TODO(synk): weights could be single-buffered (constant index_map);
        #             kept default-buffered to stay on conservative lowering.
        return pl.BlockSpec(shape, lambda b, _n=n: (0,) * _n)

    in_specs = [pl.BlockSpec((TB, S, D), lambda b: (b, 0, 0))]
    in_specs += [full_spec(w.shape) for w in prepared]

    return pl.pallas_call(
        transformer_block_kernel,
        out_shape=jax.ShapeDtypeStruct((B, S, D), out_dtype),
        grid_spec=pltpu.PrefetchScalarGridSpec(
            num_scalar_prefetch=0,
            grid=(B // TB,),
            in_specs=in_specs,
            out_specs=pl.BlockSpec((TB, S, D), lambda b: (b, 0, 0)),
        ),
        compiler_params=pltpu.CompilerParams(
            dimension_semantics=("parallel",),
            # Above default scoped limits (16/32 MiB) yet within physical VMEM
            # on v5e/v6e (128 MiB) and v7x (64 MiB).
            vmem_limit_bytes=64 * 1024 * 1024,
        ),
    )(x, *prepared)


def init_params(key):
    ks = jax.random.split(key, 8)
    w = lambda k, shape, s=0.02: (s * jax.random.normal(k, shape)).astype(jnp.float32)
    return dict(
        w_qkv=w(ks[0], (D_MODEL, 3 * D_MODEL)),
        b_qkv=w(ks[1], (1, 3 * D_MODEL)),
        w_o=w(ks[2], (D_MODEL, D_MODEL)),
        b_o=w(ks[3], (1, D_MODEL)),
        ln1_g=jnp.ones((1, D_MODEL), jnp.float32),
        ln1_b=jnp.zeros((1, D_MODEL), jnp.float32),
        w_ff1=w(ks[4], (D_MODEL, D_FF)),
        b_ff1=w(ks[5], (1, D_FF)),
        w_ff2=w(ks[6], (D_FF, D_MODEL)),
        b_ff2=w(ks[7], (1, D_MODEL)),
        ln2_g=jnp.ones((1, D_MODEL), jnp.float32),
        ln2_b=jnp.zeros((1, D_MODEL), jnp.float32),
    )


def reference(x, p):
    # pure-JAX f32 reference matching the PyTorch forward (eval mode, exact GELU).
    def ln(h, g, b):
        m = jnp.mean(h, -1, keepdims=True)
        v = jnp.mean((h - m) ** 2, -1, keepdims=True)
        return (h - m) / jnp.sqrt(v + LN_EPS) * g + b

    B, S, _ = x.shape
    qkv = x @ p["w_qkv"] + p["b_qkv"]
    q, k, v = jnp.split(qkv, 3, axis=-1)
    sh = lambda t: t.reshape(B, S, N_HEAD, HEAD_DIM).transpose(0, 2, 1, 3)
    qh, kh, vh = sh(q), sh(k), sh(v)
    s = jnp.einsum("bhqd,bhkd->bhqk", qh, kh) / jnp.sqrt(float(HEAD_DIM))
    att = jax.nn.softmax(s, axis=-1)
    o = jnp.einsum("bhqk,bhkd->bhqd", att, vh).transpose(0, 2, 1, 3).reshape(B, S, D_MODEL)
    y = o @ p["w_o"] + p["b_o"]
    h1 = ln(x + y, p["ln1_g"], p["ln1_b"])
    f = jax.nn.gelu(h1 @ p["w_ff1"] + p["b_ff1"], approximate=False)
    f = f @ p["w_ff2"] + p["b_ff2"]
    return ln(h1 + f, p["ln2_g"], p["ln2_b"])


if __name__ == "__main__":
    key = jax.random.PRNGKey(0)
    kx, kp = jax.random.split(key)
    B, S = 2, 8
    x = jax.random.normal(kx, (B, S, D_MODEL), dtype=jnp.float32)
    params = init_params(kp)
    prepared = prepare_params(params)   # one-time weight prep (scale fold + bf16)

    out = transformer_block(x, prepared)
    out = jax.block_until_ready(out)

    ref = jax.block_until_ready(reference(x, params))
    assert out.shape == (B, S, D_MODEL)
    assert jnp.allclose(out, ref, rtol=5e-2, atol=1e-2), (
        f"max abs diff {float(jnp.max(jnp.abs(out - ref)))}")
    print("KERNEL_OK")
</pallas_src>

<mosaic_0001>
module attributes {stable_mosaic.version = 11 : i64} {
  func.func @transformer_block_kernel(%arg0: i32, %arg1: memref<1x8x256xf32, #tpu.memory_space<vmem>>, %arg2: memref<256x768xbf16, #tpu.memory_space<vmem>>, %arg3: memref<1x768xf32, #tpu.memory_space<vmem>>, %arg4: memref<256x256xbf16, #tpu.memory_space<vmem>>, %arg5: memref<1x256xf32, #tpu.memory_space<vmem>>, %arg6: memref<1x256xf32, #tpu.memory_space<vmem>>, %arg7: memref<1x256xf32, #tpu.memory_space<vmem>>, %arg8: memref<256x1024xbf16, #tpu.memory_space<vmem>>, %arg9: memref<1x1024xf32, #tpu.memory_space<vmem>>, %arg10: memref<1024x256xbf16, #tpu.memory_space<vmem>>, %arg11: memref<1x256xf32, #tpu.memory_space<vmem>>, %arg12: memref<1x256xf32, #tpu.memory_space<vmem>>, %arg13: memref<1x256xf32, #tpu.memory_space<vmem>>, %arg14: memref<1x8x256xf32, #tpu.memory_space<vmem>>) attributes {dimension_semantics = [#tpu.dimension_semantics<parallel>], iteration_bounds = array<i64: 2>, scalar_prefetch = 0 : i64, scratch_operands = 0 : i64, tpu.core_type = #tpu.core_type<tc>, window_params = [{transform_indices = @transform_0, window_bounds = array<i64: 1, 8, 256>}, {pipeline_mode = #tpu.pipeline_mode<synchronous>, transform_indices = @transform_1, window_bounds = array<i64: 256, 768>}, {pipeline_mode = #tpu.pipeline_mode<synchronous>, transform_indices = @transform_2, window_bounds = array<i64: 1, 768>}, {pipeline_mode = #tpu.pipeline_mode<synchronous>, transform_indices = @transform_3, window_bounds = array<i64: 256, 256>}, {pipeline_mode = #tpu.pipeline_mode<synchronous>, transform_indices = @transform_4, window_bounds = array<i64: 1, 256>}, {pipeline_mode = #tpu.pipeline_mode<synchronous>, transform_indices = @transform_5, window_bounds = array<i64: 1, 256>}, {pipeline_mode = #tpu.pipeline_mode<synchronous>, transform_indices = @transform_6, window_bounds = array<i64: 1, 256>}, {pipeline_mode = #tpu.pipeline_mode<synchronous>, transform_indices = @transform_7, window_bounds = array<i64: 256, 1024>}, {pipeline_mode = #tpu.pipeline_mode<synchronous>, transform_indices = @transform_8, window_bounds = array<i64: 1, 1024>}, {pipeline_mode = #tpu.pipeline_mode<synchronous>, transform_indices = @transform_9, window_bounds = array<i64: 1024, 256>}, {pipeline_mode = #tpu.pipeline_mode<synchronous>, transform_indices = @transform_10, window_bounds = array<i64: 1, 256>}, {pipeline_mode = #tpu.pipeline_mode<synchronous>, transform_indices = @transform_11, window_bounds = array<i64: 1, 256>}, {pipeline_mode = #tpu.pipeline_mode<synchronous>, transform_indices = @transform_12, window_bounds = array<i64: 1, 256>}, {transform_indices = @transform_13, window_bounds = array<i64: 1, 8, 256>}]} {
    %c0 = arith.constant 0 : index
    %c0_0 = arith.constant 0 : index
    %c0_1 = arith.constant 0 : index
    %0 = vector.load %arg1[%c0, %c0_0, %c0_1] : memref<1x8x256xf32, #tpu.memory_space<vmem>>, vector<1x8x256xf32>
    %1 = vector.shape_cast %0 : vector<1x8x256xf32> to vector<8x256xf32>
    %2 = arith.truncf %1 : vector<8x256xf32> to vector<8x256xbf16>
    %c0_2 = arith.constant 0 : index
    %c0_3 = arith.constant 0 : index
    %3 = vector.load %arg2[%c0_2, %c0_3] : memref<256x768xbf16, #tpu.memory_space<vmem>>, vector<256x768xbf16>
    %cst = arith.constant dense<0.000000e+00> : vector<8x768xf32>
    %4 = tpu.matmul %2, %3, %cst {dimension_numbers = #tpu.dot_dimension_numbers<[1], [0], [0], [1], [0, 0, 1, 1], [], []>} : vector<8x256xbf16>, vector<256x768xbf16>, vector<8x768xf32> -> vector<8x768xf32>
    %c0_4 = arith.constant 0 : index
    %c0_5 = arith.constant 0 : index
    %5 = vector.load %arg3[%c0_4, %c0_5] : memref<1x768xf32, #tpu.memory_space<vmem>>, vector<1x768xf32>
    %6 = vector.broadcast %5 : vector<1x768xf32> to vector<8x768xf32>
    %7 = arith.addf %4, %6 : vector<8x768xf32>
    %8 = vector.extract_strided_slice %7 {offsets = [0, 0], sizes = [8, 256], strides = [1, 1]} : vector<8x768xf32> to vector<8x256xf32>
    %9 = vector.shape_cast %8 : vector<8x256xf32> to vector<1x8x256xf32>
    %10 = vector.extract_strided_slice %7 {offsets = [0, 256], sizes = [8, 256], strides = [1, 1]} : vector<8x768xf32> to vector<8x256xf32>
    %11 = vector.shape_cast %10 : vector<8x256xf32> to vector<1x8x256xf32>
    %12 = vector.extract_strided_slice %7 {offsets = [0, 512], sizes = [8, 256], strides = [1, 1]} : vector<8x768xf32> to vector<8x256xf32>
    %13 = vector.shape_cast %12 : vector<8x256xf32> to vector<1x8x256xf32>
    %14 = vector.extract_strided_slice %9 {offsets = [0, 0, 0], sizes = [1, 8, 64], strides = [1, 1, 1]} : vector<1x8x256xf32> to vector<1x8x64xf32>
    %15 = vector.extract_strided_slice %9 {offsets = [0, 0, 64], sizes = [1, 8, 64], strides = [1, 1, 1]} : vector<1x8x256xf32> to vector<1x8x64xf32>
    %16 = vector.extract_strided_slice %9 {offsets = [0, 0, 128], sizes = [1, 8, 64], strides = [1, 1, 1]} : vector<1x8x256xf32> to vector<1x8x64xf32>
    %17 = vector.extract_strided_slice %9 {offsets = [0, 0, 192], sizes = [1, 8, 64], strides = [1, 1, 1]} : vector<1x8x256xf32> to vector<1x8x64xf32>
    %18 = tpu.concatenate %14, %15, %16, %17 in 0 : vector<1x8x64xf32>, vector<1x8x64xf32>, vector<1x8x64xf32>, vector<1x8x64xf32> -> vector<4x8x64xf32>
    %19 = arith.truncf %18 : vector<4x8x64xf32> to vector<4x8x64xbf16>
    %20 = vector.extract_strided_slice %11 {offsets = [0, 0, 0], sizes = [1, 8, 64], strides = [1, 1, 1]} : vector<1x8x256xf32> to vector<1x8x64xf32>
    %21 = vector.extract_strided_slice %11 {offsets = [0, 0, 64], sizes = [1, 8, 64], strides = [1, 1, 1]} : vector<1x8x256xf32> to vector<1x8x64xf32>
    %22 = vector.extract_strided_slice %11 {offsets = [0, 0, 128], sizes = [1, 8, 64], strides = [1, 1, 1]} : vector<1x8x256xf32> to vector<1x8x64xf32>
    %23 = vector.extract_strided_slice %11 {offsets = [0, 0, 192], sizes = [1, 8, 64], strides = [1, 1, 1]} : vector<1x8x256xf32> to vector<1x8x64xf32>
    %24 = tpu.concatenate %20, %21, %22, %23 in 0 : vector<1x8x64xf32>, vector<1x8x64xf32>, vector<1x8x64xf32>, vector<1x8x64xf32> -> vector<4x8x64xf32>
    %25 = arith.truncf %24 : vector<4x8x64xf32> to vector<4x8x64xbf16>
    %26 = vector.extract_strided_slice %13 {offsets = [0, 0, 0], sizes = [1, 8, 64], strides = [1, 1, 1]} : vector<1x8x256xf32> to vector<1x8x64xf32>
    %27 = vector.extract_strided_slice %13 {offsets = [0, 0, 64], sizes = [1, 8, 64], strides = [1, 1, 1]} : vector<1x8x256xf32> to vector<1x8x64xf32>
    %28 = vector.extract_strided_slice %13 {offsets = [0, 0, 128], sizes = [1, 8, 64], strides = [1, 1, 1]} : vector<1x8x256xf32> to vector<1x8x64xf32>
    %29 = vector.extract_strided_slice %13 {offsets = [0, 0, 192], sizes = [1, 8, 64], strides = [1, 1, 1]} : vector<1x8x256xf32> to vector<1x8x64xf32>
    %30 = tpu.concatenate %26, %27, %28, %29 in 0 : vector<1x8x64xf32>, vector<1x8x64xf32>, vector<1x8x64xf32>, vector<1x8x64xf32> -> vector<4x8x64xf32>
    %31 = arith.truncf %30 : vector<4x8x64xf32> to vector<4x8x64xbf16>
    "tpu.trace_start"() <{level = 10 : i32, message = "bqd,bkd->bqk"}> : () -> ()
    %cst_6 = arith.constant dense<0.000000e+00> : vector<4x8x8xf32>
    %32 = tpu.matmul %19, %25, %cst_6 {dimension_numbers = #tpu.dot_dimension_numbers<[2], [2], [1], [1], [0, 0, 0, 1, 1, 1], [0], [0]>} : vector<4x8x64xbf16>, vector<4x8x64xbf16>, vector<4x8x8xf32> -> vector<4x8x8xf32>
    "tpu.trace_stop"() : () -> ()
    %cst_7 = arith.constant dense<0xFF800000> : vector<4x8xf32>
    %33 = vector.multi_reduction <maximumf>, %32, %cst_7 [2] : vector<4x8x8xf32> to vector<4x8xf32>
    %34 = vector.shape_cast %33 : vector<4x8xf32> to vector<4x8x1xf32>
    %35 = vector.broadcast %34 : vector<4x8x1xf32> to vector<4x8x8xf32>
    %36 = arith.subf %32, %35 : vector<4x8x8xf32>
    %37 = math.exp %36 : vector<4x8x8xf32>
    %cst_8 = arith.constant dense<0.000000e+00> : vector<4x8xf32>
    %38 = vector.multi_reduction <add>, %37, %cst_8 [2] : vector<4x8x8xf32> to vector<4x8xf32>
    %39 = vector.shape_cast %38 : vector<4x8xf32> to vector<4x8x1xf32>
    %40 = tpu.reciprocal %39 {approx = true} : vector<4x8x1xf32> -> vector<4x8x1xf32>
    %41 = vector.broadcast %40 : vector<4x8x1xf32> to vector<4x8x8xf32>
    %42 = arith.mulf %37, %41 : vector<4x8x8xf32>
    %43 = arith.truncf %42 : vector<4x8x8xf32> to vector<4x8x8xbf16>
    "tpu.trace_start"() <{level = 10 : i32, message = "bqk,bkd->bqd"}> : () -> ()
    %cst_9 = arith.constant dense<0.000000e+00> : vector<4x8x64xf32>
    %44 = tpu.matmul %43, %31, %cst_9 {dimension_numbers = #tpu.dot_dimension_numbers<[2], [1], [1], [2], [0, 0, 0, 1, 1, 2], [0], [0]>} : vector<4x8x8xbf16>, vector<4x8x64xbf16>, vector<4x8x64xf32> -> vector<4x8x64xf32>
    "tpu.trace_stop"() : () -> ()
    %45 = arith.truncf %44 : vector<4x8x64xf32> to vector<4x8x64xbf16>
    %46 = vector.extract_strided_slice %45 {offsets = [0, 0, 0], sizes = [1, 8, 64], strides = [1, 1, 1]} : vector<4x8x64xbf16> to vector<1x8x64xbf16>
    %47 = vector.extract_strided_slice %45 {offsets = [1, 0, 0], sizes = [1, 8, 64], strides = [1, 1, 1]} : vector<4x8x64xbf16> to vector<1x8x64xbf16>
    %48 = vector.extract_strided_slice %45 {offsets = [2, 0, 0], sizes = [1, 8, 64], strides = [1, 1, 1]} : vector<4x8x64xbf16> to vector<1x8x64xbf16>
    %49 = vector.extract_strided_slice %45 {offsets = [3, 0, 0], sizes = [1, 8, 64], strides = [1, 1, 1]} : vector<4x8x64xbf16> to vector<1x8x64xbf16>
    %50 = tpu.concatenate %46, %47, %48, %49 in 2 : vector<1x8x64xbf16>, vector<1x8x64xbf16>, vector<1x8x64xbf16>, vector<1x8x64xbf16> -> vector<1x8x256xbf16>
    %51 = vector.shape_cast %50 : vector<1x8x256xbf16> to vector<8x256xbf16>
    %c0_10 = arith.constant 0 : index
    %c0_11 = arith.constant 0 : index
    %52 = vector.load %arg4[%c0_10, %c0_11] : memref<256x256xbf16, #tpu.memory_space<vmem>>, vector<256x256xbf16>
    %cst_12 = arith.constant dense<0.000000e+00> : vector<8x256xf32>
    %53 = tpu.matmul %51, %52, %cst_12 {dimension_numbers = #tpu.dot_dimension_numbers<[1], [0], [0], [1], [0, 0, 1, 1], [], []>} : vector<8x256xbf16>, vector<256x256xbf16>, vector<8x256xf32> -> vector<8x256xf32>
    %c0_13 = arith.constant 0 : index
    %c0_14 = arith.constant 0 : index
    %54 = vector.load %arg5[%c0_13, %c0_14] : memref<1x256xf32, #tpu.memory_space<vmem>>, vector<1x256xf32>
    %55 = vector.broadcast %54 : vector<1x256xf32> to vector<8x256xf32>
    %56 = arith.addf %53, %55 : vector<8x256xf32>
    %57 = arith.addf %1, %56 : vector<8x256xf32>
    %c0_15 = arith.constant 0 : index
    %c0_16 = arith.constant 0 : index
    %58 = vector.load %arg6[%c0_15, %c0_16] : memref<1x256xf32, #tpu.memory_space<vmem>>, vector<1x256xf32>
    %c0_17 = arith.constant 0 : index
    %c0_18 = arith.constant 0 : index
    %59 = vector.load %arg7[%c0_17, %c0_18] : memref<1x256xf32, #tpu.memory_space<vmem>>, vector<1x256xf32>
    %cst_19 = arith.constant dense<0.000000e+00> : vector<8xf32>
    %60 = vector.multi_reduction <add>, %57, %cst_19 [1] : vector<8x256xf32> to vector<8xf32>
    %61 = vector.shape_cast %60 : vector<8xf32> to vector<8x1xf32>
    %cst_20 = arith.constant 2.560000e+02 : f32
    %62 = vector.broadcast %cst_20 : f32 to vector<8x1xf32>
    %63 = arith.divf %61, %62 : vector<8x1xf32>
    %64 = vector.broadcast %63 : vector<8x1xf32> to vector<8x256xf32>
    %65 = arith.subf %57, %64 : vector<8x256xf32>
    %66 = arith.mulf %65, %65 : vector<8x256xf32>
    %cst_21 = arith.constant dense<0.000000e+00> : vector<8xf32>
    %67 = vector.multi_reduction <add>, %66, %cst_21 [1] : vector<8x256xf32> to vector<8xf32>
    %68 = vector.shape_cast %67 : vector<8xf32> to vector<8x1xf32>
    %cst_22 = arith.constant 2.560000e+02 : f32
    %69 = vector.broadcast %cst_22 : f32 to vector<8x1xf32>
    %70 = arith.divf %68, %69 : vector<8x1xf32>
    %cst_23 = arith.constant 9.99999974E-6 : f32
    %71 = vector.broadcast %cst_23 : f32 to vector<8x1xf32>
    %72 = arith.addf %70, %71 : vector<8x1xf32>
    %73 = math.rsqrt %72 : vector<8x1xf32>
    %74 = vector.broadcast %73 : vector<8x1xf32> to vector<8x256xf32>
    %75 = arith.mulf %65, %74 : vector<8x256xf32>
    %76 = vector.broadcast %58 : vector<1x256xf32> to vector<8x256xf32>
    %77 = arith.mulf %75, %76 : vector<8x256xf32>
    %78 = vector.broadcast %59 : vector<1x256xf32> to vector<8x256xf32>
    %79 = arith.addf %77, %78 : vector<8x256xf32>
    %80 = arith.truncf %79 : vector<8x256xf32> to vector<8x256xbf16>
    %c0_24 = arith.constant 0 : index
    %c0_25 = arith.constant 0 : index
    %81 = vector.load %arg8[%c0_24, %c0_25] : memref<256x1024xbf16, #tpu.memory_space<vmem>>, vector<256x1024xbf16>
    %cst_26 = arith.constant dense<0.000000e+00> : vector<8x1024xf32>
    %82 = tpu.matmul %80, %81, %cst_26 {dimension_numbers = #tpu.dot_dimension_numbers<[1], [0], [0], [1], [0, 0, 1, 1], [], []>} : vector<8x256xbf16>, vector<256x1024xbf16>, vector<8x1024xf32> -> vector<8x1024xf32>
    %c0_27 = arith.constant 0 : index
    %c0_28 = arith.constant 0 : index
    %83 = vector.load %arg9[%c0_27, %c0_28] : memref<1x1024xf32, #tpu.memory_space<vmem>>, vector<1x1024xf32>
    %84 = vector.broadcast %83 : vector<1x1024xf32> to vector<8x1024xf32>
    %85 = arith.addf %82, %84 : vector<8x1024xf32>
    %86 = arith.truncf %85 : vector<8x1024xf32> to vector<8x1024xbf16>
    %cst_29 = arith.constant 5.000000e-01 : bf16
    %87 = vector.broadcast %cst_29 : bf16 to vector<8x1024xbf16>
    %88 = arith.mulf %87, %86 : vector<8x1024xbf16>
    %89 = arith.mulf %86, %86 : vector<8x1024xbf16>
    %90 = arith.mulf %89, %86 : vector<8x1024xbf16>
    %cst_30 = arith.constant 4.467770e-02 : bf16
    %91 = vector.broadcast %cst_30 : bf16 to vector<8x1024xbf16>
    %92 = arith.mulf %91, %90 : vector<8x1024xbf16>
    %93 = arith.addf %86, %92 : vector<8x1024xbf16>
    %cst_31 = arith.constant 7.968750e-01 : bf16
    %94 = vector.broadcast %cst_31 : bf16 to vector<8x1024xbf16>
    %95 = arith.mulf %94, %93 : vector<8x1024xbf16>
    %96 = math.tanh %95 : vector<8x1024xbf16>
    %cst_32 = arith.constant 1.000000e+00 : bf16
    %97 = vector.broadcast %cst_32 : bf16 to vector<8x1024xbf16>
    %98 = arith.addf %97, %96 : vector<8x1024xbf16>
    %99 = arith.mulf %88, %98 : vector<8x1024xbf16>
    %c0_33 = arith.constant 0 : index
    %c0_34 = arith.constant 0 : index
    %100 = vector.load %arg10[%c0_33, %c0_34] : memref<1024x256xbf16, #tpu.memory_space<vmem>>, vector<1024x256xbf16>
    %cst_35 = arith.constant dense<0.000000e+00> : vector<8x256xf32>
    %101 = tpu.matmul %99, %100, %cst_35 {dimension_numbers = #tpu.dot_dimension_numbers<[1], [0], [0], [1], [0, 0, 1, 1], [], []>} : vector<8x1024xbf16>, vector<1024x256xbf16>, vector<8x256xf32> -> vector<8x256xf32>
    %c0_36 = arith.constant 0 : index
    %c0_37 = arith.constant 0 : index
    %102 = vector.load %arg11[%c0_36, %c0_37] : memref<1x256xf32, #tpu.memory_space<vmem>>, vector<1x256xf32>
    %103 = vector.broadcast %102 : vector<1x256xf32> to vector<8x256xf32>
    %104 = arith.addf %101, %103 : vector<8x256xf32>
    %105 = arith.addf %79, %104 : vector<8x256xf32>
    %c0_38 = arith.constant 0 : index
    %c0_39 = arith.constant 0 : index
    %106 = vector.load %arg12[%c0_38, %c0_39] : memref<1x256xf32, #tpu.memory_space<vmem>>, vector<1x256xf32>
    %c0_40 = arith.constant 0 : index
    %c0_41 = arith.constant 0 : index
    %107 = vector.load %arg13[%c0_40, %c0_41] : memref<1x256xf32, #tpu.memory_space<vmem>>, vector<1x256xf32>
    %cst_42 = arith.constant dense<0.000000e+00> : vector<8xf32>
    %108 = vector.multi_reduction <add>, %105, %cst_42 [1] : vector<8x256xf32> to vector<8xf32>
    %109 = vector.shape_cast %108 : vector<8xf32> to vector<8x1xf32>
    %cst_43 = arith.constant 2.560000e+02 : f32
    %110 = vector.broadcast %cst_43 : f32 to vector<8x1xf32>
    %111 = arith.divf %109, %110 : vector<8x1xf32>
    %112 = vector.broadcast %111 : vector<8x1xf32> to vector<8x256xf32>
    %113 = arith.subf %105, %112 : vector<8x256xf32>
    %114 = arith.mulf %113, %113 : vector<8x256xf32>
    %cst_44 = arith.constant dense<0.000000e+00> : vector<8xf32>
    %115 = vector.multi_reduction <add>, %114, %cst_44 [1] : vector<8x256xf32> to vector<8xf32>
    %116 = vector.shape_cast %115 : vector<8xf32> to vector<8x1xf32>
    %cst_45 = arith.constant 2.560000e+02 : f32
    %117 = vector.broadcast %cst_45 : f32 to vector<8x1xf32>
    %118 = arith.divf %116, %117 : vector<8x1xf32>
    %cst_46 = arith.constant 9.99999974E-6 : f32
    %119 = vector.broadcast %cst_46 : f32 to vector<8x1xf32>
    %120 = arith.addf %118, %119 : vector<8x1xf32>
    %121 = math.rsqrt %120 : vector<8x1xf32>
    %122 = vector.broadcast %121 : vector<8x1xf32> to vector<8x256xf32>
    %123 = arith.mulf %113, %122 : vector<8x256xf32>
    %124 = vector.broadcast %106 : vector<1x256xf32> to vector<8x256xf32>
    %125 = arith.mulf %123, %124 : vector<8x256xf32>
    %126 = vector.broadcast %107 : vector<1x256xf32> to vector<8x256xf32>
    %127 = arith.addf %125, %126 : vector<8x256xf32>
    %128 = vector.shape_cast %127 : vector<8x256xf32> to vector<1x8x256xf32>
    %c0_47 = arith.constant 0 : index
    %c0_48 = arith.constant 0 : index
    %c0_49 = arith.constant 0 : index
    %129 = vector.load %arg14[%c0_47, %c0_48, %c0_49] : memref<1x8x256xf32, #tpu.memory_space<vmem>>, vector<1x8x256xf32>
    tpu.vector_store %arg14[%c0_47, %c0_48, %c0_49], %128 {strides = array<i32>} : memref<1x8x256xf32, #tpu.memory_space<vmem>>, vector<1x8x256xf32>,
    return
  }
  func.func @transform_0(%arg0: i32) -> (i32, i32, i32) {
    %c0_i32 = arith.constant 0 : i32
    %c0_i32_0 = arith.constant 0 : i32
    %c0_i32_1 = arith.constant 0 : i32
    return %arg0, %c0_i32, %c0_i32_0 : i32, i32, i32
  }
  func.func @transform_1(%arg0: i32) -> (i32, i32) {
    %c0_i32 = arith.constant 0 : i32
    %c0_i32_0 = arith.constant 0 : i32
    %c0_i32_1 = arith.constant 0 : i32
    return %c0_i32, %c0_i32_0 : i32, i32
  }
  func.func @transform_2(%arg0: i32) -> (i32, i32) {
    %c0_i32 = arith.constant 0 : i32
    %c0_i32_0 = arith.constant 0 : i32
    %c0_i32_1 = arith.constant 0 : i32
    return %c0_i32, %c0_i32_0 : i32, i32
  }
  func.func @transform_3(%arg0: i32) -> (i32, i32) {
    %c0_i32 = arith.constant 0 : i32
    %c0_i32_0 = arith.constant 0 : i32
    %c0_i32_1 = arith.constant 0 : i32
    return %c0_i32, %c0_i32_0 : i32, i32
  }
  func.func @transform_4(%arg0: i32) -> (i32, i32) {
    %c0_i32 = arith.constant 0 : i32
    %c0_i32_0 = arith.constant 0 : i32
    %c0_i32_1 = arith.constant 0 : i32
    return %c0_i32, %c0_i32_0 : i32, i32
  }
  func.func @transform_5(%arg0: i32) -> (i32, i32) {
    %c0_i32 = arith.constant 0 : i32
    %c0_i32_0 = arith.constant 0 : i32
    %c0_i32_1 = arith.constant 0 : i32
    return %c0_i32, %c0_i32_0 : i32, i32
  }
  func.func @transform_6(%arg0: i32) -> (i32, i32) {
    %c0_i32 = arith.constant 0 : i32
    %c0_i32_0 = arith.constant 0 : i32
    %c0_i32_1 = arith.constant 0 : i32
    return %c0_i32, %c0_i32_0 : i32, i32
  }
  func.func @transform_7(%arg0: i32) -> (i32, i32) {
    %c0_i32 = arith.constant 0 : i32
    %c0_i32_0 = arith.constant 0 : i32
    %c0_i32_1 = arith.constant 0 : i32
    return %c0_i32, %c0_i32_0 : i32, i32
  }
  func.func @transform_8(%arg0: i32) -> (i32, i32) {
    %c0_i32 = arith.constant 0 : i32
    %c0_i32_0 = arith.constant 0 : i32
    %c0_i32_1 = arith.constant 0 : i32
    return %c0_i32, %c0_i32_0 : i32, i32
  }
  func.func @transform_9(%arg0: i32) -> (i32, i32) {
    %c0_i32 = arith.constant 0 : i32
    %c0_i32_0 = arith.constant 0 : i32
    %c0_i32_1 = arith.constant 0 : i32
    return %c0_i32, %c0_i32_0 : i32, i32
  }
  func.func @transform_10(%arg0: i32) -> (i32, i32) {
    %c0_i32 = arith.constant 0 : i32
    %c0_i32_0 = arith.constant 0 : i32
    %c0_i32_1 = arith.constant 0 : i32
    return %c0_i32, %c0_i32_0 : i32, i32
  }
  func.func @transform_11(%arg0: i32) -> (i32, i32) {
    %c0_i32 = arith.constant 0 : i32
    %c0_i32_0 = arith.constant 0 : i32
    %c0_i32_1 = arith.constant 0 : i32
    return %c0_i32, %c0_i32_0 : i32, i32
  }
  func.func @transform_12(%arg0: i32) -> (i32, i32) {
    %c0_i32 = arith.constant 0 : i32
    %c0_i32_0 = arith.constant 0 : i32
    %c0_i32_1 = arith.constant 0 : i32
    return %c0_i32, %c0_i32_0 : i32, i32
  }
  func.func @transform_13(%arg0: i32) -> (i32, i32, i32) {
    %c0_i32 = arith.constant 0 : i32
    %c0_i32_0 = arith.constant 0 : i32
    %c0_i32_1 = arith.constant 0 : i32
    return %arg0, %c0_i32, %c0_i32_0 : i32, i32, i32
  }
}

</mosaic_0001>

<llo_original>
// kernel: transformer_block.1
$region0: #{transformer_block.1}
  #allocation0 [shape = 'u32[]', space=smem, size = 0x4, offset = 0x4, fixed_abs, tag = 'smem constant byte address 0x4 - core index']
  #allocation1 [shape = 'u32[72,128]{1,0:T(1,128)}', space=vmem, size = 0x9000, scoped, tag = 'internal scratch']
  %s0 = inlined_call_operand.hbm [shape: f32[2,8,256], index: 0, kind: input, shape index: {}]
  %s1 = inlined_call_operand.hbm [shape: bf16[256,768], index: 1, kind: input, shape index: {}]
  %s2 = inlined_call_operand.hbm [shape: f32[1,768], index: 2, kind: input, shape index: {}]
  %s3 = inlined_call_operand.hbm [shape: bf16[256,256], index: 3, kind: input, shape index: {}]
  %s4 = inlined_call_operand.vmem [shape: f32[1,256], index: 4, kind: input, shape index: {}]
  %s5 = inlined_call_operand.vmem [shape: f32[1,256], index: 5, kind: input, shape index: {}]
  %s6 = inlined_call_operand.hbm [shape: f32[1,256], index: 6, kind: input, shape index: {}]
  %s7 = inlined_call_operand.hbm [shape: bf16[256,1024], index: 7, kind: input, shape index: {}]
  %s8 = inlined_call_operand.hbm [shape: f32[1,1024], index: 8, kind: input, shape index: {}]
  %s9 = inlined_call_operand.hbm [shape: bf16[1024,256], index: 9, kind: input, shape index: {}]
  %s10 = inlined_call_operand.vmem [shape: f32[1,256], index: 10, kind: input, shape index: {}]
  %s11 = inlined_call_operand.vmem [shape: f32[1,256], index: 11, kind: input, shape index: {}]
  %s12 = inlined_call_operand.vmem [shape: f32[1,256], index: 12, kind: input, shape index: {}]
  %s13 = inlined_call_operand.hbm [shape: f32[2,8,256], index: 13, kind: output, shape index: {}]
  %s14 = sld [smem:[#allocation0]]
  $region117: #{transformer_block.1} parent=0
    _
  %s16 = ssub.s32 1, %s14
  %s17 = scalar_select 0, %s16, %s14
  $region1: #{transformer_block.1} parent=0
    #allocation2 [shape = 'u8[16384]{0}', space=vmem, size = 0x4000, scoped, tag = 'input window, operand 0']
    #allocation3 [shape = 's32[2]{0}', space=sflag, size = 0x8, scoped, tag = 'scoped memory for transformer_block.1']
    #allocation4 [shape = 's32[2]{0}', space=sflag, size = 0x8, scoped, tag = 'scoped memory for transformer_block.1']
    #allocation5 [shape = 'u8[393216]{0}', space=vmem, size = 0x60000, scoped, tag = 'input window, operand 1, single buffered']
    #allocation6 [shape = 's32[1]{0}', space=sflag, size = 0x4, scoped, tag = 'scoped memory for transformer_block.1']
    #allocation7 [shape = 'u8[3072]{0}', space=vmem, size = 0xc00, scoped, tag = 'input window, operand 2, single buffered']
    #allocation8 [shape = 'u8[131072]{0}', space=vmem, size = 0x20000, scoped, tag = 'input window, operand 3, single buffered']
    #allocation9 [shape = 's32[1]{0}', space=sflag, size = 0x4, scoped, tag = 'scoped memory for transformer_block.1']
    #allocation10 [shape = 'u8[1024]{0}', space=vmem, size = 0x400, scoped, tag = 'input window, operand 6, single buffered']
    #allocation11 [shape = 'u8[524288]{0}', space=vmem, size = 0x80000, scoped, tag = 'input window, operand 7, single buffered']
    #allocation12 [shape = 's32[1]{0}', space=sflag, size = 0x4, scoped, tag = 'scoped memory for transformer_block.1']
    #allocation13 [shape = 'u8[4096]{0}', space=vmem, size = 0x1000, scoped, tag = 'input window, operand 8, single buffered']
    #allocation14 [shape = 'u8[524288]{0}', space=vmem, size = 0x80000, scoped, tag = 'input window, operand 9, single buffered']
    #allocation15 [shape = 's32[1]{0}', space=sflag, size = 0x4, scoped, tag = 'scoped memory for transformer_block.1']
    #allocation16 [shape = 'u8[16384]{0}', space=vmem, size = 0x4000, scoped, tag = 'output window, operand 0']
    %18 = vsyncpa [#allocation3], 0
    %s19 = scalar_lea.sflag [#allocation3], 1
    %20 = vsyncpa %s19, 0
    %21 = vsyncpa [#allocation6], 0
    %22 = vsyncpa [#allocation9], 0
    %23 = vsyncpa [#allocation12], 0
    %24 = vsyncpa [#allocation15], 0
    %25 = vsyncpa [#allocation4], 0
    %s26 = scalar_lea.sflag [#allocation4], 1
    %27 = vsyncpa %s26, 0
    loop: start=0, step=1, limit=4
    $region2: #{transformer_block.1} parent=1 // loop_pre_header
      _
    $region3: #{transformer_block.1} parent=1 // loop_header
      %s29 = sphi 0, %s33
      %p30 = scmp.ge.s32.totalorder %s29, 4
      %s39 = sphi 0, %s41
      %s42 = sphi 0, %s39
      %s43 = sphi 0, %s42
      %s59 = sphi 0, %s43
      %s63 = sphi 0, %s63
      %s65 = sphi 0, %s63
      %s66 = sphi 0, %s65
      %s80 = sphi 0, %s66
      %s84 = sphi 0, %s84
      %s86 = sphi 0, %s84
      %s87 = sphi 0, %s86
      %s101 = sphi 0, %s87
      %s105 = sphi 0, %s105
      %s107 = sphi 0, %s105
      %s108 = sphi 0, %s107
      %s122 = sphi 0, %s108
      %s126 = sphi 0, %s126
      %s128 = sphi 0, %s126
      %s129 = sphi 0, %s128
      %s143 = sphi 0, %s129
      %s147 = sphi 0, %s147
      %s149 = sphi 0, %s147
      %s150 = sphi 0, %s149
      %s164 = sphi 0, %s150
      %s168 = sphi 0, %s168
      %s170 = sphi 0, %s168
      %s171 = sphi 0, %s170
      %s185 = sphi 0, %s171
      %s189 = sphi 0, %s189
      %s191 = sphi 0, %s189
      %s192 = sphi 0, %s191
      %s206 = sphi 0, %s192
      %s210 = sphi 0, %s210
      %s212 = sphi 0, %s210
      %s213 = sphi 0, %s212
      %s227 = sphi 0, %s213
      %s231 = sphi 0, %s231
      %s233 = sphi 0, %s231
      %s234 = sphi 0, %s233
      %s248 = sphi 0, %s234
      %s252 = sphi 0, %s252
      %s254 = sphi 0, %s252
      %s255 = sphi 0, %s254
      %s269 = sphi 0, %s255
      %s273 = sphi 0, %s273
      %s275 = sphi 0, %s273
      %s276 = sphi 0, %s275
      %s290 = sphi 0, %s276
      %s294 = sphi 0, %s294
      %s296 = sphi 0, %s294
      %s297 = sphi 0, %s296
      %s311 = sphi 0, %s297
      %s317 = sphi 0, %s319
      %s320 = sphi 0, %s317
      %s321 = sphi 0, %s320
      %s337 = sphi 0, %s321
    $region4: #{transformer_block.1} parent=1 // loop_header_branch
      %32 = sbr.rel (%p30) target = $region8
    $region5: #{transformer_block.1} parent=1 // loop_body
      %s34 = ssub.s32 %s29, 1
      %s35 = ssub.s32 %s29, 2
      %s36 = sadd.s32 %s29, 1
      %s37 = ssub.s32 %s29, %s36
      %p38 = scmp.eq.s32.totalorder %s37, 0
      %s40 = sadd.s32 %s39, 1
      %s41 = scalar_select %p38, %s39, %s40
      %p44 = pneg %p38
      %p45 = scmp.eq.s32.totalorder %s29, 1
      %p46 = por %p44, %p45
      %p47 = scmp.ne.s32.totalorder %s39, %s42
      %p48 = scmp.eq.s32.totalorder %s29, 0
      %p49 = por %p47, %p48
      %p50 = scmp.ne.s32.totalorder %s39, %s42
      %p51 = scmp.eq.s32.totalorder %s34, 1
      %p52 = por %p50, %p51
      %p53 = scmp.ne.s32.totalorder %s42, %s43
      %p54 = scmp.eq.s32.totalorder %s34, 0
      %p55 = por %p53, %p54
      %p56 = scmp.ne.s32.totalorder %s42, %s43
      %p57 = scmp.eq.s32.totalorder %s35, 1
      %p58 = por %p56, %p57
      %p60 = scmp.ne.s32.totalorder %s43, %s59
      %p61 = scmp.eq.s32.totalorder %s35, 0
      %p62 = por %p60, %p61
      %s64 = sadd.s32 %s63, 1
      %p67 = scmp.eq.s32.totalorder %s29, 1
      %p68 = scmp.ne.s32.totalorder %s63, %s65
      %p69 = scmp.eq.s32.totalorder %s29, 0
      %p70 = por %p68, %p69
      %p71 = scmp.ne.s32.totalorder %s63, %s65
      %p72 = scmp.eq.s32.totalorder %s34, 1
      %p73 = por %p71, %p72
      %p74 = scmp.ne.s32.totalorder %s65, %s66
      %p75 = scmp.eq.s32.totalorder %s34, 0
      %p76 = por %p74, %p75
      %p77 = scmp.ne.s32.totalorder %s65, %s66
      %p78 = scmp.eq.s32.totalorder %s35, 1
      %p79 = por %p77, %p78
      %p81 = scmp.ne.s32.totalorder %s66, %s80
      %p82 = scmp.eq.s32.totalorder %s35, 0
      %p83 = por %p81, %p82
      %s85 = sadd.s32 %s84, 1
      %p88 = scmp.eq.s32.totalorder %s29, 1
      %p89 = scmp.ne.s32.totalorder %s84, %s86
      %p90 = scmp.eq.s32.totalorder %s29, 0
      %p91 = por %p89, %p90
      %p92 = scmp.ne.s32.totalorder %s84, %s86
      %p93 = scmp.eq.s32.totalorder %s34, 1
      %p94 = por %p92, %p93
      %p95 = scmp.ne.s32.totalorder %s86, %s87
      %p96 = scmp.eq.s32.totalorder %s34, 0
      %p97 = por %p95, %p96
      %p98 = scmp.ne.s32.totalorder %s86, %s87
      %p99 = scmp.eq.s32.totalorder %s35, 1
      %p100 = por %p98, %p99
      %p102 = scmp.ne.s32.totalorder %s87, %s101
      %p103 = scmp.eq.s32.totalorder %s35, 0
      %p104 = por %p102, %p103
      %s106 = sadd.s32 %s105, 1
      %p109 = scmp.eq.s32.totalorder %s29, 1
      %p110 = scmp.ne.s32.totalorder %s105, %s107
      %p111 = scmp.eq.s32.totalorder %s29, 0
      %p112 = por %p110, %p111
      %p113 = scmp.ne.s32.totalorder %s105, %s107
      %p114 = scmp.eq.s32.totalorder %s34, 1
      %p115 = por %p113, %p114
      %p116 = scmp.ne.s32.totalorder %s107, %s108
      %p117 = scmp.eq.s32.totalorder %s34, 0
      %p118 = por %p116, %p117
      %p119 = scmp.ne.s32.totalorder %s107, %s108
      %p120 = scmp.eq.s32.totalorder %s35, 1
      %p121 = por %p119, %p120
      %p123 = scmp.ne.s32.totalorder %s108, %s122
      %p124 = scmp.eq.s32.totalorder %s35, 0
      %p125 = por %p123, %p124
      %s127 = sadd.s32 %s126, 1
      %p130 = scmp.eq.s32.totalorder %s29, 1
      %p131 = scmp.ne.s32.totalorder %s126, %s128
      %p132 = scmp.eq.s32.totalorder %s29, 0
      %p133 = por %p131, %p132
      %p134 = scmp.ne.s32.totalorder %s126, %s128
      %p135 = scmp.eq.s32.totalorder %s34, 1
      %p136 = por %p134, %p135
      %p137 = scmp.ne.s32.totalorder %s128, %s129
      %p138 = scmp.eq.s32.totalorder %s34, 0
      %p139 = por %p137, %p138
      %p140 = scmp.ne.s32.totalorder %s128, %s129
      %p141 = scmp.eq.s32.totalorder %s35, 1
      %p142 = por %p140, %p141
      %p144 = scmp.ne.s32.totalorder %s129, %s143
      %p145 = scmp.eq.s32.totalorder %s35, 0
      %p146 = por %p144, %p145
      %s148 = sadd.s32 %s147, 1
      %p151 = scmp.eq.s32.totalorder %s29, 1
      %p152 = scmp.ne.s32.totalorder %s147, %s149
      %p153 = scmp.eq.s32.totalorder %s29, 0
      %p154 = por %p152, %p153
      %p155 = scmp.ne.s32.totalorder %s147, %s149
      %p156 = scmp.eq.s32.totalorder %s34, 1
      %p157 = por %p155, %p156
      %p158 = scmp.ne.s32.totalorder %s149, %s150
      %p159 = scmp.eq.s32.totalorder %s34, 0
      %p160 = por %p158, %p159
      %p161 = scmp.ne.s32.totalorder %s149, %s150
      %p162 = scmp.eq.s32.totalorder %s35, 1
      %p163 = por %p161, %p162
      %p165 = scmp.ne.s32.totalorder %s150, %s164
      %p166 = scmp.eq.s32.totalorder %s35, 0
      %p167 = por %p165, %p166
      %s169 = sadd.s32 %s168, 1
      %p172 = scmp.eq.s32.totalorder %s29, 1
      %p173 = scmp.ne.s32.totalorder %s168, %s170
      %p174 = scmp.eq.s32.totalorder %s29, 0
      %p175 = por %p173, %p174
      %p176 = scmp.ne.s32.totalorder %s168, %s170
      %p177 = scmp.eq.s32.totalorder %s34, 1
      %p178 = por %p176, %p177
      %p179 = scmp.ne.s32.totalorder %s170, %s171
      %p180 = scmp.eq.s32.totalorder %s34, 0
      %p181 = por %p179, %p180
      %p182 = scmp.ne.s32.totalorder %s170, %s171
      %p183 = scmp.eq.s32.totalorder %s35, 1
      %p184 = por %p182, %p183
      %p186 = scmp.ne.s32.totalorder %s171, %s185
      %p187 = scmp.eq.s32.totalorder %s35, 0
      %p188 = por %p186, %p187
      %s190 = sadd.s32 %s189, 1
      %p193 = scmp.eq.s32.totalorder %s29, 1
      %p194 = scmp.ne.s32.totalorder %s189, %s191
      %p195 = scmp.eq.s32.totalorder %s29, 0
      %p196 = por %p194, %p195
      %p197 = scmp.ne.s32.totalorder %s189, %s191
      %p198 = scmp.eq.s32.totalorder %s34, 1
      %p199 = por %p197, %p198
      %p200 = scmp.ne.s32.totalorder %s191, %s192
      %p201 = scmp.eq.s32.totalorder %s34, 0
      %p202 = por %p200, %p201
      %p203 = scmp.ne.s32.totalorder %s191, %s192
      %p204 = scmp.eq.s32.totalorder %s35, 1
      %p205 = por %p203, %p204
      %p207 = scmp.ne.s32.totalorder %s192, %s206
      %p208 = scmp.eq.s32.totalorder %s35, 0
      %p209 = por %p207, %p208
      %s211 = sadd.s32 %s210, 1
      %p214 = scmp.eq.s32.totalorder %s29, 1
      %p215 = scmp.ne.s32.totalorder %s210, %s212
      %p216 = scmp.eq.s32.totalorder %s29, 0
      %p217 = por %p215, %p216
      %p218 = scmp.ne.s32.totalorder %s210, %s212
      %p219 = scmp.eq.s32.totalorder %s34, 1
      %p220 = por %p218, %p219
      %p221 = scmp.ne.s32.totalorder %s212, %s213
      %p222 = scmp.eq.s32.totalorder %s34, 0
      %p223 = por %p221, %p222
      %p224 = scmp.ne.s32.totalorder %s212, %s213
      %p225 = scmp.eq.s32.totalorder %s35, 1
      %p226 = por %p224, %p225
      %p228 = scmp.ne.s32.totalorder %s213, %s227
      %p229 = scmp.eq.s32.totalorder %s35, 0
      %p230 = por %p228, %p229
      %s232 = sadd.s32 %s231, 1
      %p235 = scmp.eq.s32.totalorder %s29, 1
      %p236 = scmp.ne.s32.totalorder %s231, %s233
      %p237 = scmp.eq.s32.totalorder %s29, 0
      %p238 = por %p236, %p237
      %p239 = scmp.ne.s32.totalorder %s231, %s233
      %p240 = scmp.eq.s32.totalorder %s34, 1
      %p241 = por %p239, %p240
      %p242 = scmp.ne.s32.totalorder %s233, %s234
      %p243 = scmp.eq.s32.totalorder %s34, 0
      %p244 = por %p242, %p243
      %p245 = scmp.ne.s32.totalorder %s233, %s234
      %p246 = scmp.eq.s32.totalorder %s35, 1
      %p247 = por %p245, %p246
      %p249 = scmp.ne.s32.totalorder %s234, %s248
      %p250 = scmp.eq.s32.totalorder %s35, 0
      %p251 = por %p249, %p250
      %s253 = sadd.s32 %s252, 1
      %p256 = scmp.eq.s32.totalorder %s29, 1
      %p257 = scmp.ne.s32.totalorder %s252, %s254
      %p258 = scmp.eq.s32.totalorder %s29, 0
      %p259 = por %p257, %p258
      %p260 = scmp.ne.s32.totalorder %s252, %s254
      %p261 = scmp.eq.s32.totalorder %s34, 1
      %p262 = por %p260, %p261
      %p263 = scmp.ne.s32.totalorder %s254, %s255
      %p264 = scmp.eq.s32.totalorder %s34, 0
      %p265 = por %p263, %p264
      %p266 = scmp.ne.s32.totalorder %s254, %s255
      %p267 = scmp.eq.s32.totalorder %s35, 1
      %p268 = por %p266, %p267
      %p270 = scmp.ne.s32.totalorder %s255, %s269
      %p271 = scmp.eq.s32.totalorder %s35, 0
      %p272 = por %p270, %p271
      %s274 = sadd.s32 %s273, 1
      %p277 = scmp.eq.s32.totalorder %s29, 1
      %p278 = scmp.ne.s32.totalorder %s273, %s275
      %p279 = scmp.eq.s32.totalorder %s29, 0
      %p280 = por %p278, %p279
      %p281 = scmp.ne.s32.totalorder %s273, %s275
      %p282 = scmp.eq.s32.totalorder %s34, 1
      %p283 = por %p281, %p282
      %p284 = scmp.ne.s32.totalorder %s275, %s276
      %p285 = scmp.eq.s32.totalorder %s34, 0
      %p286 = por %p284, %p285
      %p287 = scmp.ne.s32.totalorder %s275, %s276
      %p288 = scmp.eq.s32.totalorder %s35, 1
      %p289 = por %p287, %p288
      %p291 = scmp.ne.s32.totalorder %s276, %s290
      %p292 = scmp.eq.s32.totalorder %s35, 0
      %p293 = por %p291, %p292
      %s295 = sadd.s32 %s294, 1
      %p298 = scmp.eq.s32.totalorder %s29, 1
      %p299 = scmp.ne.s32.totalorder %s294, %s296
      %p300 = scmp.eq.s32.totalorder %s29, 0
      %p301 = por %p299, %p300
      %p302 = scmp.ne.s32.totalorder %s294, %s296
      %p303 = scmp.eq.s32.totalorder %s34, 1
      %p304 = por %p302, %p303
      %p305 = scmp.ne.s32.totalorder %s296, %s297
      %p306 = scmp.eq.s32.totalorder %s34, 0
      %p307 = por %p305, %p306
      %p308 = scmp.ne.s32.totalorder %s296, %s297
      %p309 = scmp.eq.s32.totalorder %s35, 1
      %p310 = por %p308, %p309
      %p312 = scmp.ne.s32.totalorder %s297, %s311
      %p313 = scmp.eq.s32.totalorder %s35, 0
      %p314 = por %p312, %p313
      %s315 = ssub.s32 %s29, %s36
      %p316 = scmp.eq.s32.totalorder %s315, 0
      %s318 = sadd.s32 %s317, 1
      %s319 = scalar_select %p316, %s317, %s318
      %p322 = pneg %p316
      %p323 = scmp.eq.s32.totalorder %s29, 1
      %p324 = por %p322, %p323
      %p325 = scmp.ne.s32.totalorder %s317, %s320
      %p326 = scmp.eq.s32.totalorder %s29, 0
      %p327 = por %p325, %p326
      %p328 = scmp.ne.s32.totalorder %s317, %s320
      %p329 = scmp.eq.s32.totalorder %s34, 1
      %p330 = por %p328, %p329
      %p331 = scmp.ne.s32.totalorder %s320, %s321
      %p332 = scmp.eq.s32.totalorder %s34, 0
      %p333 = por %p331, %p332
      %p334 = scmp.ne.s32.totalorder %s320, %s321
      %p335 = scmp.eq.s32.totalorder %s35, 1
      %p336 = por %p334, %p335
      %p338 = scmp.ne.s32.totalorder %s321, %s337
      %p339 = scmp.eq.s32.totalorder %s35, 0
      %p340 = por %p338, %p339
      %p341 = scmp.le.s32.totalorder 1, %s29
      %p342 = scmp.lt.s32.totalorder %s29, 3
      %p343 = pnand %p341, %p342
      %p344 = pneg %p343
      // Predicated region
      $region9: #{transformer_block.1} parent=5 // pred_check
        _
      $region10: #{transformer_block.1} parent=5 // pred_check_branch
        %346 = sbr.rel (%p343) target = $region12
      $region11: #{transformer_block.1} parent=5 // pred_region
        %s347 = ssub.s32 %s29, 1
        // Predicated region
        $region13: #{transformer_block.1} parent=11 // pred_check
          %p348 = pneg %p76
        $region14: #{transformer_block.1} parent=11 // pred_check_branch
          %350 = sbr.rel (%p348) target = $region16
        $region15: #{transformer_block.1} parent=11 // pred_region
          %352 = vsyncadd [#allocation6], 0
          %s353 = sshll.u32 %s1, 4
          %s354 = int_to_ptr.hbm [resolvable:$true] %s353
          %s355 = sshll.u32 [#allocation5], 4
          %s356 = int_to_ptr.vmem [resolvable:$true] %s355
          %361 = dma.hbm_to_vmem [thread:$0]  %s354, 12288, %s356, [#allocation6], 384, 384, 24
        $region16: #{transformer_block.1} parent=11 // pred_fallthru
          _
        // Predicated region
        $region17: #{transformer_block.1} parent=11 // pred_check
          %p362 = pneg %p97
        $region18: #{transformer_block.1} parent=11 // pred_check_branch
          %364 = sbr.rel (%p362) target = $region20
        $region19: #{transformer_block.1} parent=11 // pred_region
          %366 = vsyncadd [#allocation6], 0
          %s368 = sshll.u32 %s2, 4
          %s369 = int_to_ptr.hbm [resolvable:$true] %s368
          %s370 = sshll.u32 [#allocation7], 4
          %s371 = int_to_ptr.vmem [resolvable:$true] %s370
          %373 = dma.hbm_to_vmem [thread:$0]  %s369, 96, %s371, [#allocation6]
        $region20: #{transformer_block.1} parent=11 // pred_fallthru
          _
        // Predicated region
        $region21: #{transformer_block.1} parent=11 // pred_check
          %p374 = pneg %p118
        $region22: #{transformer_block.1} parent=11 // pred_check_branch
          %376 = sbr.rel (%p374) target = $region24
        $region23: #{transformer_block.1} parent=11 // pred_region
          %378 = vsyncadd [#allocation9], 0
          %s379 = sshll.u32 %s3, 4
          %s380 = int_to_ptr.hbm [resolvable:$true] %s379
          %s381 = sshll.u32 [#allocation8], 4
          %s382 = int_to_ptr.vmem [resolvable:$true] %s381
          %387 = dma.hbm_to_vmem [thread:$0]  %s380, 4096, %s382, [#allocation9], 128, 128, 8
        $region24: #{transformer_block.1} parent=11 // pred_fallthru
          _
        // Predicated region
        $region25: #{transformer_block.1} parent=11 // pred_check
          %p388 = pneg %p139
        $region26: #{transformer_block.1} parent=11 // pred_check_branch
          %390 = sbr.rel (%p388) target = $region28
        $region27: #{transformer_block.1} parent=11 // pred_region
          _
        $region28: #{transformer_block.1} parent=11 // pred_fallthru
          _
        // Predicated region
        $region29: #{transformer_block.1} parent=11 // pred_check
          %p391 = pneg %p160
        $region30: #{transformer_block.1} parent=11 // pred_check_branch
          %393 = sbr.rel (%p391) target = $region32
        $region31: #{transformer_block.1} parent=11 // pred_region
          _
        $region32: #{transformer_block.1} parent=11 // pred_fallthru
          _
        // Predicated region
        $region33: #{transformer_block.1} parent=11 // pred_check
          %p394 = pneg %p181
        $region34: #{transformer_block.1} parent=11 // pred_check_branch
          %396 = sbr.rel (%p394) target = $region36
        $region35: #{transformer_block.1} parent=11 // pred_region
          %398 = vsyncadd [#allocation9], 0
          %s400 = sshll.u32 %s6, 4
          %s401 = int_to_ptr.hbm [resolvable:$true] %s400
          %s402 = sshll.u32 [#allocation10], 4
          %s403 = int_to_ptr.vmem [resolvable:$true] %s402
          %405 = dma.hbm_to_vmem [thread:$0]  %s401, 32, %s403, [#allocation9]
        $region36: #{transformer_block.1} parent=11 // pred_fallthru
          _
        // Predicated region
        $region37: #{transformer_block.1} parent=11 // pred_check
          %p406 = pneg %p202
        $region38: #{transformer_block.1} parent=11 // pred_check_branch
          %408 = sbr.rel (%p406) target = $region40
        $region39: #{transformer_block.1} parent=11 // pred_region
          %410 = vsyncadd [#allocation12], 0
          %s411 = sshll.u32 %s7, 4
          %s412 = int_to_ptr.hbm [resolvable:$true] %s411
          %s413 = sshll.u32 [#allocation11], 4
          %s414 = int_to_ptr.vmem [resolvable:$true] %s413
          %419 = dma.hbm_to_vmem [thread:$0]  %s412, 16384, %s414, [#allocation12], 512, 512, 32
        $region40: #{transformer_block.1} parent=11 // pred_fallthru
          _
        // Predicated region
        $region41: #{transformer_block.1} parent=11 // pred_check
          %p420 = pneg %p223
        $region42: #{transformer_block.1} parent=11 // pred_check_branch
          %422 = sbr.rel (%p420) target = $region44
        $region43: #{transformer_block.1} parent=11 // pred_region
          %424 = vsyncadd [#allocation12], 0
          %s426 = sshll.u32 %s8, 4
          %s427 = int_to_ptr.hbm [resolvable:$true] %s426
          %s428 = sshll.u32 [#allocation13], 4
          %s429 = int_to_ptr.vmem [resolvable:$true] %s428
          %431 = dma.hbm_to_vmem [thread:$0]  %s427, 128, %s429, [#allocation12]
        $region44: #{transformer_block.1} parent=11 // pred_fallthru
          _
        // Predicated region
        $region45: #{transformer_block.1} parent=11 // pred_check
          %p432 = pneg %p244
        $region46: #{transformer_block.1} parent=11 // pred_check_branch
          %434 = sbr.rel (%p432) target = $region48
        $region47: #{transformer_block.1} parent=11 // pred_region
          %436 = vsyncadd [#allocation15], 0
          %s437 = sshll.u32 %s9, 4
          %s438 = int_to_ptr.hbm [resolvable:$true] %s437
          %s439 = sshll.u32 [#allocation14], 4
          %s440 = int_to_ptr.vmem [resolvable:$true] %s439
          %445 = dma.hbm_to_vmem [thread:$0]  %s438, 16384, %s440, [#allocation15], 128, 128, 8
        $region48: #{transformer_block.1} parent=11 // pred_fallthru
          _
        // Predicated region
        $region49: #{transformer_block.1} parent=11 // pred_check
          %p446 = pneg %p265
        $region50: #{transformer_block.1} parent=11 // pred_check_branch
          %448 = sbr.rel (%p446) target = $region52
        $region51: #{transformer_block.1} parent=11 // pred_region
          _
        $region52: #{transformer_block.1} parent=11 // pred_fallthru
          _
        // Predicated region
        $region53: #{transformer_block.1} parent=11 // pred_check
          %p449 = pneg %p286
        $region54: #{transformer_block.1} parent=11 // pred_check_branch
          %451 = sbr.rel (%p449) target = $region56
        $region55: #{transformer_block.1} parent=11 // pred_region
          _
        $region56: #{transformer_block.1} parent=11 // pred_fallthru
          _
        // Predicated region
        $region57: #{transformer_block.1} parent=11 // pred_check
          %p452 = pneg %p307
        $region58: #{transformer_block.1} parent=11 // pred_check_branch
          %454 = sbr.rel (%p452) target = $region60
        $region59: #{transformer_block.1} parent=11 // pred_region
          _
        $region60: #{transformer_block.1} parent=11 // pred_fallthru
          _
      $region12: #{transformer_block.1} parent=5 // pred_fallthru
        _
      %p455 = scmp.lt.s32.totalorder %s29, 2
      // Predicated region
      $region61: #{transformer_block.1} parent=5 // pred_check
        %p456 = pneg %p455
      $region62: #{transformer_block.1} parent=5 // pred_check_branch
        %458 = sbr.rel (%p456) target = $region64
      $region63: #{transformer_block.1} parent=5 // pred_region
        // Predicated region
        $region65: #{transformer_block.1} parent=63 // pred_check
          %p459 = pneg %p49
        $region66: #{transformer_block.1} parent=63 // pred_check_branch
          %461 = sbr.rel (%p459) target = $region68
        $region67: #{transformer_block.1} parent=63 // pred_region
          %s462 = sand.u32 %s39, 1
          %s463 = scalar_lea.sflag [#allocation3], %s462
          %s464 = sand.u32 %s39, 1
          %s465 = smul.addr %s464, 16
          %s466 = scalar_lea.vmem [#allocation2], %s465
          %468 = vsyncadd %s463, 0
          %s469 = smul.addr %s29, 2
          %s470 = smul.addr %s469, 8
          %s471 = scalar_lea.hbm %s0, %s470
          %s473 = sshll.u32 %s471, 4
          %s474 = int_to_ptr.hbm [resolvable:$true] %s473
          %s475 = sshll.u32 %s466, 4
          %s476 = int_to_ptr.vmem [resolvable:$true] %s475
          %478 = dma.hbm_to_vmem [thread:$0]  %s474, 256, %s476, %s463
        $region68: #{transformer_block.1} parent=63 // pred_fallthru
          _
      $region64: #{transformer_block.1} parent=5 // pred_fallthru
        _
      %p479 = scmp.le.s32.totalorder 1, %s29
      %p480 = scmp.lt.s32.totalorder %s29, 3
      %p481 = pnand %p479, %p480
      %p482 = pneg %p481
      // Predicated region
      $region69: #{transformer_block.1} parent=5 // pred_check
        _
      $region70: #{transformer_block.1} parent=5 // pred_check_branch
        %484 = sbr.rel (%p481) target = $region72
      $region71: #{transformer_block.1} parent=5 // pred_region
        %s485 = ssub.s32 %s29, 1
        %s486 = sand.u32 %s42, 1
        %s487 = scalar_lea.sflag [#allocation3], %s486
        %s488 = sand.u32 %s42, 1
        %s489 = smul.addr %s488, 16
        %s490 = scalar_lea.vmem [#allocation2], %s489
        // Predicated region
        $region73: #{transformer_block.1} parent=71 // pred_check
          %p491 = pneg %p55
        $region74: #{transformer_block.1} parent=71 // pred_check_branch
          %493 = sbr.rel (%p491) target = $region76
        $region75: #{transformer_block.1} parent=71 // pred_region
          %495 = dma.done %s487, 256
        $region76: #{transformer_block.1} parent=71 // pred_fallthru
          _
        // Predicated region
        $region77: #{transformer_block.1} parent=71 // pred_check
          %p496 = pneg %p76
        $region78: #{transformer_block.1} parent=71 // pred_check_branch
          %498 = sbr.rel (%p496) target = $region80
        $region79: #{transformer_block.1} parent=71 // pred_region
          %500 = dma.done [#allocation6], 12288
        $region80: #{transformer_block.1} parent=71 // pred_fallthru
          _
        // Predicated region
        $region81: #{transformer_block.1} parent=71 // pred_check
          %p501 = pneg %p97
        $region82: #{transformer_block.1} parent=71 // pred_check_branch
          %503 = sbr.rel (%p501) target = $region84
        $region83: #{transformer_block.1} parent=71 // pred_region
          %505 = dma.done [#allocation6], 96
        $region84: #{transformer_block.1} parent=71 // pred_fallthru
          _
        // Predicated region
        $region85: #{transformer_block.1} parent=71 // pred_check
          %p506 = pneg %p118
        $region86: #{transformer_block.1} parent=71 // pred_check_branch
          %508 = sbr.rel (%p506) target = $region88
        $region87: #{transformer_block.1} parent=71 // pred_region
          %510 = dma.done [#allocation9], 4096
        $region88: #{transformer_block.1} parent=71 // pred_fallthru
          _
        // Predicated region
        $region89: #{transformer_block.1} parent=71 // pred_check
          %p511 = pneg %p181
        $region90: #{transformer_block.1} parent=71 // pred_check_branch
          %513 = sbr.rel (%p511) target = $region92
        $region91: #{transformer_block.1} parent=71 // pred_region
          %515 = dma.done [#allocation9], 32
        $region92: #{transformer_block.1} parent=71 // pred_fallthru
          _
        // Predicated region
        $region93: #{transformer_block.1} parent=71 // pred_check
          %p516 = pneg %p202
        $region94: #{transformer_block.1} parent=71 // pred_check_branch
          %518 = sbr.rel (%p516) target = $region96
        $region95: #{transformer_block.1} parent=71 // pred_region
          %520 = dma.done [#allocation12], 16384
        $region96: #{transformer_block.1} parent=71 // pred_fallthru
          _
        // Predicated region
        $region97: #{transformer_block.1} parent=71 // pred_check
          %p521 = pneg %p223
        $region98: #{transformer_block.1} parent=71 // pred_check_branch
          %523 = sbr.rel (%p521) target = $region100
        $region99: #{transformer_block.1} parent=71 // pred_region
          %525 = dma.done [#allocation12], 128
        $region100: #{transformer_block.1} parent=71 // pred_fallthru
          _
        // Predicated region
        $region101: #{transformer_block.1} parent=71 // pred_check
          %p526 = pneg %p244
        $region102: #{transformer_block.1} parent=71 // pred_check_branch
          %528 = sbr.rel (%p526) target = $region104
        $region103: #{transformer_block.1} parent=71 // pred_region
          %530 = dma.done [#allocation15], 16384
        $region104: #{transformer_block.1} parent=71 // pred_fallthru
          _
        %s531 = sand.u32 %s42, 1
        %s532 = scalar_lea.sflag [#allocation3], %s531
        %s533 = sand.u32 %s42, 1
        %s534 = smul.addr %s533, 16
        %s535 = scalar_lea.vmem [#allocation2], %s534
        %p536 = pneg %p55
        %p537 = pneg %p52
        %p538 = pneg %p76
        %p539 = pneg %p73
        %p540 = pneg %p97
        %p541 = pneg %p94
        %p542 = pneg %p118
        %p543 = pneg %p115
        %p544 = pneg %p139
        %p545 = pneg %p136
        %p546 = pneg %p160
        %p547 = pneg %p157
        %p548 = pneg %p181
        %p549 = pneg %p178
        %p550 = pneg %p202
        %p551 = pneg %p199
        %p552 = pneg %p223
        %p553 = pneg %p220
        %p554 = pneg %p244
        %p555 = pneg %p241
        %p556 = pneg %p265
        %p557 = pneg %p262
        %p558 = pneg %p286
        %p559 = pneg %p283
        %p560 = pneg %p307
        %p561 = pneg %p304
        %p562 = pneg %p333
        %p563 = pneg %p330
        %s564 = sand.u32 %s320, 1
        %s565 = scalar_lea.sflag [#allocation4], %s564
        %s566 = sand.u32 %s320, 1
        %s567 = smul.addr %s566, 16
        %s568 = scalar_lea.vmem [#allocation16], %s567
        %v570 = vld [vmem:[%s490] sm:$0xff]
        %v571 = vld [vmem:[%s490 + $0x8] sm:$0xff]
        %v572 = vpack.c.bf16 %v570, %v570
        %v573 = vpack.c.bf16 %v571, %v571
        %v574 = vld [vmem:[#allocation5] sm:$0xff]
        %v575 = vld [vmem:[#allocation5 + $0x8] sm:$0xff]
        %v576 = vld [vmem:[#allocation5 + $0x10] sm:$0xff]
        %v577 = vld [vmem:[#allocation5 + $0x18] sm:$0xff]
        %v578 = vld [vmem:[#allocation5 + $0x20] sm:$0xff]
        %v579 = vld [vmem:[#allocation5 + $0x28] sm:$0xff]
        %v580 = vld [vmem:[#allocation5 + $0x30] sm:$0xff]
        %v581 = vld [vmem:[#allocation5 + $0x38] sm:$0xff]
        %v582 = vld [vmem:[#allocation5 + $0x40] sm:$0xff]
        %v583 = vld [vmem:[#allocation5 + $0x48] sm:$0xff]
        %v584 = vld [vmem:[#allocation5 + $0x50] sm:$0xff]
        %v585 = vld [vmem:[#allocation5 + $0x58] sm:$0xff]
        %v586 = vld [vmem:[#allocation5 + $0x60] sm:$0xff]
        %v587 = vld [vmem:[#allocation5 + $0x68] sm:$0xff]
        %v588 = vld [vmem:[#allocation5 + $0x70] sm:$0xff]
        %v589 = vld [vmem:[#allocation5 + $0x78] sm:$0xff]
        %v590 = vld [vmem:[#allocation5 + $0x80] sm:$0xff]
        %v591 = vld [vmem:[#allocation5 + $0x88] sm:$0xff]
        %v592 = vld [vmem:[#allocation5 + $0x90] sm:$0xff]
        %v593 = vld [vmem:[#allocation5 + $0x98] sm:$0xff]
        %v594 = vld [vmem:[#allocation5 + $0xa0] sm:$0xff]
        %v595 = vld [vmem:[#allocation5 + $0xa8] sm:$0xff]
        %v596 = vld [vmem:[#allocation5 + $0xb0] sm:$0xff]
        %v597 = vld [vmem:[#allocation5 + $0xb8] sm:$0xff]
        %v598 = vld [vmem:[#allocation5 + $0xc0] sm:$0xff]
        %v599 = vld [vmem:[#allocation5 + $0xc8] sm:$0xff]
        %v600 = vld [vmem:[#allocation5 + $0xd0] sm:$0xff]
        %v601 = vld [vmem:[#allocation5 + $0xd8] sm:$0xff]
        %v602 = vld [vmem:[#allocation5 + $0xe0] sm:$0xff]
        %v603 = vld [vmem:[#allocation5 + $0xe8] sm:$0xff]
        %v604 = vld [vmem:[#allocation5 + $0xf0] sm:$0xff]
        %v605 = vld [vmem:[#allocation5 + $0xf8] sm:$0xff]
        %v606 = vld [vmem:[#allocation5 + $0x100] sm:$0xff]
        %v607 = vld [vmem:[#allocation5 + $0x108] sm:$0xff]
        %v608 = vld [vmem:[#allocation5 + $0x110] sm:$0xff]
        %v609 = vld [vmem:[#allocation5 + $0x118] sm:$0xff]
        %v610 = vld [vmem:[#allocation5 + $0x120] sm:$0xff]
        %v611 = vld [vmem:[#allocation5 + $0x128] sm:$0xff]
        %v612 = vld [vmem:[#allocation5 + $0x130] sm:$0xff]
        %v613 = vld [vmem:[#allocation5 + $0x138] sm:$0xff]
        %v614 = vld [vmem:[#allocation5 + $0x140] sm:$0xff]
        %v615 = vld [vmem:[#allocation5 + $0x148] sm:$0xff]
        %v616 = vld [vmem:[#allocation5 + $0x150] sm:$0xff]
        %v617 = vld [vmem:[#allocation5 + $0x158] sm:$0xff]
        %v618 = vld [vmem:[#allocation5 + $0x160] sm:$0xff]
        %v619 = vld [vmem:[#allocation5 + $0x168] sm:$0xff]
        %v620 = vld [vmem:[#allocation5 + $0x170] sm:$0xff]
        %v621 = vld [vmem:[#allocation5 + $0x178] sm:$0xff]
        %v622 = vld [vmem:[#allocation5 + $0x180] sm:$0xff]
        %v623 = vld [vmem:[#allocation5 + $0x188] sm:$0xff]
        %v624 = vld [vmem:[#allocation5 + $0x190] sm:$0xff]
        %v625 = vld [vmem:[#allocation5 + $0x198] sm:$0xff]
        %v626 = vld [vmem:[#allocation5 + $0x1a0] sm:$0xff]
        %v627 = vld [vmem:[#allocation5 + $0x1a8] sm:$0xff]
        %v628 = vld [vmem:[#allocation5 + $0x1b0] sm:$0xff]
        %v629 = vld [vmem:[#allocation5 + $0x1b8] sm:$0xff]
        %v630 = vld [vmem:[#allocation5 + $0x1c0] sm:$0xff]
        %v631 = vld [vmem:[#allocation5 + $0x1c8] sm:$0xff]
        %v632 = vld [vmem:[#allocation5 + $0x1d0] sm:$0xff]
        %v633 = vld [vmem:[#allocation5 + $0x1d8] sm:$0xff]
        %v634 = vld [vmem:[#allocation5 + $0x1e0] sm:$0xff]
        %v635 = vld [vmem:[#allocation5 + $0x1e8] sm:$0xff]
        %v636 = vld [vmem:[#allocation5 + $0x1f0] sm:$0xff]
        %v637 = vld [vmem:[#allocation5 + $0x1f8] sm:$0xff]
        %v638 = vld [vmem:[#allocation5 + $0x200] sm:$0xff]
        %v639 = vld [vmem:[#allocation5 + $0x208] sm:$0xff]
        %v640 = vld [vmem:[#allocation5 + $0x210] sm:$0xff]
        %v641 = vld [vmem:[#allocation5 + $0x218] sm:$0xff]
        %v642 = vld [vmem:[#allocation5 + $0x220] sm:$0xff]
        %v643 = vld [vmem:[#allocation5 + $0x228] sm:$0xff]
        %v644 = vld [vmem:[#allocation5 + $0x230] sm:$0xff]
        %v645 = vld [vmem:[#allocation5 + $0x238] sm:$0xff]
        %v646 = vld [vmem:[#allocation5 + $0x240] sm:$0xff]
        %v647 = vld [vmem:[#allocation5 + $0x248] sm:$0xff]
        %v648 = vld [vmem:[#allocation5 + $0x250] sm:$0xff]
        %v649 = vld [vmem:[#allocation5 + $0x258] sm:$0xff]
        %v650 = vld [vmem:[#allocation5 + $0x260] sm:$0xff]
        %v651 = vld [vmem:[#allocation5 + $0x268] sm:$0xff]
        %v652 = vld [vmem:[#allocation5 + $0x270] sm:$0xff]
        %v653 = vld [vmem:[#allocation5 + $0x278] sm:$0xff]
        %v654 = vld [vmem:[#allocation5 + $0x280] sm:$0xff]
        %v655 = vld [vmem:[#allocation5 + $0x288] sm:$0xff]
        %v656 = vld [vmem:[#allocation5 + $0x290] sm:$0xff]
        %v657 = vld [vmem:[#allocation5 + $0x298] sm:$0xff]
        %v658 = vld [vmem:[#allocation5 + $0x2a0] sm:$0xff]
        %v659 = vld [vmem:[#allocation5 + $0x2a8] sm:$0xff]
        %v660 = vld [vmem:[#allocation5 + $0x2b0] sm:$0xff]
        %v661 = vld [vmem:[#allocation5 + $0x2b8] sm:$0xff]
        %v662 = vld [vmem:[#allocation5 + $0x2c0] sm:$0xff]
        %v663 = vld [vmem:[#allocation5 + $0x2c8] sm:$0xff]
        %v664 = vld [vmem:[#allocation5 + $0x2d0] sm:$0xff]
        %v665 = vld [vmem:[#allocation5 + $0x2d8] sm:$0xff]
        %v666 = vld [vmem:[#allocation5 + $0x2e0] sm:$0xff]
        %v667 = vld [vmem:[#allocation5 + $0x2e8] sm:$0xff]
        %v668 = vld [vmem:[#allocation5 + $0x2f0] sm:$0xff]
        %v669 = vld [vmem:[#allocation5 + $0x2f8] sm:$0xff]
        %v670 = vld [vmem:[#allocation7] sm:$0x3f]
        %v672 = vperm.slane %v670, 0
        %v673 = vperm.slane %v670, 1
        %v674 = vperm.slane %v670, 2
        %v675 = vperm.slane %v670, 3
        %v676 = vperm.slane %v670, 4
        %v677 = vperm.slane %v670, 5
        %v780 = vunpack.c.l.b16 %v574
        %v781 = vunpack.c.h.b16 %v574
        %v782 = vunpack.c.l.b16 %v575
        %v783 = vunpack.c.h.b16 %v575
        %v784 = vunpack.c.l.b16 %v576
        %v785 = vunpack.c.h.b16 %v576
        %v786 = vunpack.c.l.b16 %v577
        %v787 = vunpack.c.h.b16 %v577
        %v788 = vunpack.c.l.b16 %v578
        %v789 = vunpack.c.h.b16 %v578
        %v790 = vunpack.c.l.b16 %v579
        %v791 = vunpack.c.h.b16 %v579
        %v792 = vunpack.c.l.b16 %v580
        %v793 = vunpack.c.h.b16 %v580
        %v794 = vunpack.c.l.b16 %v581
        %v795 = vunpack.c.h.b16 %v581
        %v796 = vunpack.c.l.b16 %v582
        %v797 = vunpack.c.h.b16 %v582
        %v798 = vunpack.c.l.b16 %v583
        %v799 = vunpack.c.h.b16 %v583
        %v800 = vunpack.c.l.b16 %v584
        %v801 = vunpack.c.h.b16 %v584
        %v802 = vunpack.c.l.b16 %v585
        %v803 = vunpack.c.h.b16 %v585
        %v804 = vunpack.c.l.b16 %v586
        %v805 = vunpack.c.h.b16 %v586
        %v806 = vunpack.c.l.b16 %v587
        %v807 = vunpack.c.h.b16 %v587
        %v808 = vunpack.c.l.b16 %v588
        %v809 = vunpack.c.h.b16 %v588
        %v810 = vunpack.c.l.b16 %v589
        %v811 = vunpack.c.h.b16 %v589
        %v812 = vunpack.c.l.b16 %v590
        %v813 = vunpack.c.h.b16 %v590
        %v814 = vunpack.c.l.b16 %v591
        %v815 = vunpack.c.h.b16 %v591
        %v816 = vunpack.c.l.b16 %v592
        %v817 = vunpack.c.h.b16 %v592
        %v818 = vunpack.c.l.b16 %v593
        %v819 = vunpack.c.h.b16 %v593
        %v820 = vunpack.c.l.b16 %v594
        %v821 = vunpack.c.h.b16 %v594
        %v822 = vunpack.c.l.b16 %v595
        %v823 = vunpack.c.h.b16 %v595
        %v824 = vunpack.c.l.b16 %v596
        %v825 = vunpack.c.h.b16 %v596
        %v826 = vunpack.c.l.b16 %v597
        %v827 = vunpack.c.h.b16 %v597
        %v828 = vunpack.c.l.b16 %v598
        %v829 = vunpack.c.h.b16 %v598
        %v830 = vunpack.c.l.b16 %v599
        %v831 = vunpack.c.h.b16 %v599
        %v832 = vunpack.c.l.b16 %v600
        %v833 = vunpack.c.h.b16 %v600
        %v834 = vunpack.c.l.b16 %v601
        %v835 = vunpack.c.h.b16 %v601
        %v836 = vunpack.c.l.b16 %v602
        %v837 = vunpack.c.h.b16 %v602
        %v838 = vunpack.c.l.b16 %v603
        %v839 = vunpack.c.h.b16 %v603
        %v840 = vunpack.c.l.b16 %v604
        %v841 = vunpack.c.h.b16 %v604
        %v842 = vunpack.c.l.b16 %v605
        %v843 = vunpack.c.h.b16 %v605
        %v844 = vunpack.c.l.b16 %v606
        %v845 = vunpack.c.h.b16 %v606
        %v846 = vunpack.c.l.b16 %v607
        %v847 = vunpack.c.h.b16 %v607
        %v848 = vunpack.c.l.b16 %v608
        %v849 = vunpack.c.h.b16 %v608
        %v850 = vunpack.c.l.b16 %v609
        %v851 = vunpack.c.h.b16 %v609
        %v852 = vunpack.c.l.b16 %v610
        %v853 = vunpack.c.h.b16 %v610
        %v854 = vunpack.c.l.b16 %v611
        %v855 = vunpack.c.h.b16 %v611
        %v856 = vunpack.c.l.b16 %v612
        %v857 = vunpack.c.h.b16 %v612
        %v858 = vunpack.c.l.b16 %v613
        %v859 = vunpack.c.h.b16 %v613
        %v860 = vunpack.c.l.b16 %v614
        %v861 = vunpack.c.h.b16 %v614
        %v862 = vunpack.c.l.b16 %v615
        %v863 = vunpack.c.h.b16 %v615
        %v864 = vunpack.c.l.b16 %v616
        %v865 = vunpack.c.h.b16 %v616
        %v866 = vunpack.c.l.b16 %v617
        %v867 = vunpack.c.h.b16 %v617
        %v868 = vunpack.c.l.b16 %v618
        %v869 = vunpack.c.h.b16 %v618
        %v870 = vunpack.c.l.b16 %v619
        %v871 = vunpack.c.h.b16 %v619
        %v872 = vunpack.c.l.b16 %v620
        %v873 = vunpack.c.h.b16 %v620
        %v874 = vunpack.c.l.b16 %v621
        %v875 = vunpack.c.h.b16 %v621
        %v876 = vunpack.c.l.b16 %v622
        %v877 = vunpack.c.h.b16 %v622
        %v878 = vunpack.c.l.b16 %v623
        %v879 = vunpack.c.h.b16 %v623
        %v880 = vunpack.c.l.b16 %v624
        %v881 = vunpack.c.h.b16 %v624
        %v882 = vunpack.c.l.b16 %v625
        %v883 = vunpack.c.h.b16 %v625
        %v884 = vunpack.c.l.b16 %v626
        %v885 = vunpack.c.h.b16 %v626
        %v886 = vunpack.c.l.b16 %v627
        %v887 = vunpack.c.h.b16 %v627
        %v888 = vunpack.c.l.b16 %v628
        %v889 = vunpack.c.h.b16 %v628
        %v890 = vunpack.c.l.b16 %v629
        %v891 = vunpack.c.h.b16 %v629
        %v892 = vunpack.c.l.b16 %v630
        %v893 = vunpack.c.h.b16 %v630
        %v894 = vunpack.c.l.b16 %v631
        %v895 = vunpack.c.h.b16 %v631
        %v896 = vunpack.c.l.b16 %v632
        %v897 = vunpack.c.h.b16 %v632
        %v898 = vunpack.c.l.b16 %v633
        %v899 = vunpack.c.h.b16 %v633
        %v900 = vunpack.c.l.b16 %v634
        %v901 = vunpack.c.h.b16 %v634
        %v902 = vunpack.c.l.b16 %v635
        %v903 = vunpack.c.h.b16 %v635
        %v904 = vunpack.c.l.b16 %v636
        %v905 = vunpack.c.h.b16 %v636
        %v906 = vunpack.c.l.b16 %v637
        %v907 = vunpack.c.h.b16 %v637
        %v908 = vunpack.c.l.b16 %v638
        %v909 = vunpack.c.h.b16 %v638
        %v910 = vunpack.c.l.b16 %v639
        %v911 = vunpack.c.h.b16 %v639
        %v912 = vunpack.c.l.b16 %v640
        %v913 = vunpack.c.h.b16 %v640
        %v914 = vunpack.c.l.b16 %v641
        %v915 = vunpack.c.h.b16 %v641
        %v916 = vunpack.c.l.b16 %v642
        %v917 = vunpack.c.h.b16 %v642
        %v918 = vunpack.c.l.b16 %v643
        %v919 = vunpack.c.h.b16 %v643
        %v920 = vunpack.c.l.b16 %v644
        %v921 = vunpack.c.h.b16 %v644
        %v922 = vunpack.c.l.b16 %v645
        %v923 = vunpack.c.h.b16 %v645
        %v924 = vunpack.c.l.b16 %v646
        %v925 = vunpack.c.h.b16 %v646
        %v926 = vunpack.c.l.b16 %v647
        %v927 = vunpack.c.h.b16 %v647
        %v928 = vunpack.c.l.b16 %v648
        %v929 = vunpack.c.h.b16 %v648
        %v930 = vunpack.c.l.b16 %v649
        %v931 = vunpack.c.h.b16 %v649
        %v932 = vunpack.c.l.b16 %v650
        %v933 = vunpack.c.h.b16 %v650
        %v934 = vunpack.c.l.b16 %v651
        %v935 = vunpack.c.h.b16 %v651
        %v936 = vunpack.c.l.b16 %v652
        %v937 = vunpack.c.h.b16 %v652
        %v938 = vunpack.c.l.b16 %v653
        %v939 = vunpack.c.h.b16 %v653
        %v940 = vunpack.c.l.b16 %v654
        %v941 = vunpack.c.h.b16 %v654
        %v942 = vunpack.c.l.b16 %v655
        %v943 = vunpack.c.h.b16 %v655
        %v944 = vunpack.c.l.b16 %v656
        %v945 = vunpack.c.h.b16 %v656
        %v946 = vunpack.c.l.b16 %v657
        %v947 = vunpack.c.h.b16 %v657
        %v948 = vunpack.c.l.b16 %v658
        %v949 = vunpack.c.h.b16 %v658
        %v950 = vunpack.c.l.b16 %v659
        %v951 = vunpack.c.h.b16 %v659
        %v952 = vunpack.c.l.b16 %v660
        %v953 = vunpack.c.h.b16 %v660
        %v954 = vunpack.c.l.b16 %v661
        %v955 = vunpack.c.h.b16 %v661
        %v956 = vunpack.c.l.b16 %v662
        %v957 = vunpack.c.h.b16 %v662
        %v958 = vunpack.c.l.b16 %v663
        %v959 = vunpack.c.h.b16 %v663
        %v960 = vunpack.c.l.b16 %v664
        %v961 = vunpack.c.h.b16 %v664
        %v962 = vunpack.c.l.b16 %v665
        %v963 = vunpack.c.h.b16 %v665
        %v964 = vunpack.c.l.b16 %v666
        %v965 = vunpack.c.h.b16 %v666
        %v966 = vunpack.c.l.b16 %v667
        %v967 = vunpack.c.h.b16 %v667
        %v968 = vunpack.c.l.b16 %v668
        %v969 = vunpack.c.h.b16 %v668
        %v970 = vunpack.c.l.b16 %v669
        %v971 = vunpack.c.h.b16 %v669
        %v972 = vpack.c.b16 %v786, %v780
        %v973 = vpack.c.b16 %v787, %v781
        %v974 = vpack.c.b16 %v788, %v782
        %v975 = vpack.c.b16 %v789, %v783
        %v976 = vpack.c.b16 %v790, %v784
        %v977 = vpack.c.b16 %v791, %v785
        %v978 = vpack.c.b16 %v798, %v792
        %v979 = vpack.c.b16 %v799, %v793
        %v980 = vpack.c.b16 %v800, %v794
        %v981 = vpack.c.b16 %v801, %v795
        %v982 = vpack.c.b16 %v802, %v796
        %v983 = vpack.c.b16 %v803, %v797
        %v984 = vpack.c.b16 %v810, %v804
        %v985 = vpack.c.b16 %v811, %v805
        %v986 = vpack.c.b16 %v812, %v806
        %v987 = vpack.c.b16 %v813, %v807
        %v988 = vpack.c.b16 %v814, %v808
        %v989 = vpack.c.b16 %v815, %v809
        %v990 = vpack.c.b16 %v822, %v816
        %v991 = vpack.c.b16 %v823, %v817
        %v992 = vpack.c.b16 %v824, %v818
        %v993 = vpack.c.b16 %v825, %v819
        %v994 = vpack.c.b16 %v826, %v820
        %v995 = vpack.c.b16 %v827, %v821
        %v996 = vpack.c.b16 %v834, %v828
        %v997 = vpack.c.b16 %v835, %v829
        %v998 = vpack.c.b16 %v836, %v830
        %v999 = vpack.c.b16 %v837, %v831
        %v1000 = vpack.c.b16 %v838, %v832
        %v1001 = vpack.c.b16 %v839, %v833
        %v1002 = vpack.c.b16 %v846, %v840
        %v1003 = vpack.c.b16 %v847, %v841
        %v1004 = vpack.c.b16 %v848, %v842
        %v1005 = vpack.c.b16 %v849, %v843
        %v1006 = vpack.c.b16 %v850, %v844
        %v1007 = vpack.c.b16 %v851, %v845
        %v1008 = vpack.c.b16 %v858, %v852
        %v1009 = vpack.c.b16 %v859, %v853
        %v1010 = vpack.c.b16 %v860, %v854
        %v1011 = vpack.c.b16 %v861, %v855
        %v1012 = vpack.c.b16 %v862, %v856
        %v1013 = vpack.c.b16 %v863, %v857
        %v1014 = vpack.c.b16 %v870, %v864
        %v1015 = vpack.c.b16 %v871, %v865
        %v1016 = vpack.c.b16 %v872, %v866
        %v1017 = vpack.c.b16 %v873, %v867
        %v1018 = vpack.c.b16 %v874, %v868
        %v1019 = vpack.c.b16 %v875, %v869
        %v1020 = vpack.c.b16 %v882, %v876
        %v1021 = vpack.c.b16 %v883, %v877
        %v1022 = vpack.c.b16 %v884, %v878
        %v1023 = vpack.c.b16 %v885, %v879
        %v1024 = vpack.c.b16 %v886, %v880
        %v1025 = vpack.c.b16 %v887, %v881
        %v1026 = vpack.c.b16 %v894, %v888
        %v1027 = vpack.c.b16 %v895, %v889
        %v1028 = vpack.c.b16 %v896, %v890
        %v1029 = vpack.c.b16 %v897, %v891
        %v1030 = vpack.c.b16 %v898, %v892
        %v1031 = vpack.c.b16 %v899, %v893
        %v1032 = vpack.c.b16 %v906, %v900
        %v1033 = vpack.c.b16 %v907, %v901
        %v1034 = vpack.c.b16 %v908, %v902
        %v1035 = vpack.c.b16 %v909, %v903
        %v1036 = vpack.c.b16 %v910, %v904
        %v1037 = vpack.c.b16 %v911, %v905
        %v1038 = vpack.c.b16 %v918, %v912
        %v1039 = vpack.c.b16 %v919, %v913
        %v1040 = vpack.c.b16 %v920, %v914
        %v1041 = vpack.c.b16 %v921, %v915
        %v1042 = vpack.c.b16 %v922, %v916
        %v1043 = vpack.c.b16 %v923, %v917
        %v1044 = vpack.c.b16 %v930, %v924
        %v1045 = vpack.c.b16 %v931, %v925
        %v1046 = vpack.c.b16 %v932, %v926
        %v1047 = vpack.c.b16 %v933, %v927
        %v1048 = vpack.c.b16 %v934, %v928
        %v1049 = vpack.c.b16 %v935, %v929
        %v1050 = vpack.c.b16 %v942, %v936
        %v1051 = vpack.c.b16 %v943, %v937
        %v1052 = vpack.c.b16 %v944, %v938
        %v1053 = vpack.c.b16 %v945, %v939
        %v1054 = vpack.c.b16 %v946, %v940
        %v1055 = vpack.c.b16 %v947, %v941
        %v1056 = vpack.c.b16 %v954, %v948
        %v1057 = vpack.c.b16 %v955, %v949
        %v1058 = vpack.c.b16 %v956, %v950
        %v1059 = vpack.c.b16 %v957, %v951
        %v1060 = vpack.c.b16 %v958, %v952
        %v1061 = vpack.c.b16 %v959, %v953
        %v1062 = vpack.c.b16 %v966, %v960
        %v1063 = vpack.c.b16 %v967, %v961
        %v1064 = vpack.c.b16 %v968, %v962
        %v1065 = vpack.c.b16 %v969, %v963
        %v1066 = vpack.c.b16 %v970, %v964
        %v1067 = vpack.c.b16 %v971, %v965
        %1164 = vmatpush.bf16.msra.mxu0 %v1014
        %1165 = vmatpush.bf16.msra.mxu0 %v1008
        %1166 = vmatpush.bf16.msra.mxu0 %v1002
        %1167 = vmatpush.bf16.msra.mxu0 %v996
        %1168 = vmatpush.bf16.msra.mxu0 %v990
        %1169 = vmatpush.bf16.msra.mxu0 %v984
        %1170 = vmatpush.bf16.msra.mxu0 %v978
        %1171 = vmatpush.bf16.msra.mxu0 %v972
        %1172 = vmatmul.bf16.gmra.mxu0 %v572
        %v1173 = vpop.f32.mrf.mxu0
        %v1174 = vadd.f32 %v672, %v1173
        %v1175 = vpop.f32.mrf.mxu0
        %1176 = vdwg.mxu0
        %1177 = vmatpush.bf16.msra.mxu0 %v1062
        %1178 = vmatpush.bf16.msra.mxu0 %v1056
        %1179 = vmatpush.bf16.msra.mxu0 %v1050
        %1180 = vmatpush.bf16.msra.mxu0 %v1044
        %1181 = vmatpush.bf16.msra.mxu0 %v1038
        %1182 = vmatpush.bf16.msra.mxu0 %v1032
        %1183 = vmatpush.bf16.msra.mxu0 %v1026
        %1184 = vmatpush.bf16.msra.mxu0 %v1020
        %1185 = vmatmul.bf16.gmra.mxu0 %v573
        %v1186 = vpop.f32.mrf.mxu0
        %v1187 = vadd.f32 %v1174, %v1186
        %v1188 = vpop.f32.mrf.mxu0
        %1189 = vdwg.mxu0
        %1190 = vmatpush.bf16.msra.mxu0 %v1015
        %1191 = vmatpush.bf16.msra.mxu0 %v1009
        %1192 = vmatpush.bf16.msra.mxu0 %v1003
        %1193 = vmatpush.bf16.msra.mxu0 %v997
        %1194 = vmatpush.bf16.msra.mxu0 %v991
        %1195 = vmatpush.bf16.msra.mxu0 %v985
        %1196 = vmatpush.bf16.msra.mxu0 %v979
        %1197 = vmatpush.bf16.msra.mxu0 %v973
        %1198 = vmatmul.bf16.gmra.mxu0 %v572
        %v1199 = vpop.f32.mrf.mxu0
        %v1200 = vadd.f32 %v673, %v1199
        %v1201 = vpop.f32.mrf.mxu0
        %1202 = vdwg.mxu0
        %1203 = vmatpush.bf16.msra.mxu0 %v1063
        %1204 = vmatpush.bf16.msra.mxu0 %v1057
        %1205 = vmatpush.bf16.msra.mxu0 %v1051
        %1206 = vmatpush.bf16.msra.mxu0 %v1045
        %1207 = vmatpush.bf16.msra.mxu0 %v1039
        %1208 = vmatpush.bf16.msra.mxu0 %v1033
        %1209 = vmatpush.bf16.msra.mxu0 %v1027
        %1210 = vmatpush.bf16.msra.mxu0 %v1021
        %1211 = vmatmul.bf16.gmra.mxu0 %v573
        %v1212 = vpop.f32.mrf.mxu0
        %v1213 = vadd.f32 %v1200, %v1212
        %v1214 = vpop.f32.mrf.mxu0
        %1215 = vdwg.mxu0
        %1216 = vmatpush.bf16.msra.mxu0 %v1016
        %1217 = vmatpush.bf16.msra.mxu0 %v1010
        %1218 = vmatpush.bf16.msra.mxu0 %v1004
        %1219 = vmatpush.bf16.msra.mxu0 %v998
        %1220 = vmatpush.bf16.msra.mxu0 %v992
        %1221 = vmatpush.bf16.msra.mxu0 %v986
        %1222 = vmatpush.bf16.msra.mxu0 %v980
        %1223 = vmatpush.bf16.msra.mxu0 %v974
        %1224 = vmatmul.bf16.gmra.mxu0 %v572
        %v1225 = vpop.f32.mrf.mxu0
        %v1226 = vadd.f32 %v674, %v1225
        %v1227 = vpop.f32.mrf.mxu0
        %1228 = vdwg.mxu0
        %1229 = vmatpush.bf16.msra.mxu0 %v1064
        %1230 = vmatpush.bf16.msra.mxu0 %v1058
        %1231 = vmatpush.bf16.msra.mxu0 %v1052
        %1232 = vmatpush.bf16.msra.mxu0 %v1046
        %1233 = vmatpush.bf16.msra.mxu0 %v1040
        %1234 = vmatpush.bf16.msra.mxu0 %v1034
        %1235 = vmatpush.bf16.msra.mxu0 %v1028
        %1236 = vmatpush.bf16.msra.mxu0 %v1022
        %1237 = vmatmul.bf16.gmra.mxu0 %v573
        %v1238 = vpop.f32.mrf.mxu0
        %v1239 = vadd.f32 %v1226, %v1238
        %v1240 = vpop.f32.mrf.mxu0
        %1241 = vdwg.mxu0
        %1242 = vmatpush.bf16.msra.mxu0 %v1017
        %1243 = vmatpush.bf16.msra.mxu0 %v1011
        %1244 = vmatpush.bf16.msra.mxu0 %v1005
        %1245 = vmatpush.bf16.msra.mxu0 %v999
        %1246 = vmatpush.bf16.msra.mxu0 %v993
        %1247 = vmatpush.bf16.msra.mxu0 %v987
        %1248 = vmatpush.bf16.msra.mxu0 %v981
        %1249 = vmatpush.bf16.msra.mxu0 %v975
        %1250 = vmatmul.bf16.gmra.mxu0 %v572
        %v1251 = vpop.f32.mrf.mxu0
        %v1252 = vadd.f32 %v675, %v1251
        %v1253 = vpop.f32.mrf.mxu0
        %1254 = vdwg.mxu0
        %1255 = vmatpush.bf16.msra.mxu0 %v1065
        %1256 = vmatpush.bf16.msra.mxu0 %v1059
        %1257 = vmatpush.bf16.msra.mxu0 %v1053
        %1258 = vmatpush.bf16.msra.mxu0 %v1047
        %1259 = vmatpush.bf16.msra.mxu0 %v1041
        %1260 = vmatpush.bf16.msra.mxu0 %v1035
        %1261 = vmatpush.bf16.msra.mxu0 %v1029
        %1262 = vmatpush.bf16.msra.mxu0 %v1023
        %1263 = vmatmul.bf16.gmra.mxu0 %v573
        %v1264 = vpop.f32.mrf.mxu0
        %v1265 = vadd.f32 %v1252, %v1264
        %v1266 = vpop.f32.mrf.mxu0
        %1267 = vdwg.mxu0
        %1268 = vmatpush.bf16.msra.mxu0 %v1018
        %1269 = vmatpush.bf16.msra.mxu0 %v1012
        %1270 = vmatpush.bf16.msra.mxu0 %v1006
        %1271 = vmatpush.bf16.msra.mxu0 %v1000
        %1272 = vmatpush.bf16.msra.mxu0 %v994
        %1273 = vmatpush.bf16.msra.mxu0 %v988
        %1274 = vmatpush.bf16.msra.mxu0 %v982
        %1275 = vmatpush.bf16.msra.mxu0 %v976
        %1276 = vmatmul.bf16.gmra.mxu0 %v572
        %v1277 = vpop.f32.mrf.mxu0
        %v1278 = vadd.f32 %v676, %v1277
        %v1279 = vpop.f32.mrf.mxu0
        %1280 = vdwg.mxu0
        %1281 = vmatpush.bf16.msra.mxu0 %v1066
        %1282 = vmatpush.bf16.msra.mxu0 %v1060
        %1283 = vmatpush.bf16.msra.mxu0 %v1054
        %1284 = vmatpush.bf16.msra.mxu0 %v1048
        %1285 = vmatpush.bf16.msra.mxu0 %v1042
        %1286 = vmatpush.bf16.msra.mxu0 %v1036
        %1287 = vmatpush.bf16.msra.mxu0 %v1030
        %1288 = vmatpush.bf16.msra.mxu0 %v1024
        %1289 = vmatmul.bf16.gmra.mxu0 %v573
        %v1290 = vpop.f32.mrf.mxu0
        %v1291 = vadd.f32 %v1278, %v1290
        %v1292 = vpop.f32.mrf.mxu0
        %1293 = vdwg.mxu0
        %1294 = vmatpush.bf16.msra.mxu0 %v1019
        %1295 = vmatpush.bf16.msra.mxu0 %v1013
        %1296 = vmatpush.bf16.msra.mxu0 %v1007
        %1297 = vmatpush.bf16.msra.mxu0 %v1001
        %1298 = vmatpush.bf16.msra.mxu0 %v995
        %1299 = vmatpush.bf16.msra.mxu0 %v989
        %1300 = vmatpush.bf16.msra.mxu0 %v983
        %1301 = vmatpush.bf16.msra.mxu0 %v977
        %1302 = vmatmul.bf16.gmra.mxu0 %v572
        %v1303 = vpop.f32.mrf.mxu0
        %v1304 = vadd.f32 %v677, %v1303
        %v1305 = vpop.f32.mrf.mxu0
        %1306 = vdwg.mxu0
        %1307 = vmatpush.bf16.msra.mxu0 %v1067
        %1308 = vmatpush.bf16.msra.mxu0 %v1061
        %1309 = vmatpush.bf16.msra.mxu0 %v1055
        %1310 = vmatpush.bf16.msra.mxu0 %v1049
        %1311 = vmatpush.bf16.msra.mxu0 %v1043
        %1312 = vmatpush.bf16.msra.mxu0 %v1037
        %1313 = vmatpush.bf16.msra.mxu0 %v1031
        %1314 = vmatpush.bf16.msra.mxu0 %v1025
        %1315 = vmatmul.bf16.gmra.mxu0 %v573
        %v1316 = vpop.f32.mrf.mxu0
        %v1317 = vadd.f32 %v1304, %v1316
        %v1318 = vpop.f32.mrf.mxu0
        %1319 = vdwg.mxu0
        %1321 = vrot.lane.b32.xlu0 %v1187, 64
        %v1322 = vpop.permute.xlu0 %1321
        %1325 = vrot.lane.b32.xlu0 %v1213, 64
        %v1326 = vpop.permute.xlu0 %1325
        %v1328 = vpack.c.bf16 %v1187, %v1187
        %v1329 = vpack.c.bf16 %v1322, %v1322
        %v1330 = vpack.c.bf16 %v1213, %v1213
        %v1331 = vpack.c.bf16 %v1326, %v1326
        %1333 = vrot.lane.b32.xlu0 %v1239, 64
        %v1334 = vpop.permute.xlu0 %1333
        %1337 = vrot.lane.b32.xlu0 %v1265, 64
        %v1338 = vpop.permute.xlu0 %1337
        %v1340 = vpack.c.bf16 %v1239, %v1239
        %v1341 = vpack.c.bf16 %v1334, %v1334
        %v1342 = vpack.c.bf16 %v1265, %v1265
        %v1343 = vpack.c.bf16 %v1338, %v1338
        %1345 = vrot.lane.b32.xlu0 %v1291, 64
        %v1346 = vpop.permute.xlu0 %1345
        %1349 = vrot.lane.b32.xlu0 %v1317, 64
        %v1350 = vpop.permute.xlu0 %1349
        %v1352 = vpack.c.bf16 %v1291, %v1291
        %v1353 = vpack.c.bf16 %v1346, %v1346
        %v1354 = vpack.c.bf16 %v1317, %v1317
        %v1355 = vpack.c.bf16 %v1350, %v1350
        %vm1356 = vcmask 523264
        %v1358 = vsel %vm1356, %v1328, 0
        %v1361 = vsel %vm1356, %v1340, 0
        %1363 = vmatpush.bf16.xpose.msra.mxu0 0
        %1364 = vmatpush.bf16.xpose.msra.mxu0 0
        %1365 = vmatpush.bf16.xpose.msra.mxu0 0
        %1366 = vmatpush.bf16.xpose.msra.mxu0 0
        %1367 = vmatpush.bf16.xpose.msra.mxu0 0
        %1368 = vmatpush.bf16.xpose.msra.mxu0 0
        %1369 = vmatpush.bf16.xpose.msra.mxu0 0
        %1370 = vmatpush.bf16.xpose.msra.mxu0 %v1361
        %1371 = vmatmul.bf16.gmra.mxu0 %v1358
        %v1372 = vpop.f32.mrf.mxu0
        %v1373 = vadd.f32 0.0, %v1372
        %v1374 = vpop.f32.mrf.mxu0
        %1375 = vdwg.mxu0
        %v1377 = vsel %vm1356, %v1329, 0
        %v1380 = vsel %vm1356, %v1341, 0
        %1382 = vmatpush.bf16.xpose.msra.mxu0 0
        %1383 = vmatpush.bf16.xpose.msra.mxu0 0
        %1384 = vmatpush.bf16.xpose.msra.mxu0 0
        %1385 = vmatpush.bf16.xpose.msra.mxu0 0
        %1386 = vmatpush.bf16.xpose.msra.mxu0 0
        %1387 = vmatpush.bf16.xpose.msra.mxu0 0
        %1388 = vmatpush.bf16.xpose.msra.mxu0 0
        %1389 = vmatpush.bf16.xpose.msra.mxu0 %v1380
        %1390 = vmatmul.bf16.gmra.mxu0 %v1377
        %v1391 = vpop.f32.mrf.mxu0
        %v1392 = vadd.f32 0.0, %v1391
        %v1393 = vpop.f32.mrf.mxu0
        %1394 = vdwg.mxu0
        %v1396 = vsel %vm1356, %v1330, 0
        %v1399 = vsel %vm1356, %v1342, 0
        %1401 = vmatpush.bf16.xpose.msra.mxu0 0
        %1402 = vmatpush.bf16.xpose.msra.mxu0 0
        %1403 = vmatpush.bf16.xpose.msra.mxu0 0
        %1404 = vmatpush.bf16.xpose.msra.mxu0 0
        %1405 = vmatpush.bf16.xpose.msra.mxu0 0
        %1406 = vmatpush.bf16.xpose.msra.mxu0 0
        %1407 = vmatpush.bf16.xpose.msra.mxu0 0
        %1408 = vmatpush.bf16.xpose.msra.mxu0 %v1399
        %1409 = vmatmul.bf16.gmra.mxu0 %v1396
        %v1410 = vpop.f32.mrf.mxu0
        %v1411 = vadd.f32 0.0, %v1410
        %v1412 = vpop.f32.mrf.mxu0
        %1413 = vdwg.mxu0
        %v1415 = vsel %vm1356, %v1331, 0
        %v1418 = vsel %vm1356, %v1343, 0
        %1420 = vmatpush.bf16.xpose.msra.mxu0 0
        %1421 = vmatpush.bf16.xpose.msra.mxu0 0
        %1422 = vmatpush.bf16.xpose.msra.mxu0 0
        %1423 = vmatpush.bf16.xpose.msra.mxu0 0
        %1424 = vmatpush.bf16.xpose.msra.mxu0 0
        %1425 = vmatpush.bf16.xpose.msra.mxu0 0
        %1426 = vmatpush.bf16.xpose.msra.mxu0 0
        %1427 = vmatpush.bf16.xpose.msra.mxu0 %v1418
        %1428 = vmatmul.bf16.gmra.mxu0 %v1415
        %v1429 = vpop.f32.mrf.mxu0
        %v1430 = vadd.f32 0.0, %v1429
        %v1431 = vpop.f32.mrf.mxu0
        %1432 = vdwg.mxu0
        %vm1433 = vcmask 64512
        %v1434 = vsel %vm1433, %v1373, -inf
        %1435 = vmax.xlane.f32.xlu0 %v1434
        %v1436 = vpop.xlane.xlu0 %1435
        %v1437 = vsel %vm1433, %v1392, -inf
        %1438 = vmax.xlane.f32.xlu0 %v1437
        %v1439 = vpop.xlane.xlu0 %1438
        %v1440 = vsel %vm1433, %v1411, -inf
        %1441 = vmax.xlane.f32.xlu0 %v1440
        %v1442 = vpop.xlane.xlu0 %1441
        %v1443 = vsel %vm1433, %v1430, -inf
        %1444 = vmax.xlane.f32.xlu0 %v1443
        %v1445 = vpop.xlane.xlu0 %1444
        %v1446 = vsub.f32 %v1373, %v1436
        %v1447 = vsub.f32 %v1392, %v1439
        %v1448 = vsub.f32 %v1411, %v1442
        %v1449 = vsub.f32 %v1430, %v1445
        %v1450 = vmul.f32 %v1446, 1.442695
        %v1451 = vpow.pop %v1450
        %v1452 = vmul.f32 %v1447, 1.442695
        %v1453 = vpow.pop %v1452
        %v1454 = vmul.f32 %v1448, 1.442695
        %v1455 = vpow.pop %v1454
        %v1456 = vmul.f32 %v1449, 1.442695
        %v1457 = vpow.pop %v1456
        %v1458 = vsel %vm1433, %v1451, 0.0
        %1459 = vadd.xlane.f32.xlu0 %v1458
        %v1460 = vpop.xlane.xlu0 %1459
        %v1461 = vsel %vm1433, %v1453, 0.0
        %1462 = vadd.xlane.f32.xlu0 %v1461
        %v1463 = vpop.xlane.xlu0 %1462
        %v1464 = vsel %vm1433, %v1455, 0.0
        %1465 = vadd.xlane.f32.xlu0 %v1464
        %v1466 = vpop.xlane.xlu0 %1465
        %v1467 = vsel %vm1433, %v1457, 0.0
        %1468 = vadd.xlane.f32.xlu0 %v1467
        %v1469 = vpop.xlane.xlu0 %1468
        %v1470 = vrcp.pop %v1460
        %v1471 = vrcp.pop %v1463
        %v1472 = vrcp.pop %v1466
        %v1473 = vrcp.pop %v1469
        %v1474 = vmul.f32 %v1451, %v1470
        %v1475 = vmul.f32 %v1453, %v1471
        %v1476 = vmul.f32 %v1455, %v1472
        %v1477 = vmul.f32 %v1457, %v1473
        %v1478 = vpack.c.bf16 %v1474, %v1474
        %v1479 = vpack.c.bf16 %v1475, %v1475
        %v1480 = vpack.c.bf16 %v1476, %v1476
        %v1481 = vpack.c.bf16 %v1477, %v1477
        %v1483 = vsel %vm1433, %v1478, 0
        %vm1485 = vcmask 1043456
        %v1487 = vsel %vm1485, %v1352, 0
        %1489 = vmatpush.bf16.msra.mxu0 0
        %1490 = vmatpush.bf16.msra.mxu0 0
        %1491 = vmatpush.bf16.msra.mxu0 0
        %1492 = vmatpush.bf16.msra.mxu0 0
        %1493 = vmatpush.bf16.msra.mxu0 0
        %1494 = vmatpush.bf16.msra.mxu0 0
        %1495 = vmatpush.bf16.msra.mxu0 0
        %1496 = vmatpush.bf16.msra.mxu0 %v1487
        %1497 = vmatmul.bf16.gmra.mxu0 %v1483
        %v1498 = vpop.f32.mrf.mxu0
        %v1499 = vadd.f32 0.0, %v1498
        %v1500 = vpop.f32.mrf.mxu0
        %1501 = vdwg.mxu0
        %v1503 = vsel %vm1433, %v1479, 0
        %v1506 = vsel %vm1485, %v1353, 0
        %1508 = vmatpush.bf16.msra.mxu0 0
        %1509 = vmatpush.bf16.msra.mxu0 0
        %1510 = vmatpush.bf16.msra.mxu0 0
        %1511 = vmatpush.bf16.msra.mxu0 0
        %1512 = vmatpush.bf16.msra.mxu0 0
        %1513 = vmatpush.bf16.msra.mxu0 0
        %1514 = vmatpush.bf16.msra.mxu0 0
        %1515 = vmatpush.bf16.msra.mxu0 %v1506
        %1516 = vmatmul.bf16.gmra.mxu0 %v1503
        %v1517 = vpop.f32.mrf.mxu0
        %v1518 = vadd.f32 0.0, %v1517
        %v1519 = vpop.f32.mrf.mxu0
        %1520 = vdwg.mxu0
        %v1522 = vsel %vm1433, %v1480, 0
        %v1525 = vsel %vm1485, %v1354, 0
        %1527 = vmatpush.bf16.msra.mxu0 0
        %1528 = vmatpush.bf16.msra.mxu0 0
        %1529 = vmatpush.bf16.msra.mxu0 0
        %1530 = vmatpush.bf16.msra.mxu0 0
        %1531 = vmatpush.bf16.msra.mxu0 0
        %1532 = vmatpush.bf16.msra.mxu0 0
        %1533 = vmatpush.bf16.msra.mxu0 0
        %1534 = vmatpush.bf16.msra.mxu0 %v1525
        %1535 = vmatmul.bf16.gmra.mxu0 %v1522
        %v1536 = vpop.f32.mrf.mxu0
        %v1537 = vadd.f32 0.0, %v1536
        %v1538 = vpop.f32.mrf.mxu0
        %1539 = vdwg.mxu0
        %v1541 = vsel %vm1433, %v1481, 0
        %v1544 = vsel %vm1485, %v1355, 0
        %1546 = vmatpush.bf16.msra.mxu0 0
        %1547 = vmatpush.bf16.msra.mxu0 0
        %1548 = vmatpush.bf16.msra.mxu0 0
        %1549 = vmatpush.bf16.msra.mxu0 0
        %1550 = vmatpush.bf16.msra.mxu0 0
        %1551 = vmatpush.bf16.msra.mxu0 0
        %1552 = vmatpush.bf16.msra.mxu0 0
        %1553 = vmatpush.bf16.msra.mxu0 %v1544
        %1554 = vmatmul.bf16.gmra.mxu0 %v1541
        %v1555 = vpop.f32.mrf.mxu0
        %v1556 = vadd.f32 0.0, %v1555
        %v1557 = vpop.f32.mrf.mxu0
        %1558 = vdwg.mxu0
        %v1559 = vpack.c.bf16 %v1499, %v1499
        %v1560 = vpack.c.bf16 %v1518, %v1518
        %v1561 = vpack.c.bf16 %v1537, %v1537
        %v1562 = vpack.c.bf16 %v1556, %v1556
        %v1564 = vunpack.c.l.b16 %v1560
        %v1565 = vpack.c.b16 %v1564, %v1564
        %1566 = vrot.lane.b32.xlu0 %v1565, 64
        %v1567 = vpop.permute.xlu0 %1566
        %v1569 = vunpack.c.l.b16 %v1562
        %v1570 = vpack.c.b16 %v1569, %v1569
        %1571 = vrot.lane.b32.xlu0 %v1570, 64
        %v1572 = vpop.permute.xlu0 %1571
        %v1575 = vsel %vm1356, %v1559, %v1567
        %v1579 = vsel %vm1356, %v1561, %v1572
        %v1581 = vld [vmem:[#allocation8] sm:$0xff]
        %v1582 = vld [vmem:[#allocation8 + $0x8] sm:$0xff]
        %v1583 = vld [vmem:[#allocation8 + $0x10] sm:$0xff]
        %v1584 = vld [vmem:[#allocation8 + $0x18] sm:$0xff]
        %v1585 = vld [vmem:[#allocation8 + $0x20] sm:$0xff]
        %v1586 = vld [vmem:[#allocation8 + $0x28] sm:$0xff]
        %v1587 = vld [vmem:[#allocation8 + $0x30] sm:$0xff]
        %v1588 = vld [vmem:[#allocation8 + $0x38] sm:$0xff]
        %v1589 = vld [vmem:[#allocation8 + $0x40] sm:$0xff]
        %v1590 = vld [vmem:[#allocation8 + $0x48] sm:$0xff]
        %v1591 = vld [vmem:[#allocation8 + $0x50] sm:$0xff]
        %v1592 = vld [vmem:[#allocation8 + $0x58] sm:$0xff]
        %v1593 = vld [vmem:[#allocation8 + $0x60] sm:$0xff]
        %v1594 = vld [vmem:[#allocation8 + $0x68] sm:$0xff]
        %v1595 = vld [vmem:[#allocation8 + $0x70] sm:$0xff]
        %v1596 = vld [vmem:[#allocation8 + $0x78] sm:$0xff]
        %v1597 = vld [vmem:[#allocation8 + $0x80] sm:$0xff]
        %v1598 = vld [vmem:[#allocation8 + $0x88] sm:$0xff]
        %v1599 = vld [vmem:[#allocation8 + $0x90] sm:$0xff]
        %v1600 = vld [vmem:[#allocation8 + $0x98] sm:$0xff]
        %v1601 = vld [vmem:[#allocation8 + $0xa0] sm:$0xff]
        %v1602 = vld [vmem:[#allocation8 + $0xa8] sm:$0xff]
        %v1603 = vld [vmem:[#allocation8 + $0xb0] sm:$0xff]
        %v1604 = vld [vmem:[#allocation8 + $0xb8] sm:$0xff]
        %v1605 = vld [vmem:[#allocation8 + $0xc0] sm:$0xff]
        %v1606 = vld [vmem:[#allocation8 + $0xc8] sm:$0xff]
        %v1607 = vld [vmem:[#allocation8 + $0xd0] sm:$0xff]
        %v1608 = vld [vmem:[#allocation8 + $0xd8] sm:$0xff]
        %v1609 = vld [vmem:[#allocation8 + $0xe0] sm:$0xff]
        %v1610 = vld [vmem:[#allocation8 + $0xe8] sm:$0xff]
        %v1611 = vld [vmem:[#allocation8 + $0xf0] sm:$0xff]
        %v1612 = vld [vmem:[#allocation8 + $0xf8] sm:$0xff]
        %v1613 = vld [vmem:[%s4] sm:$0x3]
        %v1615 = vperm.slane %v1613, 0
        %v1616 = vperm.slane %v1613, 1
        %v1651 = vunpack.c.l.b16 %v1581
        %v1652 = vunpack.c.h.b16 %v1581
        %v1653 = vunpack.c.l.b16 %v1582
        %v1654 = vunpack.c.h.b16 %v1582
        %v1655 = vunpack.c.l.b16 %v1583
        %v1656 = vunpack.c.h.b16 %v1583
        %v1657 = vunpack.c.l.b16 %v1584
        %v1658 = vunpack.c.h.b16 %v1584
        %v1659 = vunpack.c.l.b16 %v1585
        %v1660 = vunpack.c.h.b16 %v1585
        %v1661 = vunpack.c.l.b16 %v1586
        %v1662 = vunpack.c.h.b16 %v1586
        %v1663 = vunpack.c.l.b16 %v1587
        %v1664 = vunpack.c.h.b16 %v1587
        %v1665 = vunpack.c.l.b16 %v1588
        %v1666 = vunpack.c.h.b16 %v1588
        %v1667 = vunpack.c.l.b16 %v1589
        %v1668 = vunpack.c.h.b16 %v1589
        %v1669 = vunpack.c.l.b16 %v1590
        %v1670 = vunpack.c.h.b16 %v1590
        %v1671 = vunpack.c.l.b16 %v1591
        %v1672 = vunpack.c.h.b16 %v1591
        %v1673 = vunpack.c.l.b16 %v1592
        %v1674 = vunpack.c.h.b16 %v1592
        %v1675 = vunpack.c.l.b16 %v1593
        %v1676 = vunpack.c.h.b16 %v1593
        %v1677 = vunpack.c.l.b16 %v1594
        %v1678 = vunpack.c.h.b16 %v1594
        %v1679 = vunpack.c.l.b16 %v1595
        %v1680 = vunpack.c.h.b16 %v1595
        %v1681 = vunpack.c.l.b16 %v1596
        %v1682 = vunpack.c.h.b16 %v1596
        %v1683 = vunpack.c.l.b16 %v1597
        %v1684 = vunpack.c.h.b16 %v1597
        %v1685 = vunpack.c.l.b16 %v1598
        %v1686 = vunpack.c.h.b16 %v1598
        %v1687 = vunpack.c.l.b16 %v1599
        %v1688 = vunpack.c.h.b16 %v1599
        %v1689 = vunpack.c.l.b16 %v1600
        %v1690 = vunpack.c.h.b16 %v1600
        %v1691 = vunpack.c.l.b16 %v1601
        %v1692 = vunpack.c.h.b16 %v1601
        %v1693 = vunpack.c.l.b16 %v1602
        %v1694 = vunpack.c.h.b16 %v1602
        %v1695 = vunpack.c.l.b16 %v1603
        %v1696 = vunpack.c.h.b16 %v1603
        %v1697 = vunpack.c.l.b16 %v1604
        %v1698 = vunpack.c.h.b16 %v1604
        %v1699 = vunpack.c.l.b16 %v1605
        %v1700 = vunpack.c.h.b16 %v1605
        %v1701 = vunpack.c.l.b16 %v1606
        %v1702 = vunpack.c.h.b16 %v1606
        %v1703 = vunpack.c.l.b16 %v1607
        %v1704 = vunpack.c.h.b16 %v1607
        %v1705 = vunpack.c.l.b16 %v1608
        %v1706 = vunpack.c.h.b16 %v1608
        %v1707 = vunpack.c.l.b16 %v1609
        %v1708 = vunpack.c.h.b16 %v1609
        %v1709 = vunpack.c.l.b16 %v1610
        %v1710 = vunpack.c.h.b16 %v1610
        %v1711 = vunpack.c.l.b16 %v1611
        %v1712 = vunpack.c.h.b16 %v1611
        %v1713 = vunpack.c.l.b16 %v1612
        %v1714 = vunpack.c.h.b16 %v1612
        %v1715 = vpack.c.b16 %v1653, %v1651
        %v1716 = vpack.c.b16 %v1654, %v1652
        %v1717 = vpack.c.b16 %v1657, %v1655
        %v1718 = vpack.c.b16 %v1658, %v1656
        %v1719 = vpack.c.b16 %v1661, %v1659
        %v1720 = vpack.c.b16 %v1662, %v1660
        %v1721 = vpack.c.b16 %v1665, %v1663
        %v1722 = vpack.c.b16 %v1666, %v1664
        %v1723 = vpack.c.b16 %v1669, %v1667
        %v1724 = vpack.c.b16 %v1670, %v1668
        %v1725 = vpack.c.b16 %v1673, %v1671
        %v1726 = vpack.c.b16 %v1674, %v1672
        %v1727 = vpack.c.b16 %v1677, %v1675
        %v1728 = vpack.c.b16 %v1678, %v1676
        %v1729 = vpack.c.b16 %v1681, %v1679
        %v1730 = vpack.c.b16 %v1682, %v1680
        %v1731 = vpack.c.b16 %v1685, %v1683
        %v1732 = vpack.c.b16 %v1686, %v1684
        %v1733 = vpack.c.b16 %v1689, %v1687
        %v1734 = vpack.c.b16 %v1690, %v1688
        %v1735 = vpack.c.b16 %v1693, %v1691
        %v1736 = vpack.c.b16 %v1694, %v1692
        %v1737 = vpack.c.b16 %v1697, %v1695
        %v1738 = vpack.c.b16 %v1698, %v1696
        %v1739 = vpack.c.b16 %v1701, %v1699
        %v1740 = vpack.c.b16 %v1702, %v1700
        %v1741 = vpack.c.b16 %v1705, %v1703
        %v1742 = vpack.c.b16 %v1706, %v1704
        %v1743 = vpack.c.b16 %v1709, %v1707
        %v1744 = vpack.c.b16 %v1710, %v1708
        %v1745 = vpack.c.b16 %v1713, %v1711
        %v1746 = vpack.c.b16 %v1714, %v1712
        %1779 = vmatpush.bf16.msra.mxu0 %v1729
        %1780 = vmatpush.bf16.msra.mxu0 %v1727
        %1781 = vmatpush.bf16.msra.mxu0 %v1725
        %1782 = vmatpush.bf16.msra.mxu0 %v1723
        %1783 = vmatpush.bf16.msra.mxu0 %v1721
        %1784 = vmatpush.bf16.msra.mxu0 %v1719
        %1785 = vmatpush.bf16.msra.mxu0 %v1717
        %1786 = vmatpush.bf16.msra.mxu0 %v1715
        %1787 = vmatmul.bf16.gmra.mxu0 %v1575
        %v1788 = vpop.f32.mrf.mxu0
        %v1789 = vadd.f32 %v1615, %v1788
        %v1790 = vpop.f32.mrf.mxu0
        %1791 = vdwg.mxu0
        %1792 = vmatpush.bf16.msra.mxu0 %v1745
        %1793 = vmatpush.bf16.msra.mxu0 %v1743
        %1794 = vmatpush.bf16.msra.mxu0 %v1741
        %1795 = vmatpush.bf16.msra.mxu0 %v1739
        %1796 = vmatpush.bf16.msra.mxu0 %v1737
        %1797 = vmatpush.bf16.msra.mxu0 %v1735
        %1798 = vmatpush.bf16.msra.mxu0 %v1733
        %1799 = vmatpush.bf16.msra.mxu0 %v1731
        %1800 = vmatmul.bf16.gmra.mxu0 %v1579
        %v1801 = vpop.f32.mrf.mxu0
        %v1802 = vadd.f32 %v1789, %v1801
        %v1803 = vpop.f32.mrf.mxu0
        %1804 = vdwg.mxu0
        %1805 = vmatpush.bf16.msra.mxu0 %v1730
        %1806 = vmatpush.bf16.msra.mxu0 %v1728
        %1807 = vmatpush.bf16.msra.mxu0 %v1726
        %1808 = vmatpush.bf16.msra.mxu0 %v1724
        %1809 = vmatpush.bf16.msra.mxu0 %v1722
        %1810 = vmatpush.bf16.msra.mxu0 %v1720
        %1811 = vmatpush.bf16.msra.mxu0 %v1718
        %1812 = vmatpush.bf16.msra.mxu0 %v1716
        %1813 = vmatmul.bf16.gmra.mxu0 %v1575
        %v1814 = vpop.f32.mrf.mxu0
        %v1815 = vadd.f32 %v1616, %v1814
        %v1816 = vpop.f32.mrf.mxu0
        %1817 = vdwg.mxu0
        %1818 = vmatpush.bf16.msra.mxu0 %v1746
        %1819 = vmatpush.bf16.msra.mxu0 %v1744
        %1820 = vmatpush.bf16.msra.mxu0 %v1742
        %1821 = vmatpush.bf16.msra.mxu0 %v1740
        %1822 = vmatpush.bf16.msra.mxu0 %v1738
        %1823 = vmatpush.bf16.msra.mxu0 %v1736
        %1824 = vmatpush.bf16.msra.mxu0 %v1734
        %1825 = vmatpush.bf16.msra.mxu0 %v1732
        %1826 = vmatmul.bf16.gmra.mxu0 %v1579
        %v1827 = vpop.f32.mrf.mxu0
        %v1828 = vadd.f32 %v1815, %v1827
        %v1829 = vpop.f32.mrf.mxu0
        %1830 = vdwg.mxu0
        %v1831 = vadd.f32 %v570, %v1802
        %v1832 = vadd.f32 %v571, %v1828
        %v1833 = vld [vmem:[%s5] sm:$0x3]
        %v1834 = vld [vmem:[#allocation10] sm:$0x3]
        %v1835 = vadd.f32 %v1831, %v1832
        %1836 = vadd.xlane.f32.xlu0 %v1835
        %v1837 = vpop.xlane.xlu0 %1836
        %v1838 = vrcp.pop 256.0
        %v1839 = vmul.f32 256.0, %v1838
        %v1840 = vsub.f32 1.0, %v1839
        %v1841 = vmul.f32 %v1838, %v1840
        %v1842 = vadd.f32 %v1838, %v1841
        %vm1843 = vweird.f32 %v1838
        %v1844 = vsel %vm1843, %v1838, %v1842
        %v1845 = vmul.f32 %v1837, %v1844
        %v1846 = vsub.f32 %v1831, %v1845
        %v1847 = vsub.f32 %v1832, %v1845
        %v1848 = vmul.f32 %v1846, %v1846
        %v1849 = vmul.f32 %v1847, %v1847
        %v1850 = vadd.f32 %v1848, %v1849
        %1851 = vadd.xlane.f32.xlu0 %v1850
        %v1852 = vpop.xlane.xlu0 %1851
        %v1853 = vmul.f32 %v1852, %v1844
        %v1854 = vadd.f32 %v1853, 1e-05
        %v1855 = vrsqrt.pop %v1854
        %v1856 = vmul.f32 %v1855, %v1854
        %v1857 = vmul.f32 %v1856, %v1855
        %v1858 = vmul.f32 0.5, %v1857
        %v1859 = vsub.f32 1.5, %v1858
        %v1860 = vmul.f32 %v1855, %v1859
        %vm1861 = vweird.f32 %v1854
        %vm1862 = vweird.f32 %v1855
        %vm1863 = vmor %vm1861, %vm1862
        %v1864 = vsel %vm1863, %v1855, %v1860
        %v1865 = vmul.f32 %v1846, %v1864
        %v1866 = vmul.f32 %v1847, %v1864
        %v1868 = vperm.slane %v1833, 0
        %v1869 = vperm.slane %v1833, 1
        %v1872 = vmul.f32 %v1865, %v1868
        %v1873 = vmul.f32 %v1866, %v1869
        %v1875 = vperm.slane %v1834, 0
        %v1876 = vperm.slane %v1834, 1
        %v1879 = vadd.f32 %v1872, %v1875
        %v1880 = vadd.f32 %v1873, %v1876
        %v1881 = vpack.c.bf16 %v1879, %v1879
        %v1882 = vpack.c.bf16 %v1880, %v1880
        %v1883 = vld [vmem:[#allocation11] sm:$0xff]
        %v1884 = vld [vmem:[#allocation11 + $0x8] sm:$0xff]
        %v1885 = vld [vmem:[#allocation11 + $0x10] sm:$0xff]
        %v1886 = vld [vmem:[#allocation11 + $0x18] sm:$0xff]
        %v1887 = vld [vmem:[#allocation11 + $0x20] sm:$0xff]
        %v1888 = vld [vmem:[#allocation11 + $0x28] sm:$0xff]
        %v1889 = vld [vmem:[#allocation11 + $0x30] sm:$0xff]
        %v1890 = vld [vmem:[#allocation11 + $0x38] sm:$0xff]
        %v1891 = vld [vmem:[#allocation11 + $0x40] sm:$0xff]
        %v1892 = vld [vmem:[#allocation11 + $0x48] sm:$0xff]
        %v1893 = vld [vmem:[#allocation11 + $0x50] sm:$0xff]
        %v1894 = vld [vmem:[#allocation11 + $0x58] sm:$0xff]
        %v1895 = vld [vmem:[#allocation11 + $0x60] sm:$0xff]
        %v1896 = vld [vmem:[#allocation11 + $0x68] sm:$0xff]
        %v1897 = vld [vmem:[#allocation11 + $0x70] sm:$0xff]
        %v1898 = vld [vmem:[#allocation11 + $0x78] sm:$0xff]
        %v1899 = vld [vmem:[#allocation11 + $0x80] sm:$0xff]
        %v1900 = vld [vmem:[#allocation11 + $0x88] sm:$0xff]
        %v1901 = vld [vmem:[#allocation11 + $0x90] sm:$0xff]
        %v1902 = vld [vmem:[#allocation11 + $0x98] sm:$0xff]
        %v1903 = vld [vmem:[#allocation11 + $0xa0] sm:$0xff]
        %v1904 = vld [vmem:[#allocation11 + $0xa8] sm:$0xff]
        %v1905 = vld [vmem:[#allocation11 + $0xb0] sm:$0xff]
        %v1906 = vld [vmem:[#allocation11 + $0xb8] sm:$0xff]
        %v1907 = vld [vmem:[#allocation11 + $0xc0] sm:$0xff]
        %v1908 = vld [vmem:[#allocation11 + $0xc8] sm:$0xff]
        %v1909 = vld [vmem:[#allocation11 + $0xd0] sm:$0xff]
        %v1910 = vld [vmem:[#allocation11 + $0xd8] sm:$0xff]
        %v1911 = vld [vmem:[#allocation11 + $0xe0] sm:$0xff]
        %v1912 = vld [vmem:[#allocation11 + $0xe8] sm:$0xff]
        %v1913 = vld [vmem:[#allocation11 + $0xf0] sm:$0xff]
        %v1914 = vld [vmem:[#allocation11 + $0xf8] sm:$0xff]
        %v1915 = vld [vmem:[#allocation11 + $0x100] sm:$0xff]
        %v1916 = vld [vmem:[#allocation11 + $0x108] sm:$0xff]
        %v1917 = vld [vmem:[#allocation11 + $0x110] sm:$0xff]
        %v1918 = vld [vmem:[#allocation11 + $0x118] sm:$0xff]
        %v1919 = vld [vmem:[#allocation11 + $0x120] sm:$0xff]
        %v1920 = vld [vmem:[#allocation11 + $0x128] sm:$0xff]
        %v1921 = vld [vmem:[#allocation11 + $0x130] sm:$0xff]
        %v1922 = vld [vmem:[#allocation11 + $0x138] sm:$0xff]
        %v1923 = vld [vmem:[#allocation11 + $0x140] sm:$0xff]
        %v1924 = vld [vmem:[#allocation11 + $0x148] sm:$0xff]
        %v1925 = vld [vmem:[#allocation11 + $0x150] sm:$0xff]
        %v1926 = vld [vmem:[#allocation11 + $0x158] sm:$0xff]
        %v1927 = vld [vmem:[#allocation11 + $0x160] sm:$0xff]
        %v1928 = vld [vmem:[#allocation11 + $0x168] sm:$0xff]
        %v1929 = vld [vmem:[#allocation11 + $0x170] sm:$0xff]
        %v1930 = vld [vmem:[#allocation11 + $0x178] sm:$0xff]
        %v1931 = vld [vmem:[#allocation11 + $0x180] sm:$0xff]
        %v1932 = vld [vmem:[#allocation11 + $0x188] sm:$0xff]
        %v1933 = vld [vmem:[#allocation11 + $0x190] sm:$0xff]
        %v1934 = vld [vmem:[#allocation11 + $0x198] sm:$0xff]
        %v1935 = vld [vmem:[#allocation11 + $0x1a0] sm:$0xff]
        %v1936 = vld [vmem:[#allocation11 + $0x1a8] sm:$0xff]
        %v1937 = vld [vmem:[#allocation11 + $0x1b0] sm:$0xff]
        %v1938 = vld [vmem:[#allocation11 + $0x1b8] sm:$0xff]
        %v1939 = vld [vmem:[#allocation11 + $0x1c0] sm:$0xff]
        %v1940 = vld [vmem:[#allocation11 + $0x1c8] sm:$0xff]
        %v1941 = vld [vmem:[#allocation11 + $0x1d0] sm:$0xff]
        %v1942 = vld [vmem:[#allocation11 + $0x1d8] sm:$0xff]
        %v1943 = vld [vmem:[#allocation11 + $0x1e0] sm:$0xff]
        %v1944 = vld [vmem:[#allocation11 + $0x1e8] sm:$0xff]
        %v1945 = vld [vmem:[#allocation11 + $0x1f0] sm:$0xff]
        %v1946 = vld [vmem:[#allocation11 + $0x1f8] sm:$0xff]
        %v1947 = vld [vmem:[#allocation11 + $0x200] sm:$0xff]
        %v1948 = vld [vmem:[#allocation11 + $0x208] sm:$0xff]
        %v1949 = vld [vmem:[#allocation11 + $0x210] sm:$0xff]
        %v1950 = vld [vmem:[#allocation11 + $0x218] sm:$0xff]
        %v1951 = vld [vmem:[#allocation11 + $0x220] sm:$0xff]
        %v1952 = vld [vmem:[#allocation11 + $0x228] sm:$0xff]
        %v1953 = vld [vmem:[#allocation11 + $0x230] sm:$0xff]
        %v1954 = vld [vmem:[#allocation11 + $0x238] sm:$0xff]
        %v1955 = vld [vmem:[#allocation11 + $0x240] sm:$0xff]
        %v1956 = vld [vmem:[#allocation11 + $0x248] sm:$0xff]
        %v1957 = vld [vmem:[#allocation11 + $0x250] sm:$0xff]
        %v1958 = vld [vmem:[#allocation11 + $0x258] sm:$0xff]
        %v1959 = vld [vmem:[#allocation11 + $0x260] sm:$0xff]
        %v1960 = vld [vmem:[#allocation11 + $0x268] sm:$0xff]
        %v1961 = vld [vmem:[#allocation11 + $0x270] sm:$0xff]
        %v1962 = vld [vmem:[#allocation11 + $0x278] sm:$0xff]
        %v1963 = vld [vmem:[#allocation11 + $0x280] sm:$0xff]
        %v1964 = vld [vmem:[#allocation11 + $0x288] sm:$0xff]
        %v1965 = vld [vmem:[#allocation11 + $0x290] sm:$0xff]
        %v1966 = vld [vmem:[#allocation11 + $0x298] sm:$0xff]
        %v1967 = vld [vmem:[#allocation11 + $0x2a0] sm:$0xff]
        %v1968 = vld [vmem:[#allocation11 + $0x2a8] sm:$0xff]
        %v1969 = vld [vmem:[#allocation11 + $0x2b0] sm:$0xff]
        %v1970 = vld [vmem:[#allocation11 + $0x2b8] sm:$0xff]
        %v1971 = vld [vmem:[#allocation11 + $0x2c0] sm:$0xff]
        %v1972 = vld [vmem:[#allocation11 + $0x2c8] sm:$0xff]
        %v1973 = vld [vmem:[#allocation11 + $0x2d0] sm:$0xff]
        %v1974 = vld [vmem:[#allocation11 + $0x2d8] sm:$0xff]
        %v1975 = vld [vmem:[#allocation11 + $0x2e0] sm:$0xff]
        %v1976 = vld [vmem:[#allocation11 + $0x2e8] sm:$0xff]
        %v1977 = vld [vmem:[#allocation11 + $0x2f0] sm:$0xff]
        %v1978 = vld [vmem:[#allocation11 + $0x2f8] sm:$0xff]
        %v1979 = vld [vmem:[#allocation11 + $0x300] sm:$0xff]
        %v1980 = vld [vmem:[#allocation11 + $0x308] sm:$0xff]
        %v1981 = vld [vmem:[#allocation11 + $0x310] sm:$0xff]
        %v1982 = vld [vmem:[#allocation11 + $0x318] sm:$0xff]
        %v1983 = vld [vmem:[#allocation11 + $0x320] sm:$0xff]
        %v1984 = vld [vmem:[#allocation11 + $0x328] sm:$0xff]
        %v1985 = vld [vmem:[#allocation11 + $0x330] sm:$0xff]
        %v1986 = vld [vmem:[#allocation11 + $0x338] sm:$0xff]
        %v1987 = vld [vmem:[#allocation11 + $0x340] sm:$0xff]
        %v1988 = vld [vmem:[#allocation11 + $0x348] sm:$0xff]
        %v1989 = vld [vmem:[#allocation11 + $0x350] sm:$0xff]
        %v1990 = vld [vmem:[#allocation11 + $0x358] sm:$0xff]
        %v1991 = vld [vmem:[#allocation11 + $0x360] sm:$0xff]
        %v1992 = vld [vmem:[#allocation11 + $0x368] sm:$0xff]
        %v1993 = vld [vmem:[#allocation11 + $0x370] sm:$0xff]
        %v1994 = vld [vmem:[#allocation11 + $0x378] sm:$0xff]
        %v1995 = vld [vmem:[#allocation11 + $0x380] sm:$0xff]
        %v1996 = vld [vmem:[#allocation11 + $0x388] sm:$0xff]
        %v1997 = vld [vmem:[#allocation11 + $0x390] sm:$0xff]
        %v1998 = vld [vmem:[#allocation11 + $0x398] sm:$0xff]
        %v1999 = vld [vmem:[#allocation11 + $0x3a0] sm:$0xff]
        %v2000 = vld [vmem:[#allocation11 + $0x3a8] sm:$0xff]
        %v2001 = vld [vmem:[#allocation11 + $0x3b0] sm:$0xff]
        %v2002 = vld [vmem:[#allocation11 + $0x3b8] sm:$0xff]
        %v2003 = vld [vmem:[#allocation11 + $0x3c0] sm:$0xff]
        %v2004 = vld [vmem:[#allocation11 + $0x3c8] sm:$0xff]
        %v2005 = vld [vmem:[#allocation11 + $0x3d0] sm:$0xff]
        %v2006 = vld [vmem:[#allocation11 + $0x3d8] sm:$0xff]
        %v2007 = vld [vmem:[#allocation11 + $0x3e0] sm:$0xff]
        %v2008 = vld [vmem:[#allocation11 + $0x3e8] sm:$0xff]
        %v2009 = vld [vmem:[#allocation11 + $0x3f0] sm:$0xff]
        %v2010 = vld [vmem:[#allocation11 + $0x3f8] sm:$0xff]
        %v2011 = vld [vmem:[#allocation13] sm:$0xff]
        %v2013 = vperm.slane %v2011, 0
        %v2014 = vperm.slane %v2011, 1
        %v2015 = vperm.slane %v2011, 2
        %v2016 = vperm.slane %v2011, 3
        %v2017 = vperm.slane %v2011, 4
        %v2018 = vperm.slane %v2011, 5
        %v2019 = vperm.slane %v2011, 6
        %v2020 = vperm.slane %v2011, 7
        %v2157 = vunpack.c.l.b16 %v1883
        %v2158 = vunpack.c.h.b16 %v1883
        %v2159 = vunpack.c.l.b16 %v1884
        %v2160 = vunpack.c.h.b16 %v1884
        %v2161 = vunpack.c.l.b16 %v1885
        %v2162 = vunpack.c.h.b16 %v1885
        %v2163 = vunpack.c.l.b16 %v1886
        %v2164 = vunpack.c.h.b16 %v1886
        %v2165 = vunpack.c.l.b16 %v1887
        %v2166 = vunpack.c.h.b16 %v1887
        %v2167 = vunpack.c.l.b16 %v1888
        %v2168 = vunpack.c.h.b16 %v1888
        %v2169 = vunpack.c.l.b16 %v1889
        %v2170 = vunpack.c.h.b16 %v1889
        %v2171 = vunpack.c.l.b16 %v1890
        %v2172 = vunpack.c.h.b16 %v1890
        %v2173 = vunpack.c.l.b16 %v1891
        %v2174 = vunpack.c.h.b16 %v1891
        %v2175 = vunpack.c.l.b16 %v1892
        %v2176 = vunpack.c.h.b16 %v1892
        %v2177 = vunpack.c.l.b16 %v1893
        %v2178 = vunpack.c.h.b16 %v1893
        %v2179 = vunpack.c.l.b16 %v1894
        %v2180 = vunpack.c.h.b16 %v1894
        %v2181 = vunpack.c.l.b16 %v1895
        %v2182 = vunpack.c.h.b16 %v1895
        %v2183 = vunpack.c.l.b16 %v1896
        %v2184 = vunpack.c.h.b16 %v1896
        %v2185 = vunpack.c.l.b16 %v1897
        %v2186 = vunpack.c.h.b16 %v1897
        %v2187 = vunpack.c.l.b16 %v1898
        %v2188 = vunpack.c.h.b16 %v1898
        %v2189 = vunpack.c.l.b16 %v1899
        %v2190 = vunpack.c.h.b16 %v1899
        %v2191 = vunpack.c.l.b16 %v1900
        %v2192 = vunpack.c.h.b16 %v1900
        %v2193 = vunpack.c.l.b16 %v1901
        %v2194 = vunpack.c.h.b16 %v1901
        %v2195 = vunpack.c.l.b16 %v1902
        %v2196 = vunpack.c.h.b16 %v1902
        %v2197 = vunpack.c.l.b16 %v1903
        %v2198 = vunpack.c.h.b16 %v1903
        %v2199 = vunpack.c.l.b16 %v1904
        %v2200 = vunpack.c.h.b16 %v1904
        %v2201 = vunpack.c.l.b16 %v1905
        %v2202 = vunpack.c.h.b16 %v1905
        %v2203 = vunpack.c.l.b16 %v1906
        %v2204 = vunpack.c.h.b16 %v1906
        %v2205 = vunpack.c.l.b16 %v1907
        %v2206 = vunpack.c.h.b16 %v1907
        %v2207 = vunpack.c.l.b16 %v1908
        %v2208 = vunpack.c.h.b16 %v1908
        %v2209 = vunpack.c.l.b16 %v1909
        %v2210 = vunpack.c.h.b16 %v1909
        %v2211 = vunpack.c.l.b16 %v1910
        %v2212 = vunpack.c.h.b16 %v1910
        %v2213 = vunpack.c.l.b16 %v1911
        %v2214 = vunpack.c.h.b16 %v1911
        %v2215 = vunpack.c.l.b16 %v1912
        %v2216 = vunpack.c.h.b16 %v1912
        %v2217 = vunpack.c.l.b16 %v1913
        %v2218 = vunpack.c.h.b16 %v1913
        %v2219 = vunpack.c.l.b16 %v1914
        %v2220 = vunpack.c.h.b16 %v1914
        %v2221 = vunpack.c.l.b16 %v1915
        %v2222 = vunpack.c.h.b16 %v1915
        %v2223 = vunpack.c.l.b16 %v1916
        %v2224 = vunpack.c.h.b16 %v1916
        %v2225 = vunpack.c.l.b16 %v1917
        %v2226 = vunpack.c.h.b16 %v1917
        %v2227 = vunpack.c.l.b16 %v1918
        %v2228 = vunpack.c.h.b16 %v1918
        %v2229 = vunpack.c.l.b16 %v1919
        %v2230 = vunpack.c.h.b16 %v1919
        %v2231 = vunpack.c.l.b16 %v1920
        %v2232 = vunpack.c.h.b16 %v1920
        %v2233 = vunpack.c.l.b16 %v1921
        %v2234 = vunpack.c.h.b16 %v1921
        %v2235 = vunpack.c.l.b16 %v1922
        %v2236 = vunpack.c.h.b16 %v1922
        %v2237 = vunpack.c.l.b16 %v1923
        %v2238 = vunpack.c.h.b16 %v1923
        %v2239 = vunpack.c.l.b16 %v1924
        %v2240 = vunpack.c.h.b16 %v1924
        %v2241 = vunpack.c.l.b16 %v1925
        %v2242 = vunpack.c.h.b16 %v1925
        %v2243 = vunpack.c.l.b16 %v1926
        %v2244 = vunpack.c.h.b16 %v1926
        %v2245 = vunpack.c.l.b16 %v1927
        %v2246 = vunpack.c.h.b16 %v1927
        %v2247 = vunpack.c.l.b16 %v1928
        %v2248 = vunpack.c.h.b16 %v1928
        %v2249 = vunpack.c.l.b16 %v1929
        %v2250 = vunpack.c.h.b16 %v1929
        %v2251 = vunpack.c.l.b16 %v1930
        %v2252 = vunpack.c.h.b16 %v1930
        %v2253 = vunpack.c.l.b16 %v1931
        %v2254 = vunpack.c.h.b16 %v1931
        %v2255 = vunpack.c.l.b16 %v1932
        %v2256 = vunpack.c.h.b16 %v1932
        %v2257 = vunpack.c.l.b16 %v1933
        %v2258 = vunpack.c.h.b16 %v1933
        %v2259 = vunpack.c.l.b16 %v1934
        %v2260 = vunpack.c.h.b16 %v1934
        %v2261 = vunpack.c.l.b16 %v1935
        %v2262 = vunpack.c.h.b16 %v1935
        %v2263 = vunpack.c.l.b16 %v1936
        %v2264 = vunpack.c.h.b16 %v1936
        %v2265 = vunpack.c.l.b16 %v1937
        %v2266 = vunpack.c.h.b16 %v1937
        %v2267 = vunpack.c.l.b16 %v1938
        %v2268 = vunpack.c.h.b16 %v1938
        %v2269 = vunpack.c.l.b16 %v1939
        %v2270 = vunpack.c.h.b16 %v1939
        %v2271 = vunpack.c.l.b16 %v1940
        %v2272 = vunpack.c.h.b16 %v1940
        %v2273 = vunpack.c.l.b16 %v1941
        %v2274 = vunpack.c.h.b16 %v1941
        %v2275 = vunpack.c.l.b16 %v1942
        %v2276 = vunpack.c.h.b16 %v1942
        %v2277 = vunpack.c.l.b16 %v1943
        %v2278 = vunpack.c.h.b16 %v1943
        %v2279 = vunpack.c.l.b16 %v1944
        %v2280 = vunpack.c.h.b16 %v1944
        %v2281 = vunpack.c.l.b16 %v1945
        %v2282 = vunpack.c.h.b16 %v1945
        %v2283 = vunpack.c.l.b16 %v1946
        %v2284 = vunpack.c.h.b16 %v1946
        %v2285 = vunpack.c.l.b16 %v1947
        %v2286 = vunpack.c.h.b16 %v1947
        %v2287 = vunpack.c.l.b16 %v1948
        %v2288 = vunpack.c.h.b16 %v1948
        %v2289 = vunpack.c.l.b16 %v1949
        %v2290 = vunpack.c.h.b16 %v1949
        %v2291 = vunpack.c.l.b16 %v1950
        %v2292 = vunpack.c.h.b16 %v1950
        %v2293 = vunpack.c.l.b16 %v1951
        %v2294 = vunpack.c.h.b16 %v1951
        %v2295 = vunpack.c.l.b16 %v1952
        %v2296 = vunpack.c.h.b16 %v1952
        %v2297 = vunpack.c.l.b16 %v1953
        %v2298 = vunpack.c.h.b16 %v1953
        %v2299 = vunpack.c.l.b16 %v1954
        %v2300 = vunpack.c.h.b16 %v1954
        %v2301 = vunpack.c.l.b16 %v1955
        %v2302 = vunpack.c.h.b16 %v1955
        %v2303 = vunpack.c.l.b16 %v1956
        %v2304 = vunpack.c.h.b16 %v1956
        %v2305 = vunpack.c.l.b16 %v1957
        %v2306 = vunpack.c.h.b16 %v1957
        %v2307 = vunpack.c.l.b16 %v1958
        %v2308 = vunpack.c.h.b16 %v1958
        %v2309 = vunpack.c.l.b16 %v1959
        %v2310 = vunpack.c.h.b16 %v1959
        %v2311 = vunpack.c.l.b16 %v1960
        %v2312 = vunpack.c.h.b16 %v1960
        %v2313 = vunpack.c.l.b16 %v1961
        %v2314 = vunpack.c.h.b16 %v1961
        %v2315 = vunpack.c.l.b16 %v1962
        %v2316 = vunpack.c.h.b16 %v1962
        %v2317 = vunpack.c.l.b16 %v1963
        %v2318 = vunpack.c.h.b16 %v1963
        %v2319 = vunpack.c.l.b16 %v1964
        %v2320 = vunpack.c.h.b16 %v1964
        %v2321 = vunpack.c.l.b16 %v1965
        %v2322 = vunpack.c.h.b16 %v1965
        %v2323 = vunpack.c.l.b16 %v1966
        %v2324 = vunpack.c.h.b16 %v1966
        %v2325 = vunpack.c.l.b16 %v1967
        %v2326 = vunpack.c.h.b16 %v1967
        %v2327 = vunpack.c.l.b16 %v1968
        %v2328 = vunpack.c.h.b16 %v1968
        %v2329 = vunpack.c.l.b16 %v1969
        %v2330 = vunpack.c.h.b16 %v1969
        %v2331 = vunpack.c.l.b16 %v1970
        %v2332 = vunpack.c.h.b16 %v1970
        %v2333 = vunpack.c.l.b16 %v1971
        %v2334 = vunpack.c.h.b16 %v1971
        %v2335 = vunpack.c.l.b16 %v1972
        %v2336 = vunpack.c.h.b16 %v1972
        %v2337 = vunpack.c.l.b16 %v1973
        %v2338 = vunpack.c.h.b16 %v1973
        %v2339 = vunpack.c.l.b16 %v1974
        %v2340 = vunpack.c.h.b16 %v1974
        %v2341 = vunpack.c.l.b16 %v1975
        %v2342 = vunpack.c.h.b16 %v1975
        %v2343 = vunpack.c.l.b16 %v1976
        %v2344 = vunpack.c.h.b16 %v1976
        %v2345 = vunpack.c.l.b16 %v1977
        %v2346 = vunpack.c.h.b16 %v1977
        %v2347 = vunpack.c.l.b16 %v1978
        %v2348 = vunpack.c.h.b16 %v1978
        %v2349 = vunpack.c.l.b16 %v1979
        %v2350 = vunpack.c.h.b16 %v1979
        %v2351 = vunpack.c.l.b16 %v1980
        %v2352 = vunpack.c.h.b16 %v1980
        %v2353 = vunpack.c.l.b16 %v1981
        %v2354 = vunpack.c.h.b16 %v1981
        %v2355 = vunpack.c.l.b16 %v1982
        %v2356 = vunpack.c.h.b16 %v1982
        %v2357 = vunpack.c.l.b16 %v1983
        %v2358 = vunpack.c.h.b16 %v1983
        %v2359 = vunpack.c.l.b16 %v1984
        %v2360 = vunpack.c.h.b16 %v1984
        %v2361 = vunpack.c.l.b16 %v1985
        %v2362 = vunpack.c.h.b16 %v1985
        %v2363 = vunpack.c.l.b16 %v1986
        %v2364 = vunpack.c.h.b16 %v1986
        %v2365 = vunpack.c.l.b16 %v1987
        %v2366 = vunpack.c.h.b16 %v1987
        %v2367 = vunpack.c.l.b16 %v1988
        %v2368 = vunpack.c.h.b16 %v1988
        %v2369 = vunpack.c.l.b16 %v1989
        %v2370 = vunpack.c.h.b16 %v1989
        %v2371 = vunpack.c.l.b16 %v1990
        %v2372 = vunpack.c.h.b16 %v1990
        %v2373 = vunpack.c.l.b16 %v1991
        %v2374 = vunpack.c.h.b16 %v1991
        %v2375 = vunpack.c.l.b16 %v1992
        %v2376 = vunpack.c.h.b16 %v1992
        %v2377 = vunpack.c.l.b16 %v1993
        %v2378 = vunpack.c.h.b16 %v1993
        %v2379 = vunpack.c.l.b16 %v1994
        %v2380 = vunpack.c.h.b16 %v1994
        %v2381 = vunpack.c.l.b16 %v1995
        %v2382 = vunpack.c.h.b16 %v1995
        %v2383 = vunpack.c.l.b16 %v1996
        %v2384 = vunpack.c.h.b16 %v1996
        %v2385 = vunpack.c.l.b16 %v1997
        %v2386 = vunpack.c.h.b16 %v1997
        %v2387 = vunpack.c.l.b16 %v1998
        %v2388 = vunpack.c.h.b16 %v1998
        %v2389 = vunpack.c.l.b16 %v1999
        %v2390 = vunpack.c.h.b16 %v1999
        %v2391 = vunpack.c.l.b16 %v2000
        %v2392 = vunpack.c.h.b16 %v2000
        %v2393 = vunpack.c.l.b16 %v2001
        %v2394 = vunpack.c.h.b16 %v2001
        %v2395 = vunpack.c.l.b16 %v2002
        %v2396 = vunpack.c.h.b16 %v2002
        %v2397 = vunpack.c.l.b16 %v2003
        %v2398 = vunpack.c.h.b16 %v2003
        %v2399 = vunpack.c.l.b16 %v2004
        %v2400 = vunpack.c.h.b16 %v2004
        %v2401 = vunpack.c.l.b16 %v2005
        %v2402 = vunpack.c.h.b16 %v2005
        %v2403 = vunpack.c.l.b16 %v2006
        %v2404 = vunpack.c.h.b16 %v2006
        %v2405 = vunpack.c.l.b16 %v2007
        %v2406 = vunpack.c.h.b16 %v2007
        %v2407 = vunpack.c.l.b16 %v2008
        %v2408 = vunpack.c.h.b16 %v2008
        %v2409 = vunpack.c.l.b16 %v2009
        %v2410 = vunpack.c.h.b16 %v2009
        %v2411 = vunpack.c.l.b16 %v2010
        %v2412 = vunpack.c.h.b16 %v2010
        %v2413 = vpack.c.b16 %v2165, %v2157
        %v2414 = vpack.c.b16 %v2166, %v2158
        %v2415 = vpack.c.b16 %v2167, %v2159
        %v2416 = vpack.c.b16 %v2168, %v2160
        %v2417 = vpack.c.b16 %v2169, %v2161
        %v2418 = vpack.c.b16 %v2170, %v2162
        %v2419 = vpack.c.b16 %v2171, %v2163
        %v2420 = vpack.c.b16 %v2172, %v2164
        %v2421 = vpack.c.b16 %v2181, %v2173
        %v2422 = vpack.c.b16 %v2182, %v2174
        %v2423 = vpack.c.b16 %v2183, %v2175
        %v2424 = vpack.c.b16 %v2184, %v2176
        %v2425 = vpack.c.b16 %v2185, %v2177
        %v2426 = vpack.c.b16 %v2186, %v2178
        %v2427 = vpack.c.b16 %v2187, %v2179
        %v2428 = vpack.c.b16 %v2188, %v2180
        %v2429 = vpack.c.b16 %v2197, %v2189
        %v2430 = vpack.c.b16 %v2198, %v2190
        %v2431 = vpack.c.b16 %v2199, %v2191
        %v2432 = vpack.c.b16 %v2200, %v2192
        %v2433 = vpack.c.b16 %v2201, %v2193
        %v2434 = vpack.c.b16 %v2202, %v2194
        %v2435 = vpack.c.b16 %v2203, %v2195
        %v2436 = vpack.c.b16 %v2204, %v2196
        %v2437 = vpack.c.b16 %v2213, %v2205
        %v2438 = vpack.c.b16 %v2214, %v2206
        %v2439 = vpack.c.b16 %v2215, %v2207
        %v2440 = vpack.c.b16 %v2216, %v2208
        %v2441 = vpack.c.b16 %v2217, %v2209
        %v2442 = vpack.c.b16 %v2218, %v2210
        %v2443 = vpack.c.b16 %v2219, %v2211
        %v2444 = vpack.c.b16 %v2220, %v2212
        %v2445 = vpack.c.b16 %v2229, %v2221
        %v2446 = vpack.c.b16 %v2230, %v2222
        %v2447 = vpack.c.b16 %v2231, %v2223
        %v2448 = vpack.c.b16 %v2232, %v2224
        %v2449 = vpack.c.b16 %v2233, %v2225
        %v2450 = vpack.c.b16 %v2234, %v2226
        %v2451 = vpack.c.b16 %v2235, %v2227
        %v2452 = vpack.c.b16 %v2236, %v2228
        %v2453 = vpack.c.b16 %v2245, %v2237
        %v2454 = vpack.c.b16 %v2246, %v2238
        %v2455 = vpack.c.b16 %v2247, %v2239
        %v2456 = vpack.c.b16 %v2248, %v2240
        %v2457 = vpack.c.b16 %v2249, %v2241
        %v2458 = vpack.c.b16 %v2250, %v2242
        %v2459 = vpack.c.b16 %v2251, %v2243
        %v2460 = vpack.c.b16 %v2252, %v2244
        %v2461 = vpack.c.b16 %v2261, %v2253
        %v2462 = vpack.c.b16 %v2262, %v2254
        %v2463 = vpack.c.b16 %v2263, %v2255
        %v2464 = vpack.c.b16 %v2264, %v2256
        %v2465 = vpack.c.b16 %v2265, %v2257
        %v2466 = vpack.c.b16 %v2266, %v2258
        %v2467 = vpack.c.b16 %v2267, %v2259
        %v2468 = vpack.c.b16 %v2268, %v2260
        %v2469 = vpack.c.b16 %v2277, %v2269
        %v2470 = vpack.c.b16 %v2278, %v2270
        %v2471 = vpack.c.b16 %v2279, %v2271
        %v2472 = vpack.c.b16 %v2280, %v2272
        %v2473 = vpack.c.b16 %v2281, %v2273
        %v2474 = vpack.c.b16 %v2282, %v2274
        %v2475 = vpack.c.b16 %v2283, %v2275
        %v2476 = vpack.c.b16 %v2284, %v2276
        %v2477 = vpack.c.b16 %v2293, %v2285
        %v2478 = vpack.c.b16 %v2294, %v2286
        %v2479 = vpack.c.b16 %v2295, %v2287
        %v2480 = vpack.c.b16 %v2296, %v2288
        %v2481 = vpack.c.b16 %v2297, %v2289
        %v2482 = vpack.c.b16 %v2298, %v2290
        %v2483 = vpack.c.b16 %v2299, %v2291
        %v2484 = vpack.c.b16 %v2300, %v2292
        %v2485 = vpack.c.b16 %v2309, %v2301
        %v2486 = vpack.c.b16 %v2310, %v2302
        %v2487 = vpack.c.b16 %v2311, %v2303
        %v2488 = vpack.c.b16 %v2312, %v2304
        %v2489 = vpack.c.b16 %v2313, %v2305
        %v2490 = vpack.c.b16 %v2314, %v2306
        %v2491 = vpack.c.b16 %v2315, %v2307
        %v2492 = vpack.c.b16 %v2316, %v2308
        %v2493 = vpack.c.b16 %v2325, %v2317
        %v2494 = vpack.c.b16 %v2326, %v2318
        %v2495 = vpack.c.b16 %v2327, %v2319
        %v2496 = vpack.c.b16 %v2328, %v2320
        %v2497 = vpack.c.b16 %v2329, %v2321
        %v2498 = vpack.c.b16 %v2330, %v2322
        %v2499 = vpack.c.b16 %v2331, %v2323
        %v2500 = vpack.c.b16 %v2332, %v2324
        %v2501 = vpack.c.b16 %v2341, %v2333
        %v2502 = vpack.c.b16 %v2342, %v2334
        %v2503 = vpack.c.b16 %v2343, %v2335
        %v2504 = vpack.c.b16 %v2344, %v2336
        %v2505 = vpack.c.b16 %v2345, %v2337
        %v2506 = vpack.c.b16 %v2346, %v2338
        %v2507 = vpack.c.b16 %v2347, %v2339
        %v2508 = vpack.c.b16 %v2348, %v2340
        %v2509 = vpack.c.b16 %v2357, %v2349
        %v2510 = vpack.c.b16 %v2358, %v2350
        %v2511 = vpack.c.b16 %v2359, %v2351
        %v2512 = vpack.c.b16 %v2360, %v2352
        %v2513 = vpack.c.b16 %v2361, %v2353
        %v2514 = vpack.c.b16 %v2362, %v2354
        %v2515 = vpack.c.b16 %v2363, %v2355
        %v2516 = vpack.c.b16 %v2364, %v2356
        %v2517 = vpack.c.b16 %v2373, %v2365
        %v2518 = vpack.c.b16 %v2374, %v2366
        %v2519 = vpack.c.b16 %v2375, %v2367
        %v2520 = vpack.c.b16 %v2376, %v2368
        %v2521 = vpack.c.b16 %v2377, %v2369
        %v2522 = vpack.c.b16 %v2378, %v2370
        %v2523 = vpack.c.b16 %v2379, %v2371
        %v2524 = vpack.c.b16 %v2380, %v2372
        %v2525 = vpack.c.b16 %v2389, %v2381
        %v2526 = vpack.c.b16 %v2390, %v2382
        %v2527 = vpack.c.b16 %v2391, %v2383
        %v2528 = vpack.c.b16 %v2392, %v2384
        %v2529 = vpack.c.b16 %v2393, %v2385
        %v2530 = vpack.c.b16 %v2394, %v2386
        %v2531 = vpack.c.b16 %v2395, %v2387
        %v2532 = vpack.c.b16 %v2396, %v2388
        %v2533 = vpack.c.b16 %v2405, %v2397
        %v2534 = vpack.c.b16 %v2406, %v2398
        %v2535 = vpack.c.b16 %v2407, %v2399
        %v2536 = vpack.c.b16 %v2408, %v2400
        %v2537 = vpack.c.b16 %v2409, %v2401
        %v2538 = vpack.c.b16 %v2410, %v2402
        %v2539 = vpack.c.b16 %v2411, %v2403
        %v2540 = vpack.c.b16 %v2412, %v2404
        %2669 = vmatpush.bf16.msra.mxu0 %v2469
        %2670 = vmatpush.bf16.msra.mxu0 %v2461
        %2671 = vmatpush.bf16.msra.mxu0 %v2453
        %2672 = vmatpush.bf16.msra.mxu0 %v2445
        %2673 = vmatpush.bf16.msra.mxu0 %v2437
        %2674 = vmatpush.bf16.msra.mxu0 %v2429
        %2675 = vmatpush.bf16.msra.mxu0 %v2421
        %2676 = vmatpush.bf16.msra.mxu0 %v2413
        %2677 = vmatmul.bf16.gmra.mxu0 %v1881
        %v2678 = vpop.f32.mrf.mxu0
        %v2679 = vadd.f32 %v2013, %v2678
        %v2680 = vpop.f32.mrf.mxu0
        %2681 = vdwg.mxu0
        %2682 = vmatpush.bf16.msra.mxu0 %v2533
        %2683 = vmatpush.bf16.msra.mxu0 %v2525
        %2684 = vmatpush.bf16.msra.mxu0 %v2517
        %2685 = vmatpush.bf16.msra.mxu0 %v2509
        %2686 = vmatpush.bf16.msra.mxu0 %v2501
        %2687 = vmatpush.bf16.msra.mxu0 %v2493
        %2688 = vmatpush.bf16.msra.mxu0 %v2485
        %2689 = vmatpush.bf16.msra.mxu0 %v2477
        %2690 = vmatmul.bf16.gmra.mxu0 %v1882
        %v2691 = vpop.f32.mrf.mxu0
        %v2692 = vadd.f32 %v2679, %v2691
        %v2693 = vpop.f32.mrf.mxu0
        %2694 = vdwg.mxu0
        %2695 = vmatpush.bf16.msra.mxu0 %v2470
        %2696 = vmatpush.bf16.msra.mxu0 %v2462
        %2697 = vmatpush.bf16.msra.mxu0 %v2454
        %2698 = vmatpush.bf16.msra.mxu0 %v2446
        %2699 = vmatpush.bf16.msra.mxu0 %v2438
        %2700 = vmatpush.bf16.msra.mxu0 %v2430
        %2701 = vmatpush.bf16.msra.mxu0 %v2422
        %2702 = vmatpush.bf16.msra.mxu0 %v2414
        %2703 = vmatmul.bf16.gmra.mxu0 %v1881
        %v2704 = vpop.f32.mrf.mxu0
        %v2705 = vadd.f32 %v2014, %v2704
        %v2706 = vpop.f32.mrf.mxu0
        %2707 = vdwg.mxu0
        %2708 = vmatpush.bf16.msra.mxu0 %v2534
        %2709 = vmatpush.bf16.msra.mxu0 %v2526
        %2710 = vmatpush.bf16.msra.mxu0 %v2518
        %2711 = vmatpush.bf16.msra.mxu0 %v2510
        %2712 = vmatpush.bf16.msra.mxu0 %v2502
        %2713 = vmatpush.bf16.msra.mxu0 %v2494
        %2714 = vmatpush.bf16.msra.mxu0 %v2486
        %2715 = vmatpush.bf16.msra.mxu0 %v2478
        %2716 = vmatmul.bf16.gmra.mxu0 %v1882
        %v2717 = vpop.f32.mrf.mxu0
        %v2718 = vadd.f32 %v2705, %v2717
        %v2719 = vpop.f32.mrf.mxu0
        %2720 = vdwg.mxu0
        %2721 = vmatpush.bf16.msra.mxu0 %v2471
        %2722 = vmatpush.bf16.msra.mxu0 %v2463
        %2723 = vmatpush.bf16.msra.mxu0 %v2455
        %2724 = vmatpush.bf16.msra.mxu0 %v2447
        %2725 = vmatpush.bf16.msra.mxu0 %v2439
        %2726 = vmatpush.bf16.msra.mxu0 %v2431
        %2727 = vmatpush.bf16.msra.mxu0 %v2423
        %2728 = vmatpush.bf16.msra.mxu0 %v2415
        %2729 = vmatmul.bf16.gmra.mxu0 %v1881
        %v2730 = vpop.f32.mrf.mxu0
        %v2731 = vadd.f32 %v2015, %v2730
        %v2732 = vpop.f32.mrf.mxu0
        %2733 = vdwg.mxu0
        %2734 = vmatpush.bf16.msra.mxu0 %v2535
        %2735 = vmatpush.bf16.msra.mxu0 %v2527
        %2736 = vmatpush.bf16.msra.mxu0 %v2519
        %2737 = vmatpush.bf16.msra.mxu0 %v2511
        %2738 = vmatpush.bf16.msra.mxu0 %v2503
        %2739 = vmatpush.bf16.msra.mxu0 %v2495
        %2740 = vmatpush.bf16.msra.mxu0 %v2487
        %2741 = vmatpush.bf16.msra.mxu0 %v2479
        %2742 = vmatmul.bf16.gmra.mxu0 %v1882
        %v2743 = vpop.f32.mrf.mxu0
        %v2744 = vadd.f32 %v2731, %v2743
        %v2745 = vpop.f32.mrf.mxu0
        %2746 = vdwg.mxu0
        %2747 = vmatpush.bf16.msra.mxu0 %v2472
        %2748 = vmatpush.bf16.msra.mxu0 %v2464
        %2749 = vmatpush.bf16.msra.mxu0 %v2456
        %2750 = vmatpush.bf16.msra.mxu0 %v2448
        %2751 = vmatpush.bf16.msra.mxu0 %v2440
        %2752 = vmatpush.bf16.msra.mxu0 %v2432
        %2753 = vmatpush.bf16.msra.mxu0 %v2424
        %2754 = vmatpush.bf16.msra.mxu0 %v2416
        %2755 = vmatmul.bf16.gmra.mxu0 %v1881
        %v2756 = vpop.f32.mrf.mxu0
        %v2757 = vadd.f32 %v2016, %v2756
        %v2758 = vpop.f32.mrf.mxu0
        %2759 = vdwg.mxu0
        %2760 = vmatpush.bf16.msra.mxu0 %v2536
        %2761 = vmatpush.bf16.msra.mxu0 %v2528
        %2762 = vmatpush.bf16.msra.mxu0 %v2520
        %2763 = vmatpush.bf16.msra.mxu0 %v2512
        %2764 = vmatpush.bf16.msra.mxu0 %v2504
        %2765 = vmatpush.bf16.msra.mxu0 %v2496
        %2766 = vmatpush.bf16.msra.mxu0 %v2488
        %2767 = vmatpush.bf16.msra.mxu0 %v2480
        %2768 = vmatmul.bf16.gmra.mxu0 %v1882
        %v2769 = vpop.f32.mrf.mxu0
        %v2770 = vadd.f32 %v2757, %v2769
        %v2771 = vpop.f32.mrf.mxu0
        %2772 = vdwg.mxu0
        %2773 = vmatpush.bf16.msra.mxu0 %v2473
        %2774 = vmatpush.bf16.msra.mxu0 %v2465
        %2775 = vmatpush.bf16.msra.mxu0 %v2457
        %2776 = vmatpush.bf16.msra.mxu0 %v2449
        %2777 = vmatpush.bf16.msra.mxu0 %v2441
        %2778 = vmatpush.bf16.msra.mxu0 %v2433
        %2779 = vmatpush.bf16.msra.mxu0 %v2425
        %2780 = vmatpush.bf16.msra.mxu0 %v2417
        %2781 = vmatmul.bf16.gmra.mxu0 %v1881
        %v2782 = vpop.f32.mrf.mxu0
        %v2783 = vadd.f32 %v2017, %v2782
        %v2784 = vpop.f32.mrf.mxu0
        %2785 = vdwg.mxu0
        %2786 = vmatpush.bf16.msra.mxu0 %v2537
        %2787 = vmatpush.bf16.msra.mxu0 %v2529
        %2788 = vmatpush.bf16.msra.mxu0 %v2521
        %2789 = vmatpush.bf16.msra.mxu0 %v2513
        %2790 = vmatpush.bf16.msra.mxu0 %v2505
        %2791 = vmatpush.bf16.msra.mxu0 %v2497
        %2792 = vmatpush.bf16.msra.mxu0 %v2489
        %2793 = vmatpush.bf16.msra.mxu0 %v2481
        %2794 = vmatmul.bf16.gmra.mxu0 %v1882
        %v2795 = vpop.f32.mrf.mxu0
        %v2796 = vadd.f32 %v2783, %v2795
        %v2797 = vpop.f32.mrf.mxu0
        %2798 = vdwg.mxu0
        %2799 = vmatpush.bf16.msra.mxu0 %v2474
        %2800 = vmatpush.bf16.msra.mxu0 %v2466
        %2801 = vmatpush.bf16.msra.mxu0 %v2458
        %2802 = vmatpush.bf16.msra.mxu0 %v2450
        %2803 = vmatpush.bf16.msra.mxu0 %v2442
        %2804 = vmatpush.bf16.msra.mxu0 %v2434
        %2805 = vmatpush.bf16.msra.mxu0 %v2426
        %2806 = vmatpush.bf16.msra.mxu0 %v2418
        %2807 = vmatmul.bf16.gmra.mxu0 %v1881
        %v2808 = vpop.f32.mrf.mxu0
        %v2809 = vadd.f32 %v2018, %v2808
        %v2810 = vpop.f32.mrf.mxu0
        %2811 = vdwg.mxu0
        %2812 = vmatpush.bf16.msra.mxu0 %v2538
        %2813 = vmatpush.bf16.msra.mxu0 %v2530
        %2814 = vmatpush.bf16.msra.mxu0 %v2522
        %2815 = vmatpush.bf16.msra.mxu0 %v2514
        %2816 = vmatpush.bf16.msra.mxu0 %v2506
        %2817 = vmatpush.bf16.msra.mxu0 %v2498
        %2818 = vmatpush.bf16.msra.mxu0 %v2490
        %2819 = vmatpush.bf16.msra.mxu0 %v2482
        %2820 = vmatmul.bf16.gmra.mxu0 %v1882
        %v2821 = vpop.f32.mrf.mxu0
        %v2822 = vadd.f32 %v2809, %v2821
        %v2823 = vpop.f32.mrf.mxu0
        %2824 = vdwg.mxu0
        %2825 = vmatpush.bf16.msra.mxu0 %v2475
        %2826 = vmatpush.bf16.msra.mxu0 %v2467
        %2827 = vmatpush.bf16.msra.mxu0 %v2459
        %2828 = vmatpush.bf16.msra.mxu0 %v2451
        %2829 = vmatpush.bf16.msra.mxu0 %v2443
        %2830 = vmatpush.bf16.msra.mxu0 %v2435
        %2831 = vmatpush.bf16.msra.mxu0 %v2427
        %2832 = vmatpush.bf16.msra.mxu0 %v2419
        %2833 = vmatmul.bf16.gmra.mxu0 %v1881
        %v2834 = vpop.f32.mrf.mxu0
        %v2835 = vadd.f32 %v2019, %v2834
        %v2836 = vpop.f32.mrf.mxu0
        %2837 = vdwg.mxu0
        %2838 = vmatpush.bf16.msra.mxu0 %v2539
        %2839 = vmatpush.bf16.msra.mxu0 %v2531
        %2840 = vmatpush.bf16.msra.mxu0 %v2523
        %2841 = vmatpush.bf16.msra.mxu0 %v2515
        %2842 = vmatpush.bf16.msra.mxu0 %v2507
        %2843 = vmatpush.bf16.msra.mxu0 %v2499
        %2844 = vmatpush.bf16.msra.mxu0 %v2491
        %2845 = vmatpush.bf16.msra.mxu0 %v2483
        %2846 = vmatmul.bf16.gmra.mxu0 %v1882
        %v2847 = vpop.f32.mrf.mxu0
        %v2848 = vadd.f32 %v2835, %v2847
        %v2849 = vpop.f32.mrf.mxu0
        %2850 = vdwg.mxu0
        %2851 = vmatpush.bf16.msra.mxu0 %v2476
        %2852 = vmatpush.bf16.msra.mxu0 %v2468
        %2853 = vmatpush.bf16.msra.mxu0 %v2460
        %2854 = vmatpush.bf16.msra.mxu0 %v2452
        %2855 = vmatpush.bf16.msra.mxu0 %v2444
        %2856 = vmatpush.bf16.msra.mxu0 %v2436
        %2857 = vmatpush.bf16.msra.mxu0 %v2428
        %2858 = vmatpush.bf16.msra.mxu0 %v2420
        %2859 = vmatmul.bf16.gmra.mxu0 %v1881
        %v2860 = vpop.f32.mrf.mxu0
        %v2861 = vadd.f32 %v2020, %v2860
        %v2862 = vpop.f32.mrf.mxu0
        %2863 = vdwg.mxu0
        %2864 = vmatpush.bf16.msra.mxu0 %v2540
        %2865 = vmatpush.bf16.msra.mxu0 %v2532
        %2866 = vmatpush.bf16.msra.mxu0 %v2524
        %2867 = vmatpush.bf16.msra.mxu0 %v2516
        %2868 = vmatpush.bf16.msra.mxu0 %v2508
        %2869 = vmatpush.bf16.msra.mxu0 %v2500
        %2870 = vmatpush.bf16.msra.mxu0 %v2492
        %2871 = vmatpush.bf16.msra.mxu0 %v2484
        %2872 = vmatmul.bf16.gmra.mxu0 %v1882
        %v2873 = vpop.f32.mrf.mxu0
        %v2874 = vadd.f32 %v2861, %v2873
        %v2875 = vpop.f32.mrf.mxu0
        %2876 = vdwg.mxu0
        %v2877 = vpack.c.bf16 %v2718, %v2692
        %v2878 = vpack.c.bf16 %v2770, %v2744
        %v2879 = vpack.c.bf16 %v2822, %v2796
        %v2880 = vpack.c.bf16 %v2874, %v2848
        %v2881 = vunpack.c.l.bf16 %v2877
        %v2882 = vunpack.c.h.bf16 %v2877
        %v2883 = vunpack.c.l.bf16 %v2878
        %v2884 = vunpack.c.h.bf16 %v2878
        %v2885 = vunpack.c.l.bf16 %v2879
        %v2886 = vunpack.c.h.bf16 %v2879
        %v2887 = vunpack.c.l.bf16 %v2880
        %v2888 = vunpack.c.h.bf16 %v2880
        %v2889 = vmul.f32 %v2881, 0.5
        %v2890 = vmul.f32 %v2882, 0.5
        %v2891 = vmul.f32 %v2883, 0.5
        %v2892 = vmul.f32 %v2884, 0.5
        %v2893 = vmul.f32 %v2885, 0.5
        %v2894 = vmul.f32 %v2886, 0.5
        %v2895 = vmul.f32 %v2887, 0.5
        %v2896 = vmul.f32 %v2888, 0.5
        %v2897 = vpack.c.bf16 %v2890, %v2889
        %v2898 = vpack.c.bf16 %v2892, %v2891
        %v2899 = vpack.c.bf16 %v2894, %v2893
        %v2900 = vpack.c.bf16 %v2896, %v2895
        %v2901 = vmul.f32 %v2881, %v2881
        %v2902 = vmul.f32 %v2882, %v2882
        %v2903 = vmul.f32 %v2883, %v2883
        %v2904 = vmul.f32 %v2884, %v2884
        %v2905 = vmul.f32 %v2885, %v2885
        %v2906 = vmul.f32 %v2886, %v2886
        %v2907 = vmul.f32 %v2887, %v2887
        %v2908 = vmul.f32 %v2888, %v2888
        %v2909 = vpack.c.bf16 %v2902, %v2901
        %v2910 = vpack.c.bf16 %v2904, %v2903
        %v2911 = vpack.c.bf16 %v2906, %v2905
        %v2912 = vpack.c.bf16 %v2908, %v2907
        %v2913 = vunpack.c.l.bf16 %v2909
        %v2914 = vunpack.c.h.bf16 %v2909
        %v2915 = vunpack.c.l.bf16 %v2910
        %v2916 = vunpack.c.h.bf16 %v2910
        %v2917 = vunpack.c.l.bf16 %v2911
        %v2918 = vunpack.c.h.bf16 %v2911
        %v2919 = vunpack.c.l.bf16 %v2912
        %v2920 = vunpack.c.h.bf16 %v2912
        %v2921 = vmul.f32 %v2913, %v2881
        %v2922 = vmul.f32 %v2914, %v2882
        %v2923 = vmul.f32 %v2915, %v2883
        %v2924 = vmul.f32 %v2916, %v2884
        %v2925 = vmul.f32 %v2917, %v2885
        %v2926 = vmul.f32 %v2918, %v2886
        %v2927 = vmul.f32 %v2919, %v2887
        %v2928 = vmul.f32 %v2920, %v2888
        %v2929 = vpack.c.bf16 %v2922, %v2921
        %v2930 = vpack.c.bf16 %v2924, %v2923
        %v2931 = vpack.c.bf16 %v2926, %v2925
        %v2932 = vpack.c.bf16 %v2928, %v2927
        %v2933 = vunpack.c.l.bf16 %v2929
        %v2934 = vunpack.c.h.bf16 %v2929
        %v2935 = vunpack.c.l.bf16 %v2930
        %v2936 = vunpack.c.h.bf16 %v2930
        %v2937 = vunpack.c.l.bf16 %v2931
        %v2938 = vunpack.c.h.bf16 %v2931
        %v2939 = vunpack.c.l.bf16 %v2932
        %v2940 = vunpack.c.h.bf16 %v2932
        %v2941 = vmul.f32 %v2933, 0.044677734
        %v2942 = vmul.f32 %v2934, 0.044677734
        %v2943 = vmul.f32 %v2935, 0.044677734
        %v2944 = vmul.f32 %v2936, 0.044677734
        %v2945 = vmul.f32 %v2937, 0.044677734
        %v2946 = vmul.f32 %v2938, 0.044677734
        %v2947 = vmul.f32 %v2939, 0.044677734
        %v2948 = vmul.f32 %v2940, 0.044677734
        %v2949 = vpack.c.bf16 %v2942, %v2941
        %v2950 = vpack.c.bf16 %v2944, %v2943
        %v2951 = vpack.c.bf16 %v2946, %v2945
        %v2952 = vpack.c.bf16 %v2948, %v2947
        %v2953 = vunpack.c.l.bf16 %v2949
        %v2954 = vunpack.c.h.bf16 %v2949
        %v2955 = vunpack.c.l.bf16 %v2950
        %v2956 = vunpack.c.h.bf16 %v2950
        %v2957 = vunpack.c.l.bf16 %v2951
        %v2958 = vunpack.c.h.bf16 %v2951
        %v2959 = vunpack.c.l.bf16 %v2952
        %v2960 = vunpack.c.h.bf16 %v2952
        %v2961 = vadd.f32 %v2881, %v2953
        %v2962 = vadd.f32 %v2882, %v2954
        %v2963 = vadd.f32 %v2883, %v2955
        %v2964 = vadd.f32 %v2884, %v2956
        %v2965 = vadd.f32 %v2885, %v2957
        %v2966 = vadd.f32 %v2886, %v2958
        %v2967 = vadd.f32 %v2887, %v2959
        %v2968 = vadd.f32 %v2888, %v2960
        %v2969 = vpack.c.bf16 %v2962, %v2961
        %v2970 = vpack.c.bf16 %v2964, %v2963
        %v2971 = vpack.c.bf16 %v2966, %v2965
        %v2972 = vpack.c.bf16 %v2968, %v2967
        %v2973 = vunpack.c.l.bf16 %v2969
        %v2974 = vunpack.c.h.bf16 %v2969
        %v2975 = vunpack.c.l.bf16 %v2970
        %v2976 = vunpack.c.h.bf16 %v2970
        %v2977 = vunpack.c.l.bf16 %v2971
        %v2978 = vunpack.c.h.bf16 %v2971
        %v2979 = vunpack.c.l.bf16 %v2972
        %v2980 = vunpack.c.h.bf16 %v2972
        %v2981 = vmul.f32 %v2973, 0.796875
        %v2982 = vmul.f32 %v2974, 0.796875
        %v2983 = vmul.f32 %v2975, 0.796875
        %v2984 = vmul.f32 %v2976, 0.796875
        %v2985 = vmul.f32 %v2977, 0.796875
        %v2986 = vmul.f32 %v2978, 0.796875
        %v2987 = vmul.f32 %v2979, 0.796875
        %v2988 = vmul.f32 %v2980, 0.796875
        %v2989 = vpack.c.bf16 %v2982, %v2981
        %v2990 = vpack.c.bf16 %v2984, %v2983
        %v2991 = vpack.c.bf16 %v2986, %v2985
        %v2992 = vpack.c.bf16 %v2988, %v2987
        %v2993 = vunpack.c.l.bf16 %v2989
        %v2994 = vunpack.c.h.bf16 %v2989
        %v2995 = vunpack.c.l.bf16 %v2990
        %v2996 = vunpack.c.h.bf16 %v2990
        %v2997 = vunpack.c.l.bf16 %v2991
        %v2998 = vunpack.c.h.bf16 %v2991
        %v2999 = vunpack.c.l.bf16 %v2992
        %v3000 = vunpack.c.h.bf16 %v2992
        %v3001 = vtanh.pop %v2993
        %v3002 = vtanh.pop %v2994
        %v3003 = vtanh.pop %v2995
        %v3004 = vtanh.pop %v2996
        %v3005 = vtanh.pop %v2997
        %v3006 = vtanh.pop %v2998
        %v3007 = vtanh.pop %v2999
        %v3008 = vtanh.pop %v3000
        %v3009 = vpack.c.bf16 %v3002, %v3001
        %v3010 = vpack.c.bf16 %v3004, %v3003
        %v3011 = vpack.c.bf16 %v3006, %v3005
        %v3012 = vpack.c.bf16 %v3008, %v3007
        %v3013 = vunpack.c.l.bf16 %v3009
        %v3014 = vunpack.c.h.bf16 %v3009
        %v3015 = vunpack.c.l.bf16 %v3010
        %v3016 = vunpack.c.h.bf16 %v3010
        %v3017 = vunpack.c.l.bf16 %v3011
        %v3018 = vunpack.c.h.bf16 %v3011
        %v3019 = vunpack.c.l.bf16 %v3012
        %v3020 = vunpack.c.h.bf16 %v3012
        %v3021 = vadd.f32 %v3013, 1.0
        %v3022 = vadd.f32 %v3014, 1.0
        %v3023 = vadd.f32 %v3015, 1.0
        %v3024 = vadd.f32 %v3016, 1.0
        %v3025 = vadd.f32 %v3017, 1.0
        %v3026 = vadd.f32 %v3018, 1.0
        %v3027 = vadd.f32 %v3019, 1.0
        %v3028 = vadd.f32 %v3020, 1.0
        %v3029 = vpack.c.bf16 %v3022, %v3021
        %v3030 = vpack.c.bf16 %v3024, %v3023
        %v3031 = vpack.c.bf16 %v3026, %v3025
        %v3032 = vpack.c.bf16 %v3028, %v3027
        %v3033 = vunpack.c.l.bf16 %v2897
        %v3034 = vunpack.c.h.bf16 %v2897
        %v3035 = vunpack.c.l.bf16 %v2898
        %v3036 = vunpack.c.h.bf16 %v2898
        %v3037 = vunpack.c.l.bf16 %v2899
        %v3038 = vunpack.c.h.bf16 %v2899
        %v3039 = vunpack.c.l.bf16 %v2900
        %v3040 = vunpack.c.h.bf16 %v2900
        %v3041 = vunpack.c.l.bf16 %v3029
        %v3042 = vunpack.c.h.bf16 %v3029
        %v3043 = vunpack.c.l.bf16 %v3030
        %v3044 = vunpack.c.h.bf16 %v3030
        %v3045 = vunpack.c.l.bf16 %v3031
        %v3046 = vunpack.c.h.bf16 %v3031
        %v3047 = vunpack.c.l.bf16 %v3032
        %v3048 = vunpack.c.h.bf16 %v3032
        %v3049 = vmul.f32 %v3033, %v3041
        %v3050 = vmul.f32 %v3034, %v3042
        %v3051 = vmul.f32 %v3035, %v3043
        %v3052 = vmul.f32 %v3036, %v3044
        %v3053 = vmul.f32 %v3037, %v3045
        %v3054 = vmul.f32 %v3038, %v3046
        %v3055 = vmul.f32 %v3039, %v3047
        %v3056 = vmul.f32 %v3040, %v3048
        %v3057 = vpack.c.bf16 %v3049, %v3049
        %v3058 = vpack.c.bf16 %v3050, %v3050
        %v3059 = vpack.c.bf16 %v3051, %v3051
        %v3060 = vpack.c.bf16 %v3052, %v3052
        %v3061 = vpack.c.bf16 %v3053, %v3053
        %v3062 = vpack.c.bf16 %v3054, %v3054
        %v3063 = vpack.c.bf16 %v3055, %v3055
        %v3064 = vpack.c.bf16 %v3056, %v3056
        %v3065 = vld [vmem:[#allocation14] sm:$0xff]
        %v3066 = vld [vmem:[#allocation14 + $0x8] sm:$0xff]
        %v3067 = vld [vmem:[#allocation14 + $0x10] sm:$0xff]
        %v3068 = vld [vmem:[#allocation14 + $0x18] sm:$0xff]
        %v3069 = vld [vmem:[#allocation14 + $0x20] sm:$0xff]
        %v3070 = vld [vmem:[#allocation14 + $0x28] sm:$0xff]
        %v3071 = vld [vmem:[#allocation14 + $0x30] sm:$0xff]
        %v3072 = vld [vmem:[#allocation14 + $0x38] sm:$0xff]
        %v3073 = vld [vmem:[#allocation14 + $0x40] sm:$0xff]
        %v3074 = vld [vmem:[#allocation14 + $0x48] sm:$0xff]
        %v3075 = vld [vmem:[#allocation14 + $0x50] sm:$0xff]
        %v3076 = vld [vmem:[#allocation14 + $0x58] sm:$0xff]
        %v3077 = vld [vmem:[#allocation14 + $0x60] sm:$0xff]
        %v3078 = vld [vmem:[#allocation14 + $0x68] sm:$0xff]
        %v3079 = vld [vmem:[#allocation14 + $0x70] sm:$0xff]
        %v3080 = vld [vmem:[#allocation14 + $0x78] sm:$0xff]
        %v3081 = vld [vmem:[#allocation14 + $0x80] sm:$0xff]
        %v3082 = vld [vmem:[#allocation14 + $0x88] sm:$0xff]
        %v3083 = vld [vmem:[#allocation14 + $0x90] sm:$0xff]
        %v3084 = vld [vmem:[#allocation14 + $0x98] sm:$0xff]
        %v3085 = vld [vmem:[#allocation14 + $0xa0] sm:$0xff]
        %v3086 = vld [vmem:[#allocation14 + $0xa8] sm:$0xff]
        %v3087 = vld [vmem:[#allocation14 + $0xb0] sm:$0xff]
        %v3088 = vld [vmem:[#allocation14 + $0xb8] sm:$0xff]
        %v3089 = vld [vmem:[#allocation14 + $0xc0] sm:$0xff]
        %v3090 = vld [vmem:[#allocation14 + $0xc8] sm:$0xff]
        %v3091 = vld [vmem:[#allocation14 + $0xd0] sm:$0xff]
        %v3092 = vld [vmem:[#allocation14 + $0xd8] sm:$0xff]
        %v3093 = vld [vmem:[#allocation14 + $0xe0] sm:$0xff]
        %v3094 = vld [vmem:[#allocation14 + $0xe8] sm:$0xff]
        %v3095 = vld [vmem:[#allocation14 + $0xf0] sm:$0xff]
        %v3096 = vld [vmem:[#allocation14 + $0xf8] sm:$0xff]
        %v3097 = vld [vmem:[#allocation14 + $0x100] sm:$0xff]
        %v3098 = vld [vmem:[#allocation14 + $0x108] sm:$0xff]
        %v3099 = vld [vmem:[#allocation14 + $0x110] sm:$0xff]
        %v3100 = vld [vmem:[#allocation14 + $0x118] sm:$0xff]
        %v3101 = vld [vmem:[#allocation14 + $0x120] sm:$0xff]
        %v3102 = vld [vmem:[#allocation14 + $0x128] sm:$0xff]
        %v3103 = vld [vmem:[#allocation14 + $0x130] sm:$0xff]
        %v3104 = vld [vmem:[#allocation14 + $0x138] sm:$0xff]
        %v3105 = vld [vmem:[#allocation14 + $0x140] sm:$0xff]
        %v3106 = vld [vmem:[#allocation14 + $0x148] sm:$0xff]
        %v3107 = vld [vmem:[#allocation14 + $0x150] sm:$0xff]
        %v3108 = vld [vmem:[#allocation14 + $0x158] sm:$0xff]
        %v3109 = vld [vmem:[#allocation14 + $0x160] sm:$0xff]
        %v3110 = vld [vmem:[#allocation14 + $0x168] sm:$0xff]
        %v3111 = vld [vmem:[#allocation14 + $0x170] sm:$0xff]
        %v3112 = vld [vmem:[#allocation14 + $0x178] sm:$0xff]
        %v3113 = vld [vmem:[#allocation14 + $0x180] sm:$0xff]
        %v3114 = vld [vmem:[#allocation14 + $0x188] sm:$0xff]
        %v3115 = vld [vmem:[#allocation14 + $0x190] sm:$0xff]
        %v3116 = vld [vmem:[#allocation14 + $0x198] sm:$0xff]
        %v3117 = vld [vmem:[#allocation14 + $0x1a0] sm:$0xff]
        %v3118 = vld [vmem:[#allocation14 + $0x1a8] sm:$0xff]
        %v3119 = vld [vmem:[#allocation14 + $0x1b0] sm:$0xff]
        %v3120 = vld [vmem:[#allocation14 + $0x1b8] sm:$0xff]
        %v3121 = vld [vmem:[#allocation14 + $0x1c0] sm:$0xff]
        %v3122 = vld [vmem:[#allocation14 + $0x1c8] sm:$0xff]
        %v3123 = vld [vmem:[#allocation14 + $0x1d0] sm:$0xff]
        %v3124 = vld [vmem:[#allocation14 + $0x1d8] sm:$0xff]
        %v3125 = vld [vmem:[#allocation14 + $0x1e0] sm:$0xff]
        %v3126 = vld [vmem:[#allocation14 + $0x1e8] sm:$0xff]
        %v3127 = vld [vmem:[#allocation14 + $0x1f0] sm:$0xff]
        %v3128 = vld [vmem:[#allocation14 + $0x1f8] sm:$0xff]
        %v3129 = vld [vmem:[#allocation14 + $0x200] sm:$0xff]
        %v3130 = vld [vmem:[#allocation14 + $0x208] sm:$0xff]
        %v3131 = vld [vmem:[#allocation14 + $0x210] sm:$0xff]
        %v3132 = vld [vmem:[#allocation14 + $0x218] sm:$0xff]
        %v3133 = vld [vmem:[#allocation14 + $0x220] sm:$0xff]
        %v3134 = vld [vmem:[#allocation14 + $0x228] sm:$0xff]
        %v3135 = vld [vmem:[#allocation14 + $0x230] sm:$0xff]
        %v3136 = vld [vmem:[#allocation14 + $0x238] sm:$0xff]
        %v3137 = vld [vmem:[#allocation14 + $0x240] sm:$0xff]
        %v3138 = vld [vmem:[#allocation14 + $0x248] sm:$0xff]
        %v3139 = vld [vmem:[#allocation14 + $0x250] sm:$0xff]
        %v3140 = vld [vmem:[#allocation14 + $0x258] sm:$0xff]
        %v3141 = vld [vmem:[#allocation14 + $0x260] sm:$0xff]
        %v3142 = vld [vmem:[#allocation14 + $0x268] sm:$0xff]
        %v3143 = vld [vmem:[#allocation14 + $0x270] sm:$0xff]
        %v3144 = vld [vmem:[#allocation14 + $0x278] sm:$0xff]
        %v3145 = vld [vmem:[#allocation14 + $0x280] sm:$0xff]
        %v3146 = vld [vmem:[#allocation14 + $0x288] sm:$0xff]
        %v3147 = vld [vmem:[#allocation14 + $0x290] sm:$0xff]
        %v3148 = vld [vmem:[#allocation14 + $0x298] sm:$0xff]
        %v3149 = vld [vmem:[#allocation14 + $0x2a0] sm:$0xff]
        %v3150 = vld [vmem:[#allocation14 + $0x2a8] sm:$0xff]
        %v3151 = vld [vmem:[#allocation14 + $0x2b0] sm:$0xff]
        %v3152 = vld [vmem:[#allocation14 + $0x2b8] sm:$0xff]
        %v3153 = vld [vmem:[#allocation14 + $0x2c0] sm:$0xff]
        %v3154 = vld [vmem:[#allocation14 + $0x2c8] sm:$0xff]
        %v3155 = vld [vmem:[#allocation14 + $0x2d0] sm:$0xff]
        %v3156 = vld [vmem:[#allocation14 + $0x2d8] sm:$0xff]
        %v3157 = vld [vmem:[#allocation14 + $0x2e0] sm:$0xff]
        %v3158 = vld [vmem:[#allocation14 + $0x2e8] sm:$0xff]
        %v3159 = vld [vmem:[#allocation14 + $0x2f0] sm:$0xff]
        %v3160 = vld [vmem:[#allocation14 + $0x2f8] sm:$0xff]
        %v3161 = vld [vmem:[#allocation14 + $0x300] sm:$0xff]
        %v3162 = vld [vmem:[#allocation14 + $0x308] sm:$0xff]
        %v3163 = vld [vmem:[#allocation14 + $0x310] sm:$0xff]
        %v3164 = vld [vmem:[#allocation14 + $0x318] sm:$0xff]
        %v3165 = vld [vmem:[#allocation14 + $0x320] sm:$0xff]
        %v3166 = vld [vmem:[#allocation14 + $0x328] sm:$0xff]
        %v3167 = vld [vmem:[#allocation14 + $0x330] sm:$0xff]
        %v3168 = vld [vmem:[#allocation14 + $0x338] sm:$0xff]
        %v3169 = vld [vmem:[#allocation14 + $0x340] sm:$0xff]
        %v3170 = vld [vmem:[#allocation14 + $0x348] sm:$0xff]
        %v3171 = vld [vmem:[#allocation14 + $0x350] sm:$0xff]
        %v3172 = vld [vmem:[#allocation14 + $0x358] sm:$0xff]
        %v3173 = vld [vmem:[#allocation14 + $0x360] sm:$0xff]
        %v3174 = vld [vmem:[#allocation14 + $0x368] sm:$0xff]
        %v3175 = vld [vmem:[#allocation14 + $0x370] sm:$0xff]
        %v3176 = vld [vmem:[#allocation14 + $0x378] sm:$0xff]
        %v3177 = vld [vmem:[#allocation14 + $0x380] sm:$0xff]
        %v3178 = vld [vmem:[#allocation14 + $0x388] sm:$0xff]
        %v3179 = vld [vmem:[#allocation14 + $0x390] sm:$0xff]
        %v3180 = vld [vmem:[#allocation14 + $0x398] sm:$0xff]
        %v3181 = vld [vmem:[#allocation14 + $0x3a0] sm:$0xff]
        %v3182 = vld [vmem:[#allocation14 + $0x3a8] sm:$0xff]
        %v3183 = vld [vmem:[#allocation14 + $0x3b0] sm:$0xff]
        %v3184 = vld [vmem:[#allocation14 + $0x3b8] sm:$0xff]
        %v3185 = vld [vmem:[#allocation14 + $0x3c0] sm:$0xff]
        %v3186 = vld [vmem:[#allocation14 + $0x3c8] sm:$0xff]
        %v3187 = vld [vmem:[#allocation14 + $0x3d0] sm:$0xff]
        %v3188 = vld [vmem:[#allocation14 + $0x3d8] sm:$0xff]
        %v3189 = vld [vmem:[#allocation14 + $0x3e0] sm:$0xff]
        %v3190 = vld [vmem:[#allocation14 + $0x3e8] sm:$0xff]
        %v3191 = vld [vmem:[#allocation14 + $0x3f0] sm:$0xff]
        %v3192 = vld [vmem:[#allocation14 + $0x3f8] sm:$0xff]
        %v3193 = vld [vmem:[%s10] sm:$0x3]
        %v3195 = vperm.slane %v3193, 0
        %v3196 = vperm.slane %v3193, 1
        %v3327 = vunpack.c.l.b16 %v3065
        %v3328 = vunpack.c.h.b16 %v3065
        %v3329 = vunpack.c.l.b16 %v3066
        %v3330 = vunpack.c.h.b16 %v3066
        %v3331 = vunpack.c.l.b16 %v3067
        %v3332 = vunpack.c.h.b16 %v3067
        %v3333 = vunpack.c.l.b16 %v3068
        %v3334 = vunpack.c.h.b16 %v3068
        %v3335 = vunpack.c.l.b16 %v3069
        %v3336 = vunpack.c.h.b16 %v3069
        %v3337 = vunpack.c.l.b16 %v3070
        %v3338 = vunpack.c.h.b16 %v3070
        %v3339 = vunpack.c.l.b16 %v3071
        %v3340 = vunpack.c.h.b16 %v3071
        %v3341 = vunpack.c.l.b16 %v3072
        %v3342 = vunpack.c.h.b16 %v3072
        %v3343 = vunpack.c.l.b16 %v3073
        %v3344 = vunpack.c.h.b16 %v3073
        %v3345 = vunpack.c.l.b16 %v3074
        %v3346 = vunpack.c.h.b16 %v3074
        %v3347 = vunpack.c.l.b16 %v3075
        %v3348 = vunpack.c.h.b16 %v3075
        %v3349 = vunpack.c.l.b16 %v3076
        %v3350 = vunpack.c.h.b16 %v3076
        %v3351 = vunpack.c.l.b16 %v3077
        %v3352 = vunpack.c.h.b16 %v3077
        %v3353 = vunpack.c.l.b16 %v3078
        %v3354 = vunpack.c.h.b16 %v3078
        %v3355 = vunpack.c.l.b16 %v3079
        %v3356 = vunpack.c.h.b16 %v3079
        %v3357 = vunpack.c.l.b16 %v3080
        %v3358 = vunpack.c.h.b16 %v3080
        %v3359 = vunpack.c.l.b16 %v3081
        %v3360 = vunpack.c.h.b16 %v3081
        %v3361 = vunpack.c.l.b16 %v3082
        %v3362 = vunpack.c.h.b16 %v3082
        %v3363 = vunpack.c.l.b16 %v3083
        %v3364 = vunpack.c.h.b16 %v3083
        %v3365 = vunpack.c.l.b16 %v3084
        %v3366 = vunpack.c.h.b16 %v3084
        %v3367 = vunpack.c.l.b16 %v3085
        %v3368 = vunpack.c.h.b16 %v3085
        %v3369 = vunpack.c.l.b16 %v3086
        %v3370 = vunpack.c.h.b16 %v3086
        %v3371 = vunpack.c.l.b16 %v3087
        %v3372 = vunpack.c.h.b16 %v3087
        %v3373 = vunpack.c.l.b16 %v3088
        %v3374 = vunpack.c.h.b16 %v3088
        %v3375 = vunpack.c.l.b16 %v3089
        %v3376 = vunpack.c.h.b16 %v3089
        %v3377 = vunpack.c.l.b16 %v3090
        %v3378 = vunpack.c.h.b16 %v3090
        %v3379 = vunpack.c.l.b16 %v3091
        %v3380 = vunpack.c.h.b16 %v3091
        %v3381 = vunpack.c.l.b16 %v3092
        %v3382 = vunpack.c.h.b16 %v3092
        %v3383 = vunpack.c.l.b16 %v3093
        %v3384 = vunpack.c.h.b16 %v3093
        %v3385 = vunpack.c.l.b16 %v3094
        %v3386 = vunpack.c.h.b16 %v3094
        %v3387 = vunpack.c.l.b16 %v3095
        %v3388 = vunpack.c.h.b16 %v3095
        %v3389 = vunpack.c.l.b16 %v3096
        %v3390 = vunpack.c.h.b16 %v3096
        %v3391 = vunpack.c.l.b16 %v3097
        %v3392 = vunpack.c.h.b16 %v3097
        %v3393 = vunpack.c.l.b16 %v3098
        %v3394 = vunpack.c.h.b16 %v3098
        %v3395 = vunpack.c.l.b16 %v3099
        %v3396 = vunpack.c.h.b16 %v3099
        %v3397 = vunpack.c.l.b16 %v3100
        %v3398 = vunpack.c.h.b16 %v3100
        %v3399 = vunpack.c.l.b16 %v3101
        %v3400 = vunpack.c.h.b16 %v3101
        %v3401 = vunpack.c.l.b16 %v3102
        %v3402 = vunpack.c.h.b16 %v3102
        %v3403 = vunpack.c.l.b16 %v3103
        %v3404 = vunpack.c.h.b16 %v3103
        %v3405 = vunpack.c.l.b16 %v3104
        %v3406 = vunpack.c.h.b16 %v3104
        %v3407 = vunpack.c.l.b16 %v3105
        %v3408 = vunpack.c.h.b16 %v3105
        %v3409 = vunpack.c.l.b16 %v3106
        %v3410 = vunpack.c.h.b16 %v3106
        %v3411 = vunpack.c.l.b16 %v3107
        %v3412 = vunpack.c.h.b16 %v3107
        %v3413 = vunpack.c.l.b16 %v3108
        %v3414 = vunpack.c.h.b16 %v3108
        %v3415 = vunpack.c.l.b16 %v3109
        %v3416 = vunpack.c.h.b16 %v3109
        %v3417 = vunpack.c.l.b16 %v3110
        %v3418 = vunpack.c.h.b16 %v3110
        %v3419 = vunpack.c.l.b16 %v3111
        %v3420 = vunpack.c.h.b16 %v3111
        %v3421 = vunpack.c.l.b16 %v3112
        %v3422 = vunpack.c.h.b16 %v3112
        %v3423 = vunpack.c.l.b16 %v3113
        %v3424 = vunpack.c.h.b16 %v3113
        %v3425 = vunpack.c.l.b16 %v3114
        %v3426 = vunpack.c.h.b16 %v3114
        %v3427 = vunpack.c.l.b16 %v3115
        %v3428 = vunpack.c.h.b16 %v3115
        %v3429 = vunpack.c.l.b16 %v3116
        %v3430 = vunpack.c.h.b16 %v3116
        %v3431 = vunpack.c.l.b16 %v3117
        %v3432 = vunpack.c.h.b16 %v3117
        %v3433 = vunpack.c.l.b16 %v3118
        %v3434 = vunpack.c.h.b16 %v3118
        %v3435 = vunpack.c.l.b16 %v3119
        %v3436 = vunpack.c.h.b16 %v3119
        %v3437 = vunpack.c.l.b16 %v3120
        %v3438 = vunpack.c.h.b16 %v3120
        %v3439 = vunpack.c.l.b16 %v3121
        %v3440 = vunpack.c.h.b16 %v3121
        %v3441 = vunpack.c.l.b16 %v3122
        %v3442 = vunpack.c.h.b16 %v3122
        %v3443 = vunpack.c.l.b16 %v3123
        %v3444 = vunpack.c.h.b16 %v3123
        %v3445 = vunpack.c.l.b16 %v3124
        %v3446 = vunpack.c.h.b16 %v3124
        %v3447 = vunpack.c.l.b16 %v3125
        %v3448 = vunpack.c.h.b16 %v3125
        %v3449 = vunpack.c.l.b16 %v3126
        %v3450 = vunpack.c.h.b16 %v3126
        %v3451 = vunpack.c.l.b16 %v3127
        %v3452 = vunpack.c.h.b16 %v3127
        %v3453 = vunpack.c.l.b16 %v3128
        %v3454 = vunpack.c.h.b16 %v3128
        %v3455 = vunpack.c.l.b16 %v3129
        %v3456 = vunpack.c.h.b16 %v3129
        %v3457 = vunpack.c.l.b16 %v3130
        %v3458 = vunpack.c.h.b16 %v3130
        %v3459 = vunpack.c.l.b16 %v3131
        %v3460 = vunpack.c.h.b16 %v3131
        %v3461 = vunpack.c.l.b16 %v3132
        %v3462 = vunpack.c.h.b16 %v3132
        %v3463 = vunpack.c.l.b16 %v3133
        %v3464 = vunpack.c.h.b16 %v3133
        %v3465 = vunpack.c.l.b16 %v3134
        %v3466 = vunpack.c.h.b16 %v3134
        %v3467 = vunpack.c.l.b16 %v3135
        %v3468 = vunpack.c.h.b16 %v3135
        %v3469 = vunpack.c.l.b16 %v3136
        %v3470 = vunpack.c.h.b16 %v3136
        %v3471 = vunpack.c.l.b16 %v3137
        %v3472 = vunpack.c.h.b16 %v3137
        %v3473 = vunpack.c.l.b16 %v3138
        %v3474 = vunpack.c.h.b16 %v3138
        %v3475 = vunpack.c.l.b16 %v3139
        %v3476 = vunpack.c.h.b16 %v3139
        %v3477 = vunpack.c.l.b16 %v3140
        %v3478 = vunpack.c.h.b16 %v3140
        %v3479 = vunpack.c.l.b16 %v3141
        %v3480 = vunpack.c.h.b16 %v3141
        %v3481 = vunpack.c.l.b16 %v3142
        %v3482 = vunpack.c.h.b16 %v3142
        %v3483 = vunpack.c.l.b16 %v3143
        %v3484 = vunpack.c.h.b16 %v3143
        %v3485 = vunpack.c.l.b16 %v3144
        %v3486 = vunpack.c.h.b16 %v3144
        %v3487 = vunpack.c.l.b16 %v3145
        %v3488 = vunpack.c.h.b16 %v3145
        %v3489 = vunpack.c.l.b16 %v3146
        %v3490 = vunpack.c.h.b16 %v3146
        %v3491 = vunpack.c.l.b16 %v3147
        %v3492 = vunpack.c.h.b16 %v3147
        %v3493 = vunpack.c.l.b16 %v3148
        %v3494 = vunpack.c.h.b16 %v3148
        %v3495 = vunpack.c.l.b16 %v3149
        %v3496 = vunpack.c.h.b16 %v3149
        %v3497 = vunpack.c.l.b16 %v3150
        %v3498 = vunpack.c.h.b16 %v3150
        %v3499 = vunpack.c.l.b16 %v3151
        %v3500 = vunpack.c.h.b16 %v3151
        %v3501 = vunpack.c.l.b16 %v3152
        %v3502 = vunpack.c.h.b16 %v3152
        %v3503 = vunpack.c.l.b16 %v3153
        %v3504 = vunpack.c.h.b16 %v3153
        %v3505 = vunpack.c.l.b16 %v3154
        %v3506 = vunpack.c.h.b16 %v3154
        %v3507 = vunpack.c.l.b16 %v3155
        %v3508 = vunpack.c.h.b16 %v3155
        %v3509 = vunpack.c.l.b16 %v3156
        %v3510 = vunpack.c.h.b16 %v3156
        %v3511 = vunpack.c.l.b16 %v3157
        %v3512 = vunpack.c.h.b16 %v3157
        %v3513 = vunpack.c.l.b16 %v3158
        %v3514 = vunpack.c.h.b16 %v3158
        %v3515 = vunpack.c.l.b16 %v3159
        %v3516 = vunpack.c.h.b16 %v3159
        %v3517 = vunpack.c.l.b16 %v3160
        %v3518 = vunpack.c.h.b16 %v3160
        %v3519 = vunpack.c.l.b16 %v3161
        %v3520 = vunpack.c.h.b16 %v3161
        %v3521 = vunpack.c.l.b16 %v3162
        %v3522 = vunpack.c.h.b16 %v3162
        %v3523 = vunpack.c.l.b16 %v3163
        %v3524 = vunpack.c.h.b16 %v3163
        %v3525 = vunpack.c.l.b16 %v3164
        %v3526 = vunpack.c.h.b16 %v3164
        %v3527 = vunpack.c.l.b16 %v3165
        %v3528 = vunpack.c.h.b16 %v3165
        %v3529 = vunpack.c.l.b16 %v3166
        %v3530 = vunpack.c.h.b16 %v3166
        %v3531 = vunpack.c.l.b16 %v3167
        %v3532 = vunpack.c.h.b16 %v3167
        %v3533 = vunpack.c.l.b16 %v3168
        %v3534 = vunpack.c.h.b16 %v3168
        %v3535 = vunpack.c.l.b16 %v3169
        %v3536 = vunpack.c.h.b16 %v3169
        %v3537 = vunpack.c.l.b16 %v3170
        %v3538 = vunpack.c.h.b16 %v3170
        %v3539 = vunpack.c.l.b16 %v3171
        %v3540 = vunpack.c.h.b16 %v3171
        %v3541 = vunpack.c.l.b16 %v3172
        %v3542 = vunpack.c.h.b16 %v3172
        %v3543 = vunpack.c.l.b16 %v3173
        %v3544 = vunpack.c.h.b16 %v3173
        %v3545 = vunpack.c.l.b16 %v3174
        %v3546 = vunpack.c.h.b16 %v3174
        %v3547 = vunpack.c.l.b16 %v3175
        %v3548 = vunpack.c.h.b16 %v3175
        %v3549 = vunpack.c.l.b16 %v3176
        %v3550 = vunpack.c.h.b16 %v3176
        %v3551 = vunpack.c.l.b16 %v3177
        %v3552 = vunpack.c.h.b16 %v3177
        %v3553 = vunpack.c.l.b16 %v3178
        %v3554 = vunpack.c.h.b16 %v3178
        %v3555 = vunpack.c.l.b16 %v3179
        %v3556 = vunpack.c.h.b16 %v3179
        %v3557 = vunpack.c.l.b16 %v3180
        %v3558 = vunpack.c.h.b16 %v3180
        %v3559 = vunpack.c.l.b16 %v3181
        %v3560 = vunpack.c.h.b16 %v3181
        %v3561 = vunpack.c.l.b16 %v3182
        %v3562 = vunpack.c.h.b16 %v3182
        %v3563 = vunpack.c.l.b16 %v3183
        %v3564 = vunpack.c.h.b16 %v3183
        %v3565 = vunpack.c.l.b16 %v3184
        %v3566 = vunpack.c.h.b16 %v3184
        %v3567 = vunpack.c.l.b16 %v3185
        %v3568 = vunpack.c.h.b16 %v3185
        %v3569 = vunpack.c.l.b16 %v3186
        %v3570 = vunpack.c.h.b16 %v3186
        %v3571 = vunpack.c.l.b16 %v3187
        %v3572 = vunpack.c.h.b16 %v3187
        %v3573 = vunpack.c.l.b16 %v3188
        %v3574 = vunpack.c.h.b16 %v3188
        %v3575 = vunpack.c.l.b16 %v3189
        %v3576 = vunpack.c.h.b16 %v3189
        %v3577 = vunpack.c.l.b16 %v3190
        %v3578 = vunpack.c.h.b16 %v3190
        %v3579 = vunpack.c.l.b16 %v3191
        %v3580 = vunpack.c.h.b16 %v3191
        %v3581 = vunpack.c.l.b16 %v3192
        %v3582 = vunpack.c.h.b16 %v3192
        %v3583 = vpack.c.b16 %v3329, %v3327
        %v3584 = vpack.c.b16 %v3330, %v3328
        %v3585 = vpack.c.b16 %v3333, %v3331
        %v3586 = vpack.c.b16 %v3334, %v3332
        %v3587 = vpack.c.b16 %v3337, %v3335
        %v3588 = vpack.c.b16 %v3338, %v3336
        %v3589 = vpack.c.b16 %v3341, %v3339
        %v3590 = vpack.c.b16 %v3342, %v3340
        %v3591 = vpack.c.b16 %v3345, %v3343
        %v3592 = vpack.c.b16 %v3346, %v3344
        %v3593 = vpack.c.b16 %v3349, %v3347
        %v3594 = vpack.c.b16 %v3350, %v3348
        %v3595 = vpack.c.b16 %v3353, %v3351
        %v3596 = vpack.c.b16 %v3354, %v3352
        %v3597 = vpack.c.b16 %v3357, %v3355
        %v3598 = vpack.c.b16 %v3358, %v3356
        %v3599 = vpack.c.b16 %v3361, %v3359
        %v3600 = vpack.c.b16 %v3362, %v3360
        %v3601 = vpack.c.b16 %v3365, %v3363
        %v3602 = vpack.c.b16 %v3366, %v3364
        %v3603 = vpack.c.b16 %v3369, %v3367
        %v3604 = vpack.c.b16 %v3370, %v3368
        %v3605 = vpack.c.b16 %v3373, %v3371
        %v3606 = vpack.c.b16 %v3374, %v3372
        %v3607 = vpack.c.b16 %v3377, %v3375
        %v3608 = vpack.c.b16 %v3378, %v3376
        %v3609 = vpack.c.b16 %v3381, %v3379
        %v3610 = vpack.c.b16 %v3382, %v3380
        %v3611 = vpack.c.b16 %v3385, %v3383
        %v3612 = vpack.c.b16 %v3386, %v3384
        %v3613 = vpack.c.b16 %v3389, %v3387
        %v3614 = vpack.c.b16 %v3390, %v3388
        %v3615 = vpack.c.b16 %v3393, %v3391
        %v3616 = vpack.c.b16 %v3394, %v3392
        %v3617 = vpack.c.b16 %v3397, %v3395
        %v3618 = vpack.c.b16 %v3398, %v3396
        %v3619 = vpack.c.b16 %v3401, %v3399
        %v3620 = vpack.c.b16 %v3402, %v3400
        %v3621 = vpack.c.b16 %v3405, %v3403
        %v3622 = vpack.c.b16 %v3406, %v3404
        %v3623 = vpack.c.b16 %v3409, %v3407
        %v3624 = vpack.c.b16 %v3410, %v3408
        %v3625 = vpack.c.b16 %v3413, %v3411
        %v3626 = vpack.c.b16 %v3414, %v3412
        %v3627 = vpack.c.b16 %v3417, %v3415
        %v3628 = vpack.c.b16 %v3418, %v3416
        %v3629 = vpack.c.b16 %v3421, %v3419
        %v3630 = vpack.c.b16 %v3422, %v3420
        %v3631 = vpack.c.b16 %v3425, %v3423
        %v3632 = vpack.c.b16 %v3426, %v3424
        %v3633 = vpack.c.b16 %v3429, %v3427
        %v3634 = vpack.c.b16 %v3430, %v3428
        %v3635 = vpack.c.b16 %v3433, %v3431
        %v3636 = vpack.c.b16 %v3434, %v3432
        %v3637 = vpack.c.b16 %v3437, %v3435
        %v3638 = vpack.c.b16 %v3438, %v3436
        %v3639 = vpack.c.b16 %v3441, %v3439
        %v3640 = vpack.c.b16 %v3442, %v3440
        %v3641 = vpack.c.b16 %v3445, %v3443
        %v3642 = vpack.c.b16 %v3446, %v3444
        %v3643 = vpack.c.b16 %v3449, %v3447
        %v3644 = vpack.c.b16 %v3450, %v3448
        %v3645 = vpack.c.b16 %v3453, %v3451
        %v3646 = vpack.c.b16 %v3454, %v3452
        %v3647 = vpack.c.b16 %v3457, %v3455
        %v3648 = vpack.c.b16 %v3458, %v3456
        %v3649 = vpack.c.b16 %v3461, %v3459
        %v3650 = vpack.c.b16 %v3462, %v3460
        %v3651 = vpack.c.b16 %v3465, %v3463
        %v3652 = vpack.c.b16 %v3466, %v3464
        %v3653 = vpack.c.b16 %v3469, %v3467
        %v3654 = vpack.c.b16 %v3470, %v3468
        %v3655 = vpack.c.b16 %v3473, %v3471
        %v3656 = vpack.c.b16 %v3474, %v3472
        %v3657 = vpack.c.b16 %v3477, %v3475
        %v3658 = vpack.c.b16 %v3478, %v3476
        %v3659 = vpack.c.b16 %v3481, %v3479
        %v3660 = vpack.c.b16 %v3482, %v3480
        %v3661 = vpack.c.b16 %v3485, %v3483
        %v3662 = vpack.c.b16 %v3486, %v3484
        %v3663 = vpack.c.b16 %v3489, %v3487
        %v3664 = vpack.c.b16 %v3490, %v3488
        %v3665 = vpack.c.b16 %v3493, %v3491
        %v3666 = vpack.c.b16 %v3494, %v3492
        %v3667 = vpack.c.b16 %v3497, %v3495
        %v3668 = vpack.c.b16 %v3498, %v3496
        %v3669 = vpack.c.b16 %v3501, %v3499
        %v3670 = vpack.c.b16 %v3502, %v3500
        %v3671 = vpack.c.b16 %v3505, %v3503
        %v3672 = vpack.c.b16 %v3506, %v3504
        %v3673 = vpack.c.b16 %v3509, %v3507
        %v3674 = vpack.c.b16 %v3510, %v3508
        %v3675 = vpack.c.b16 %v3513, %v3511
        %v3676 = vpack.c.b16 %v3514, %v3512
        %v3677 = vpack.c.b16 %v3517, %v3515
        %v3678 = vpack.c.b16 %v3518, %v3516
        %v3679 = vpack.c.b16 %v3521, %v3519
        %v3680 = vpack.c.b16 %v3522, %v3520
        %v3681 = vpack.c.b16 %v3525, %v3523
        %v3682 = vpack.c.b16 %v3526, %v3524
        %v3683 = vpack.c.b16 %v3529, %v3527
        %v3684 = vpack.c.b16 %v3530, %v3528
        %v3685 = vpack.c.b16 %v3533, %v3531
        %v3686 = vpack.c.b16 %v3534, %v3532
        %v3687 = vpack.c.b16 %v3537, %v3535
        %v3688 = vpack.c.b16 %v3538, %v3536
        %v3689 = vpack.c.b16 %v3541, %v3539
        %v3690 = vpack.c.b16 %v3542, %v3540
        %v3691 = vpack.c.b16 %v3545, %v3543
        %v3692 = vpack.c.b16 %v3546, %v3544
        %v3693 = vpack.c.b16 %v3549, %v3547
        %v3694 = vpack.c.b16 %v3550, %v3548
        %v3695 = vpack.c.b16 %v3553, %v3551
        %v3696 = vpack.c.b16 %v3554, %v3552
        %v3697 = vpack.c.b16 %v3557, %v3555
        %v3698 = vpack.c.b16 %v3558, %v3556
        %v3699 = vpack.c.b16 %v3561, %v3559
        %v3700 = vpack.c.b16 %v3562, %v3560
        %v3701 = vpack.c.b16 %v3565, %v3563
        %v3702 = vpack.c.b16 %v3566, %v3564
        %v3703 = vpack.c.b16 %v3569, %v3567
        %v3704 = vpack.c.b16 %v3570, %v3568
        %v3705 = vpack.c.b16 %v3573, %v3571
        %v3706 = vpack.c.b16 %v3574, %v3572
        %v3707 = vpack.c.b16 %v3577, %v3575
        %v3708 = vpack.c.b16 %v3578, %v3576
        %v3709 = vpack.c.b16 %v3581, %v3579
        %v3710 = vpack.c.b16 %v3582, %v3580
        %3839 = vmatpush.bf16.msra.mxu0 %v3597
        %3840 = vmatpush.bf16.msra.mxu0 %v3595
        %3841 = vmatpush.bf16.msra.mxu0 %v3593
        %3842 = vmatpush.bf16.msra.mxu0 %v3591
        %3843 = vmatpush.bf16.msra.mxu0 %v3589
        %3844 = vmatpush.bf16.msra.mxu0 %v3587
        %3845 = vmatpush.bf16.msra.mxu0 %v3585
        %3846 = vmatpush.bf16.msra.mxu0 %v3583
        %3847 = vmatmul.bf16.gmra.mxu0 %v3057
        %v3848 = vpop.f32.mrf.mxu0
        %v3849 = vadd.f32 %v3195, %v3848
        %v3850 = vpop.f32.mrf.mxu0
        %3851 = vdwg.mxu0
        %3852 = vmatpush.bf16.msra.mxu0 %v3613
        %3853 = vmatpush.bf16.msra.mxu0 %v3611
        %3854 = vmatpush.bf16.msra.mxu0 %v3609
        %3855 = vmatpush.bf16.msra.mxu0 %v3607
        %3856 = vmatpush.bf16.msra.mxu0 %v3605
        %3857 = vmatpush.bf16.msra.mxu0 %v3603
        %3858 = vmatpush.bf16.msra.mxu0 %v3601
        %3859 = vmatpush.bf16.msra.mxu0 %v3599
        %3860 = vmatmul.bf16.gmra.mxu0 %v3058
        %v3861 = vpop.f32.mrf.mxu0
        %v3862 = vadd.f32 %v3849, %v3861
        %v3863 = vpop.f32.mrf.mxu0
        %3864 = vdwg.mxu0
        %3865 = vmatpush.bf16.msra.mxu0 %v3629
        %3866 = vmatpush.bf16.msra.mxu0 %v3627
        %3867 = vmatpush.bf16.msra.mxu0 %v3625
        %3868 = vmatpush.bf16.msra.mxu0 %v3623
        %3869 = vmatpush.bf16.msra.mxu0 %v3621
        %3870 = vmatpush.bf16.msra.mxu0 %v3619
        %3871 = vmatpush.bf16.msra.mxu0 %v3617
        %3872 = vmatpush.bf16.msra.mxu0 %v3615
        %3873 = vmatmul.bf16.gmra.mxu0 %v3059
        %v3874 = vpop.f32.mrf.mxu0
        %v3875 = vadd.f32 %v3862, %v3874
        %v3876 = vpop.f32.mrf.mxu0
        %3877 = vdwg.mxu0
        %3878 = vmatpush.bf16.msra.mxu0 %v3645
        %3879 = vmatpush.bf16.msra.mxu0 %v3643
        %3880 = vmatpush.bf16.msra.mxu0 %v3641
        %3881 = vmatpush.bf16.msra.mxu0 %v3639
        %3882 = vmatpush.bf16.msra.mxu0 %v3637
        %3883 = vmatpush.bf16.msra.mxu0 %v3635
        %3884 = vmatpush.bf16.msra.mxu0 %v3633
        %3885 = vmatpush.bf16.msra.mxu0 %v3631
        %3886 = vmatmul.bf16.gmra.mxu0 %v3060
        %v3887 = vpop.f32.mrf.mxu0
        %v3888 = vadd.f32 %v3875, %v3887
        %v3889 = vpop.f32.mrf.mxu0
        %3890 = vdwg.mxu0
        %3891 = vmatpush.bf16.msra.mxu0 %v3661
        %3892 = vmatpush.bf16.msra.mxu0 %v3659
        %3893 = vmatpush.bf16.msra.mxu0 %v3657
        %3894 = vmatpush.bf16.msra.mxu0 %v3655
        %3895 = vmatpush.bf16.msra.mxu0 %v3653
        %3896 = vmatpush.bf16.msra.mxu0 %v3651
        %3897 = vmatpush.bf16.msra.mxu0 %v3649
        %3898 = vmatpush.bf16.msra.mxu0 %v3647
        %3899 = vmatmul.bf16.gmra.mxu0 %v3061
        %v3900 = vpop.f32.mrf.mxu0
        %v3901 = vadd.f32 %v3888, %v3900
        %v3902 = vpop.f32.mrf.mxu0
        %3903 = vdwg.mxu0
        %3904 = vmatpush.bf16.msra.mxu0 %v3677
        %3905 = vmatpush.bf16.msra.mxu0 %v3675
        %3906 = vmatpush.bf16.msra.mxu0 %v3673
        %3907 = vmatpush.bf16.msra.mxu0 %v3671
        %3908 = vmatpush.bf16.msra.mxu0 %v3669
        %3909 = vmatpush.bf16.msra.mxu0 %v3667
        %3910 = vmatpush.bf16.msra.mxu0 %v3665
        %3911 = vmatpush.bf16.msra.mxu0 %v3663
        %3912 = vmatmul.bf16.gmra.mxu0 %v3062
        %v3913 = vpop.f32.mrf.mxu0
        %v3914 = vadd.f32 %v3901, %v3913
        %v3915 = vpop.f32.mrf.mxu0
        %3916 = vdwg.mxu0
        %3917 = vmatpush.bf16.msra.mxu0 %v3693
        %3918 = vmatpush.bf16.msra.mxu0 %v3691
        %3919 = vmatpush.bf16.msra.mxu0 %v3689
        %3920 = vmatpush.bf16.msra.mxu0 %v3687
        %3921 = vmatpush.bf16.msra.mxu0 %v3685
        %3922 = vmatpush.bf16.msra.mxu0 %v3683
        %3923 = vmatpush.bf16.msra.mxu0 %v3681
        %3924 = vmatpush.bf16.msra.mxu0 %v3679
        %3925 = vmatmul.bf16.gmra.mxu0 %v3063
        %v3926 = vpop.f32.mrf.mxu0
        %v3927 = vadd.f32 %v3914, %v3926
        %v3928 = vpop.f32.mrf.mxu0
        %3929 = vdwg.mxu0
        %3930 = vmatpush.bf16.msra.mxu0 %v3709
        %3931 = vmatpush.bf16.msra.mxu0 %v3707
        %3932 = vmatpush.bf16.msra.mxu0 %v3705
        %3933 = vmatpush.bf16.msra.mxu0 %v3703
        %3934 = vmatpush.bf16.msra.mxu0 %v3701
        %3935 = vmatpush.bf16.msra.mxu0 %v3699
        %3936 = vmatpush.bf16.msra.mxu0 %v3697
        %3937 = vmatpush.bf16.msra.mxu0 %v3695
        %3938 = vmatmul.bf16.gmra.mxu0 %v3064
        %v3939 = vpop.f32.mrf.mxu0
        %v3940 = vadd.f32 %v3927, %v3939
        %v3941 = vpop.f32.mrf.mxu0
        %3942 = vdwg.mxu0
        %3943 = vmatpush.bf16.msra.mxu0 %v3598
        %3944 = vmatpush.bf16.msra.mxu0 %v3596
        %3945 = vmatpush.bf16.msra.mxu0 %v3594
        %3946 = vmatpush.bf16.msra.mxu0 %v3592
        %3947 = vmatpush.bf16.msra.mxu0 %v3590
        %3948 = vmatpush.bf16.msra.mxu0 %v3588
        %3949 = vmatpush.bf16.msra.mxu0 %v3586
        %3950 = vmatpush.bf16.msra.mxu0 %v3584
        %3951 = vmatmul.bf16.gmra.mxu0 %v3057
        %v3952 = vpop.f32.mrf.mxu0
        %v3953 = vadd.f32 %v3196, %v3952
        %v3954 = vpop.f32.mrf.mxu0
        %3955 = vdwg.mxu0
        %3956 = vmatpush.bf16.msra.mxu0 %v3614
        %3957 = vmatpush.bf16.msra.mxu0 %v3612
        %3958 = vmatpush.bf16.msra.mxu0 %v3610
        %3959 = vmatpush.bf16.msra.mxu0 %v3608
        %3960 = vmatpush.bf16.msra.mxu0 %v3606
        %3961 = vmatpush.bf16.msra.mxu0 %v3604
        %3962 = vmatpush.bf16.msra.mxu0 %v3602
        %3963 = vmatpush.bf16.msra.mxu0 %v3600
        %3964 = vmatmul.bf16.gmra.mxu0 %v3058
        %v3965 = vpop.f32.mrf.mxu0
        %v3966 = vadd.f32 %v3953, %v3965
        %v3967 = vpop.f32.mrf.mxu0
        %3968 = vdwg.mxu0
        %3969 = vmatpush.bf16.msra.mxu0 %v3630
        %3970 = vmatpush.bf16.msra.mxu0 %v3628
        %3971 = vmatpush.bf16.msra.mxu0 %v3626
        %3972 = vmatpush.bf16.msra.mxu0 %v3624
        %3973 = vmatpush.bf16.msra.mxu0 %v3622
        %3974 = vmatpush.bf16.msra.mxu0 %v3620
        %3975 = vmatpush.bf16.msra.mxu0 %v3618
        %3976 = vmatpush.bf16.msra.mxu0 %v3616
        %3977 = vmatmul.bf16.gmra.mxu0 %v3059
        %v3978 = vpop.f32.mrf.mxu0
        %v3979 = vadd.f32 %v3966, %v3978
        %v3980 = vpop.f32.mrf.mxu0
        %3981 = vdwg.mxu0
        %3982 = vmatpush.bf16.msra.mxu0 %v3646
        %3983 = vmatpush.bf16.msra.mxu0 %v3644
        %3984 = vmatpush.bf16.msra.mxu0 %v3642
        %3985 = vmatpush.bf16.msra.mxu0 %v3640
        %3986 = vmatpush.bf16.msra.mxu0 %v3638
        %3987 = vmatpush.bf16.msra.mxu0 %v3636
        %3988 = vmatpush.bf16.msra.mxu0 %v3634
        %3989 = vmatpush.bf16.msra.mxu0 %v3632
        %3990 = vmatmul.bf16.gmra.mxu0 %v3060
        %v3991 = vpop.f32.mrf.mxu0
        %v3992 = vadd.f32 %v3979, %v3991
        %v3993 = vpop.f32.mrf.mxu0
        %3994 = vdwg.mxu0
        %3995 = vmatpush.bf16.msra.mxu0 %v3662
        %3996 = vmatpush.bf16.msra.mxu0 %v3660
        %3997 = vmatpush.bf16.msra.mxu0 %v3658
        %3998 = vmatpush.bf16.msra.mxu0 %v3656
        %3999 = vmatpush.bf16.msra.mxu0 %v3654
        %4000 = vmatpush.bf16.msra.mxu0 %v3652
        %4001 = vmatpush.bf16.msra.mxu0 %v3650
        %4002 = vmatpush.bf16.msra.mxu0 %v3648
        %4003 = vmatmul.bf16.gmra.mxu0 %v3061
        %v4004 = vpop.f32.mrf.mxu0
        %v4005 = vadd.f32 %v3992, %v4004
        %v4006 = vpop.f32.mrf.mxu0
        %4007 = vdwg.mxu0
        %4008 = vmatpush.bf16.msra.mxu0 %v3678
        %4009 = vmatpush.bf16.msra.mxu0 %v3676
        %4010 = vmatpush.bf16.msra.mxu0 %v3674
        %4011 = vmatpush.bf16.msra.mxu0 %v3672
        %4012 = vmatpush.bf16.msra.mxu0 %v3670
        %4013 = vmatpush.bf16.msra.mxu0 %v3668
        %4014 = vmatpush.bf16.msra.mxu0 %v3666
        %4015 = vmatpush.bf16.msra.mxu0 %v3664
        %4016 = vmatmul.bf16.gmra.mxu0 %v3062
        %v4017 = vpop.f32.mrf.mxu0
        %v4018 = vadd.f32 %v4005, %v4017
        %v4019 = vpop.f32.mrf.mxu0
        %4020 = vdwg.mxu0
        %4021 = vmatpush.bf16.msra.mxu0 %v3694
        %4022 = vmatpush.bf16.msra.mxu0 %v3692
        %4023 = vmatpush.bf16.msra.mxu0 %v3690
        %4024 = vmatpush.bf16.msra.mxu0 %v3688
        %4025 = vmatpush.bf16.msra.mxu0 %v3686
        %4026 = vmatpush.bf16.msra.mxu0 %v3684
        %4027 = vmatpush.bf16.msra.mxu0 %v3682
        %4028 = vmatpush.bf16.msra.mxu0 %v3680
        %4029 = vmatmul.bf16.gmra.mxu0 %v3063
        %v4030 = vpop.f32.mrf.mxu0
        %v4031 = vadd.f32 %v4018, %v4030
        %v4032 = vpop.f32.mrf.mxu0
        %4033 = vdwg.mxu0
        %4034 = vmatpush.bf16.msra.mxu0 %v3710
        %4035 = vmatpush.bf16.msra.mxu0 %v3708
        %4036 = vmatpush.bf16.msra.mxu0 %v3706
        %4037 = vmatpush.bf16.msra.mxu0 %v3704
        %4038 = vmatpush.bf16.msra.mxu0 %v3702
        %4039 = vmatpush.bf16.msra.mxu0 %v3700
        %4040 = vmatpush.bf16.msra.mxu0 %v3698
        %4041 = vmatpush.bf16.msra.mxu0 %v3696
        %4042 = vmatmul.bf16.gmra.mxu0 %v3064
        %v4043 = vpop.f32.mrf.mxu0
        %v4044 = vadd.f32 %v4031, %v4043
        %v4045 = vpop.f32.mrf.mxu0
        %4046 = vdwg.mxu0
        %v4047 = vadd.f32 %v1879, %v3940
        %v4048 = vadd.f32 %v1880, %v4044
        %v4049 = vld [vmem:[%s11] sm:$0x3]
        %v4050 = vld [vmem:[%s12] sm:$0x3]
        %v4051 = vadd.f32 %v4047, %v4048
        %4052 = vadd.xlane.f32.xlu0 %v4051
        %v4053 = vpop.xlane.xlu0 %4052
        %v4054 = vmul.f32 %v4053, %v1844
        %v4055 = vsub.f32 %v4047, %v4054
        %v4056 = vsub.f32 %v4048, %v4054
        %v4057 = vmul.f32 %v4055, %v4055
        %v4058 = vmul.f32 %v4056, %v4056
        %v4059 = vadd.f32 %v4057, %v4058
        %4060 = vadd.xlane.f32.xlu0 %v4059
        %v4061 = vpop.xlane.xlu0 %4060
        %v4062 = vmul.f32 %v4061, %v1844
        %v4063 = vadd.f32 %v4062, 1e-05
        %v4064 = vrsqrt.pop %v4063
        %v4065 = vmul.f32 %v4064, %v4063
        %v4066 = vmul.f32 %v4065, %v4064
        %v4067 = vmul.f32 0.5, %v4066
        %v4068 = vsub.f32 1.5, %v4067
        %v4069 = vmul.f32 %v4064, %v4068
        %vm4070 = vweird.f32 %v4063
        %vm4071 = vweird.f32 %v4064
        %vm4072 = vmor %vm4070, %vm4071
        %v4073 = vsel %vm4072, %v4064, %v4069
        %v4074 = vmul.f32 %v4055, %v4073
        %v4075 = vmul.f32 %v4056, %v4073
        %v4077 = vperm.slane %v4049, 0
        %v4078 = vperm.slane %v4049, 1
        %v4081 = vmul.f32 %v4074, %v4077
        %v4082 = vmul.f32 %v4075, %v4078
        %v4084 = vperm.slane %v4050, 0
        %v4085 = vperm.slane %v4050, 1
        %v4088 = vadd.f32 %v4081, %v4084
        %v4089 = vadd.f32 %v4082, %v4085
        %4090 = vst [vmem:[%s568] sm:$0xff] %v4088
        %4091 = vst [vmem:[%s568 + $0x8] sm:$0xff] %v4089
        %s4092 = sand.u32 %s320, 1
        %s4093 = scalar_lea.sflag [#allocation4], %s4092
        %s4094 = sand.u32 %s320, 1
        %s4095 = smul.addr %s4094, 16
        %s4096 = scalar_lea.vmem [#allocation16], %s4095
        // Predicated region
        $region105: #{transformer_block.1} parent=71 // pred_check
          %p4097 = pneg %p330
        $region106: #{transformer_block.1} parent=71 // pred_check_branch
          %4099 = sbr.rel (%p4097) target = $region108
        $region107: #{transformer_block.1} parent=71 // pred_region
          %4101 = vsyncadd %s4093, 0
          %s4102 = smul.addr %s34, 2
          %s4103 = smul.addr %s4102, 8
          %s4104 = scalar_lea.hbm %s13, %s4103
          %s4106 = sshll.u32 %s4096, 4
          %s4107 = int_to_ptr.vmem [resolvable:$true] %s4106
          %s4108 = sshll.u32 %s4104, 4
          %s4109 = int_to_ptr.hbm [resolvable:$true] %s4108
          %4111 = dma.vmem_to_hbm [thread:$0]  %s4107, 256, %s4109, %s4093
        $region108: #{transformer_block.1} parent=71 // pred_fallthru
          _
      $region72: #{transformer_block.1} parent=5 // pred_fallthru
        _
      %p4112 = scmp.le.s32.totalorder 2, %s29
      // Predicated region
      $region109: #{transformer_block.1} parent=5 // pred_check
        %p4113 = pneg %p4112
      $region110: #{transformer_block.1} parent=5 // pred_check_branch
        %4115 = sbr.rel (%p4113) target = $region112
      $region111: #{transformer_block.1} parent=5 // pred_region
        %s4116 = ssub.s32 %s29, 2
        // Predicated region
        $region113: #{transformer_block.1} parent=111 // pred_check
          %p4117 = pneg %p336
        $region114: #{transformer_block.1} parent=111 // pred_check_branch
          %4119 = sbr.rel (%p4117) target = $region116
        $region115: #{transformer_block.1} parent=111 // pred_region
          %s4120 = sand.u32 %s321, 1
          %s4121 = scalar_lea.sflag [#allocation4], %s4120
          %s4122 = sand.u32 %s321, 1
          %s4123 = smul.addr %s4122, 16
          %s4124 = scalar_lea.vmem [#allocation16], %s4123
          %4126 = dma.done %s4121, 256
        $region116: #{transformer_block.1} parent=111 // pred_fallthru
          _
      $region112: #{transformer_block.1} parent=5 // pred_fallthru
        _
    $region6: #{transformer_block.1} parent=1 // loop_footer
      %s33 = sadd.s32 1, %s29
    $region7: #{transformer_block.1} parent=1 // loop_footer_branch
      %28 = sbr.rel target = $region3
    $region8: #{transformer_block.1} parent=1 // loop_exit
      _
    %4127 = vsyncpa [#allocation3], 1
    %s4128 = scalar_lea.sflag [#allocation3], 1
    %4129 = vsyncpa %s4128, 1
    %4130 = vsyncpa [#allocation6], 1
    %4131 = vsyncpa [#allocation9], 1
    %4132 = vsyncpa [#allocation12], 1
    %4133 = vsyncpa [#allocation15], 1
    %4134 = vsyncpa [#allocation4], 1
    %s4135 = scalar_lea.sflag [#allocation4], 1
    %4136 = vsyncpa %s4135, 1

</llo_original>
